<compile_context>
chip_gen: v6e
topology: v6e:2x2x1
jax: 0.10.0
libtpu: 0.0.40
codegen_flags: <defaults>
</compile_context>

<pallas_src>
import functools

import jax
import jax.numpy as jnp
from jax.experimental import pallas as pl
from jax.experimental.pallas import tpu as pltpu


# ----------------------------- Pallas kernel -----------------------------

def _aera_head_kernel(x_ref, w3_ref, b3_ref, w1_ref, b1_ref, o_ref, acc_ref, *, H, W):
    """Fused aera_Head forward for one batch element.

    x_ref  : (1, H+2, W+2, Cin)   zero-padded NHWC input tile
    w3_ref : (9*Cin, Cmid)        3x3 conv weight (BN-folded), rows = (kh, kw, cin)
    b3_ref : (1, Cmid)            BN-folded bias
    w1_ref : (Cmid, n_cls)        1x1 conv_out weight
    b1_ref : (1, n_cls)           conv_out bias
    o_ref  : (1, 1, n_cls)        sigmoid(avg-pooled logits)
    acc_ref: (H*W, Cmid) f32      VMEM accumulator for the 3x3 conv
    """
    cin = x_ref.shape[-1]

    # 3x3 conv (padding=1) as 9 shifted matmuls accumulated on the MXU in f32.
    acc_ref[...] = jnp.zeros_like(acc_ref)
    for tap in range(9):
        di, dj = divmod(tap, 3)
        patch = x_ref[0, di:di + H, dj:dj + W, :].reshape(H * W, cin)
        w_tap = w3_ref[tap * cin:(tap + 1) * cin, :]
        acc_ref[...] += jnp.dot(patch, w_tap, preferred_element_type=jnp.float32)

    # Fused eval-mode BatchNorm (affine) + ReLU.
    feat = jnp.maximum(acc_ref[...] + b3_ref[...], 0.0)                 # (H*W, Cmid)

    # AdaptiveAvgPool2d(1) commuted past the linear 1x1 conv_out (exact).
    pooled = jnp.sum(feat, axis=0, keepdims=True) * (1.0 / (H * W))     # (1, Cmid)
    logits = jnp.dot(pooled, w1_ref[...],
                     preferred_element_type=jnp.float32) + b1_ref[...]  # (1, n_cls)

    # Sigmoid (kept in f32 on the VPU/EUP path).
    o_ref[0] = (1.0 / (1.0 + jnp.exp(-logits))).astype(o_ref.dtype)


# ----------------------------- Wrapper -----------------------------

def aera_head_forward(x_nchw, fused):
    """x_nchw: (B, Cin, H, W) float32 -> (B, n_classes, 1, 1) float32."""
    B, C, H, W = x_nchw.shape
    w3, b3, w1, b1 = fused["w3"], fused["b3"], fused["w1"], fused["b1"]
    mid = w3.shape[1]
    ncls = w1.shape[1]

    # Single layout conversion at the module boundary + zero pad for the 3x3 conv.
    x_pad = jnp.pad(jnp.transpose(x_nchw, (0, 2, 3, 1)),
                    ((0, 0), (1, 1), (1, 1), (0, 0)))

    out = pl.pallas_call(
        functools.partial(_aera_head_kernel, H=H, W=W),
        out_shape=jax.ShapeDtypeStruct((B, 1, ncls), jnp.float32),
        grid=(B,),
        in_specs=[
            pl.BlockSpec((1, H + 2, W + 2, C), lambda b: (b, 0, 0, 0)),
            pl.BlockSpec((9 * C, mid), lambda b: (0, 0)),   # weights: VMEM-resident,
            pl.BlockSpec((1, mid), lambda b: (0, 0)),       # constant block index
            pl.BlockSpec((mid, ncls), lambda b: (0, 0)),    # -> no re-DMA per step
            pl.BlockSpec((1, ncls), lambda b: (0, 0)),
        ],
        out_specs=pl.BlockSpec((1, 1, ncls), lambda b: (b, 0, 0)),
        scratch_shapes=[pltpu.VMEM((H * W, mid), jnp.float32)],
        compiler_params=pltpu.CompilerParams(dimension_semantics=("parallel",)),
    )(x_pad, w3, b3, w1, b1)

    return out.reshape(B, ncls)[:, :, None, None]


# ----------------------------- Parameters -----------------------------

def init_params(key, in_chan, mid_chan, n_classes, eps=1e-5):
    ks = jax.random.split(key, 7)
    w_conv = jax.random.normal(ks[0], (mid_chan, in_chan, 3, 3),
                               jnp.float32) * (2.0 / (9 * in_chan)) ** 0.5
    bn_gamma = 1.0 + 0.1 * jax.random.normal(ks[1], (mid_chan,), jnp.float32)
    bn_beta = 0.05 * jax.random.normal(ks[2], (mid_chan,), jnp.float32)
    bn_mean = 0.1 * jax.random.normal(ks[3], (mid_chan,), jnp.float32)
    bn_var = jnp.abs(jax.random.normal(ks[4], (mid_chan,), jnp.float32)) + 0.5
    w_out = jax.random.normal(ks[5], (n_classes, mid_chan, 1, 1),
                              jnp.float32) * (1.0 / mid_chan) ** 0.5
    b_out = 0.02 * jax.random.normal(ks[6], (n_classes,), jnp.float32)
    return dict(w_conv=w_conv, bn_gamma=bn_gamma, bn_beta=bn_beta,
                bn_mean=bn_mean, bn_var=bn_var, w_out=w_out, b_out=b_out, eps=eps)


def fuse_params(p):
    """Fold eval-mode BatchNorm into the conv and lay weights out for the kernel."""
    # TODO(synk): training-mode BatchNorm (batch statistics) is not implemented;
    # the fusion below reproduces PyTorch .eval() forward semantics.
    mid = p["w_conv"].shape[0]
    cin = p["w_conv"].shape[1]
    ncls = p["w_out"].shape[0]
    scale = p["bn_gamma"] / jnp.sqrt(p["bn_var"] + p["eps"])                    # (mid,)
    w3 = jnp.transpose(p["w_conv"] * scale[:, None, None, None], (2, 3, 1, 0))  # (3,3,cin,mid)
    w3 = w3.reshape(9 * cin, mid)                                               # rows = (kh,kw,cin)
    b3 = (p["bn_beta"] - p["bn_mean"] * scale)[None, :]
    w1 = p["w_out"].reshape(ncls, mid).T
    b1 = p["b_out"][None, :]
    return dict(w3=w3, b3=b3, w1=w1, b1=b1)


def reference_forward(x, p):
    """Pure-JAX reference of the PyTorch aera_Head.forward (eval mode)."""
    y = jax.lax.conv_general_dilated(
        x, p["w_conv"], window_strides=(1, 1), padding=((1, 1), (1, 1)),
        dimension_numbers=("NCHW", "OIHW", "NCHW"))
    scale = p["bn_gamma"] / jnp.sqrt(p["bn_var"] + p["eps"])
    y = y * scale[None, :, None, None] + (p["bn_beta"] - p["bn_mean"] * scale)[None, :, None, None]
    y = jnp.maximum(y, 0.0)                                            # ReLU
    w1 = p["w_out"].reshape(p["w_out"].shape[0], -1)                   # (ncls, mid)
    y = jnp.einsum("bchw,oc->bohw", y, w1) + p["b_out"][None, :, None, None]
    y = jnp.mean(y, axis=(2, 3), keepdims=True)                        # AdaptiveAvgPool2d(1)
    return jax.nn.sigmoid(y)


# ----------------------------- Main -----------------------------

if __name__ == "__main__":
    B, C_IN, C_MID, N_CLASSES, H = 2, 128, 128, 19, 16
    W = H

    key = jax.random.PRNGKey(0)
    kx, kp = jax.random.split(key)
    x = jax.random.normal(kx, (B, C_IN, H, W), jnp.float32)
    raw = init_params(kp, C_IN, C_MID, N_CLASSES)
    fused = fuse_params(raw)

    fwd = jax.jit(aera_head_forward)
    out = fwd(x, fused)
    jax.block_until_ready(out)

    assert out.shape == (B, N_CLASSES, 1, 1)
    assert bool(jnp.all(jnp.isfinite(out)))

    # Cross-check the fused Pallas head against a pure-JAX reference of the
    # PyTorch forward (loose tolerance to allow for MXU f32 pass differences).
    ref = jax.jit(reference_forward)(x, raw)
    max_err = float(jnp.max(jnp.abs(out - ref)))
    assert max_err < 2e-2, f"mismatch vs reference: max abs err {max_err}"

    print("KERNEL_OK")
</pallas_src>

<mosaic_0001>
module attributes {stable_mosaic.version = 11 : i64} {
  func.func @_aera_head_kernel(%arg0: i32, %arg1: memref<1x18x18x128xf32, #tpu.memory_space<vmem>>, %arg2: memref<1152x128xf32, #tpu.memory_space<vmem>>, %arg3: memref<1x128xf32, #tpu.memory_space<vmem>>, %arg4: memref<128x19xf32, #tpu.memory_space<vmem>>, %arg5: memref<1x19xf32, #tpu.memory_space<vmem>>, %arg6: memref<1x1x19xf32, #tpu.memory_space<vmem>>, %arg7: memref<256x128xf32, #tpu.memory_space<vmem>>) attributes {dimension_semantics = [#tpu.dimension_semantics<parallel>], iteration_bounds = array<i64: 2>, scalar_prefetch = 0 : i64, scratch_operands = 1 : i64, tpu.core_type = #tpu.core_type<tc>, window_params = [{transform_indices = @transform_0, window_bounds = array<i64: 1, 18, 18, 128>}, {pipeline_mode = #tpu.pipeline_mode<synchronous>, transform_indices = @transform_1, window_bounds = array<i64: 1152, 128>}, {pipeline_mode = #tpu.pipeline_mode<synchronous>, transform_indices = @transform_2, window_bounds = array<i64: 1, 128>}, {pipeline_mode = #tpu.pipeline_mode<synchronous>, transform_indices = @transform_3, window_bounds = array<i64: 128, 19>}, {pipeline_mode = #tpu.pipeline_mode<synchronous>, transform_indices = @transform_4, window_bounds = array<i64: 1, 19>}, {transform_indices = @transform_5, window_bounds = array<i64: 1, 1, 19>}]} {
    %cst = arith.constant 0.000000e+00 : f32
    %0 = vector.broadcast %cst : f32 to vector<256x128xf32>
    %c0 = arith.constant 0 : index
    %c0_0 = arith.constant 0 : index
    %1 = vector.load %arg7[%c0, %c0_0] : memref<256x128xf32, #tpu.memory_space<vmem>>, vector<256x128xf32>
    tpu.vector_store %arg7[%c0, %c0_0], %0 {strides = array<i32>} : memref<256x128xf32, #tpu.memory_space<vmem>>, vector<256x128xf32>,
    %c0_1 = arith.constant 0 : index
    %c0_2 = arith.constant 0 : index
    %c0_3 = arith.constant 0 : index
    %c0_4 = arith.constant 0 : index
    %2 = vector.load %arg1[%c0_1, %c0_2, %c0_3, %c0_4] : memref<1x18x18x128xf32, #tpu.memory_space<vmem>>, vector<1x16x16x128xf32>
    %3 = vector.shape_cast %2 : vector<1x16x16x128xf32> to vector<16x16x128xf32>
    %4 = vector.shape_cast %3 : vector<16x16x128xf32> to vector<256x128xf32>
    %c0_5 = arith.constant 0 : index
    %c0_6 = arith.constant 0 : index
    %5 = vector.load %arg2[%c0_5, %c0_6] : memref<1152x128xf32, #tpu.memory_space<vmem>>, vector<128x128xf32>
    %c0_7 = arith.constant 0 : index
    %c0_8 = arith.constant 0 : index
    %6 = vector.load %arg7[%c0_7, %c0_8] : memref<256x128xf32, #tpu.memory_space<vmem>>, vector<256x128xf32>
    %cst_9 = arith.constant dense<0.000000e+00> : vector<256x128xf32>
    %7 = tpu.matmul %4, %5, %cst_9 {dimension_numbers = #tpu.dot_dimension_numbers<[1], [0], [0], [1], [0, 0, 1, 1], [], []>} : vector<256x128xf32>, vector<128x128xf32>, vector<256x128xf32> -> vector<256x128xf32>
    %8 = arith.addf %6, %7 : vector<256x128xf32>
    %c0_10 = arith.constant 0 : index
    %c0_11 = arith.constant 0 : index
    %9 = vector.load %arg7[%c0_10, %c0_11] : memref<256x128xf32, #tpu.memory_space<vmem>>, vector<256x128xf32>
    tpu.vector_store %arg7[%c0_10, %c0_11], %8 {strides = array<i32>} : memref<256x128xf32, #tpu.memory_space<vmem>>, vector<256x128xf32>,
    %c0_12 = arith.constant 0 : index
    %c0_13 = arith.constant 0 : index
    %c1 = arith.constant 1 : index
    %c0_14 = arith.constant 0 : index
    %10 = vector.load %arg1[%c0_12, %c0_13, %c1, %c0_14] : memref<1x18x18x128xf32, #tpu.memory_space<vmem>>, vector<1x16x16x128xf32>
    %11 = vector.shape_cast %10 : vector<1x16x16x128xf32> to vector<16x16x128xf32>
    %12 = vector.shape_cast %11 : vector<16x16x128xf32> to vector<256x128xf32>
    %c128 = arith.constant 128 : index
    %c0_15 = arith.constant 0 : index
    %13 = vector.load %arg2[%c128, %c0_15] : memref<1152x128xf32, #tpu.memory_space<vmem>>, vector<128x128xf32>
    %c0_16 = arith.constant 0 : index
    %c0_17 = arith.constant 0 : index
    %14 = vector.load %arg7[%c0_16, %c0_17] : memref<256x128xf32, #tpu.memory_space<vmem>>, vector<256x128xf32>
    %cst_18 = arith.constant dense<0.000000e+00> : vector<256x128xf32>
    %15 = tpu.matmul %12, %13, %cst_18 {dimension_numbers = #tpu.dot_dimension_numbers<[1], [0], [0], [1], [0, 0, 1, 1], [], []>} : vector<256x128xf32>, vector<128x128xf32>, vector<256x128xf32> -> vector<256x128xf32>
    %16 = arith.addf %14, %15 : vector<256x128xf32>
    %c0_19 = arith.constant 0 : index
    %c0_20 = arith.constant 0 : index
    %17 = vector.load %arg7[%c0_19, %c0_20] : memref<256x128xf32, #tpu.memory_space<vmem>>, vector<256x128xf32>
    tpu.vector_store %arg7[%c0_19, %c0_20], %16 {strides = array<i32>} : memref<256x128xf32, #tpu.memory_space<vmem>>, vector<256x128xf32>,
    %c0_21 = arith.constant 0 : index
    %c0_22 = arith.constant 0 : index
    %c2 = arith.constant 2 : index
    %c0_23 = arith.constant 0 : index
    %18 = vector.load %arg1[%c0_21, %c0_22, %c2, %c0_23] : memref<1x18x18x128xf32, #tpu.memory_space<vmem>>, vector<1x16x16x128xf32>
    %19 = vector.shape_cast %18 : vector<1x16x16x128xf32> to vector<16x16x128xf32>
    %20 = vector.shape_cast %19 : vector<16x16x128xf32> to vector<256x128xf32>
    %c256 = arith.constant 256 : index
    %c0_24 = arith.constant 0 : index
    %21 = vector.load %arg2[%c256, %c0_24] : memref<1152x128xf32, #tpu.memory_space<vmem>>, vector<128x128xf32>
    %c0_25 = arith.constant 0 : index
    %c0_26 = arith.constant 0 : index
    %22 = vector.load %arg7[%c0_25, %c0_26] : memref<256x128xf32, #tpu.memory_space<vmem>>, vector<256x128xf32>
    %cst_27 = arith.constant dense<0.000000e+00> : vector<256x128xf32>
    %23 = tpu.matmul %20, %21, %cst_27 {dimension_numbers = #tpu.dot_dimension_numbers<[1], [0], [0], [1], [0, 0, 1, 1], [], []>} : vector<256x128xf32>, vector<128x128xf32>, vector<256x128xf32> -> vector<256x128xf32>
    %24 = arith.addf %22, %23 : vector<256x128xf32>
    %c0_28 = arith.constant 0 : index
    %c0_29 = arith.constant 0 : index
    %25 = vector.load %arg7[%c0_28, %c0_29] : memref<256x128xf32, #tpu.memory_space<vmem>>, vector<256x128xf32>
    tpu.vector_store %arg7[%c0_28, %c0_29], %24 {strides = array<i32>} : memref<256x128xf32, #tpu.memory_space<vmem>>, vector<256x128xf32>,
    %c0_30 = arith.constant 0 : index
    %c1_31 = arith.constant 1 : index
    %c0_32 = arith.constant 0 : index
    %c0_33 = arith.constant 0 : index
    %26 = vector.load %arg1[%c0_30, %c1_31, %c0_32, %c0_33] : memref<1x18x18x128xf32, #tpu.memory_space<vmem>>, vector<1x16x16x128xf32>
    %27 = vector.shape_cast %26 : vector<1x16x16x128xf32> to vector<16x16x128xf32>
    %28 = vector.shape_cast %27 : vector<16x16x128xf32> to vector<256x128xf32>
    %c384 = arith.constant 384 : index
    %c0_34 = arith.constant 0 : index
    %29 = vector.load %arg2[%c384, %c0_34] : memref<1152x128xf32, #tpu.memory_space<vmem>>, vector<128x128xf32>
    %c0_35 = arith.constant 0 : index
    %c0_36 = arith.constant 0 : index
    %30 = vector.load %arg7[%c0_35, %c0_36] : memref<256x128xf32, #tpu.memory_space<vmem>>, vector<256x128xf32>
    %cst_37 = arith.constant dense<0.000000e+00> : vector<256x128xf32>
    %31 = tpu.matmul %28, %29, %cst_37 {dimension_numbers = #tpu.dot_dimension_numbers<[1], [0], [0], [1], [0, 0, 1, 1], [], []>} : vector<256x128xf32>, vector<128x128xf32>, vector<256x128xf32> -> vector<256x128xf32>
    %32 = arith.addf %30, %31 : vector<256x128xf32>
    %c0_38 = arith.constant 0 : index
    %c0_39 = arith.constant 0 : index
    %33 = vector.load %arg7[%c0_38, %c0_39] : memref<256x128xf32, #tpu.memory_space<vmem>>, vector<256x128xf32>
    tpu.vector_store %arg7[%c0_38, %c0_39], %32 {strides = array<i32>} : memref<256x128xf32, #tpu.memory_space<vmem>>, vector<256x128xf32>,
    %c0_40 = arith.constant 0 : index
    %c1_41 = arith.constant 1 : index
    %c1_42 = arith.constant 1 : index
    %c0_43 = arith.constant 0 : index
    %34 = vector.load %arg1[%c0_40, %c1_41, %c1_42, %c0_43] : memref<1x18x18x128xf32, #tpu.memory_space<vmem>>, vector<1x16x16x128xf32>
    %35 = vector.shape_cast %34 : vector<1x16x16x128xf32> to vector<16x16x128xf32>
    %36 = vector.shape_cast %35 : vector<16x16x128xf32> to vector<256x128xf32>
    %c512 = arith.constant 512 : index
    %c0_44 = arith.constant 0 : index
    %37 = vector.load %arg2[%c512, %c0_44] : memref<1152x128xf32, #tpu.memory_space<vmem>>, vector<128x128xf32>
    %c0_45 = arith.constant 0 : index
    %c0_46 = arith.constant 0 : index
    %38 = vector.load %arg7[%c0_45, %c0_46] : memref<256x128xf32, #tpu.memory_space<vmem>>, vector<256x128xf32>
    %cst_47 = arith.constant dense<0.000000e+00> : vector<256x128xf32>
    %39 = tpu.matmul %36, %37, %cst_47 {dimension_numbers = #tpu.dot_dimension_numbers<[1], [0], [0], [1], [0, 0, 1, 1], [], []>} : vector<256x128xf32>, vector<128x128xf32>, vector<256x128xf32> -> vector<256x128xf32>
    %40 = arith.addf %38, %39 : vector<256x128xf32>
    %c0_48 = arith.constant 0 : index
    %c0_49 = arith.constant 0 : index
    %41 = vector.load %arg7[%c0_48, %c0_49] : memref<256x128xf32, #tpu.memory_space<vmem>>, vector<256x128xf32>
    tpu.vector_store %arg7[%c0_48, %c0_49], %40 {strides = array<i32>} : memref<256x128xf32, #tpu.memory_space<vmem>>, vector<256x128xf32>,
    %c0_50 = arith.constant 0 : index
    %c1_51 = arith.constant 1 : index
    %c2_52 = arith.constant 2 : index
    %c0_53 = arith.constant 0 : index
    %42 = vector.load %arg1[%c0_50, %c1_51, %c2_52, %c0_53] : memref<1x18x18x128xf32, #tpu.memory_space<vmem>>, vector<1x16x16x128xf32>
    %43 = vector.shape_cast %42 : vector<1x16x16x128xf32> to vector<16x16x128xf32>
    %44 = vector.shape_cast %43 : vector<16x16x128xf32> to vector<256x128xf32>
    %c640 = arith.constant 640 : index
    %c0_54 = arith.constant 0 : index
    %45 = vector.load %arg2[%c640, %c0_54] : memref<1152x128xf32, #tpu.memory_space<vmem>>, vector<128x128xf32>
    %c0_55 = arith.constant 0 : index
    %c0_56 = arith.constant 0 : index
    %46 = vector.load %arg7[%c0_55, %c0_56] : memref<256x128xf32, #tpu.memory_space<vmem>>, vector<256x128xf32>
    %cst_57 = arith.constant dense<0.000000e+00> : vector<256x128xf32>
    %47 = tpu.matmul %44, %45, %cst_57 {dimension_numbers = #tpu.dot_dimension_numbers<[1], [0], [0], [1], [0, 0, 1, 1], [], []>} : vector<256x128xf32>, vector<128x128xf32>, vector<256x128xf32> -> vector<256x128xf32>
    %48 = arith.addf %46, %47 : vector<256x128xf32>
    %c0_58 = arith.constant 0 : index
    %c0_59 = arith.constant 0 : index
    %49 = vector.load %arg7[%c0_58, %c0_59] : memref<256x128xf32, #tpu.memory_space<vmem>>, vector<256x128xf32>
    tpu.vector_store %arg7[%c0_58, %c0_59], %48 {strides = array<i32>} : memref<256x128xf32, #tpu.memory_space<vmem>>, vector<256x128xf32>,
    %c0_60 = arith.constant 0 : index
    %c2_61 = arith.constant 2 : index
    %c0_62 = arith.constant 0 : index
    %c0_63 = arith.constant 0 : index
    %50 = vector.load %arg1[%c0_60, %c2_61, %c0_62, %c0_63] : memref<1x18x18x128xf32, #tpu.memory_space<vmem>>, vector<1x16x16x128xf32>
    %51 = vector.shape_cast %50 : vector<1x16x16x128xf32> to vector<16x16x128xf32>
    %52 = vector.shape_cast %51 : vector<16x16x128xf32> to vector<256x128xf32>
    %c768 = arith.constant 768 : index
    %c0_64 = arith.constant 0 : index
    %53 = vector.load %arg2[%c768, %c0_64] : memref<1152x128xf32, #tpu.memory_space<vmem>>, vector<128x128xf32>
    %c0_65 = arith.constant 0 : index
    %c0_66 = arith.constant 0 : index
    %54 = vector.load %arg7[%c0_65, %c0_66] : memref<256x128xf32, #tpu.memory_space<vmem>>, vector<256x128xf32>
    %cst_67 = arith.constant dense<0.000000e+00> : vector<256x128xf32>
    %55 = tpu.matmul %52, %53, %cst_67 {dimension_numbers = #tpu.dot_dimension_numbers<[1], [0], [0], [1], [0, 0, 1, 1], [], []>} : vector<256x128xf32>, vector<128x128xf32>, vector<256x128xf32> -> vector<256x128xf32>
    %56 = arith.addf %54, %55 : vector<256x128xf32>
    %c0_68 = arith.constant 0 : index
    %c0_69 = arith.constant 0 : index
    %57 = vector.load %arg7[%c0_68, %c0_69] : memref<256x128xf32, #tpu.memory_space<vmem>>, vector<256x128xf32>
    tpu.vector_store %arg7[%c0_68, %c0_69], %56 {strides = array<i32>} : memref<256x128xf32, #tpu.memory_space<vmem>>, vector<256x128xf32>,
    %c0_70 = arith.constant 0 : index
    %c2_71 = arith.constant 2 : index
    %c1_72 = arith.constant 1 : index
    %c0_73 = arith.constant 0 : index
    %58 = vector.load %arg1[%c0_70, %c2_71, %c1_72, %c0_73] : memref<1x18x18x128xf32, #tpu.memory_space<vmem>>, vector<1x16x16x128xf32>
    %59 = vector.shape_cast %58 : vector<1x16x16x128xf32> to vector<16x16x128xf32>
    %60 = vector.shape_cast %59 : vector<16x16x128xf32> to vector<256x128xf32>
    %c896 = arith.constant 896 : index
    %c0_74 = arith.constant 0 : index
    %61 = vector.load %arg2[%c896, %c0_74] : memref<1152x128xf32, #tpu.memory_space<vmem>>, vector<128x128xf32>
    %c0_75 = arith.constant 0 : index
    %c0_76 = arith.constant 0 : index
    %62 = vector.load %arg7[%c0_75, %c0_76] : memref<256x128xf32, #tpu.memory_space<vmem>>, vector<256x128xf32>
    %cst_77 = arith.constant dense<0.000000e+00> : vector<256x128xf32>
    %63 = tpu.matmul %60, %61, %cst_77 {dimension_numbers = #tpu.dot_dimension_numbers<[1], [0], [0], [1], [0, 0, 1, 1], [], []>} : vector<256x128xf32>, vector<128x128xf32>, vector<256x128xf32> -> vector<256x128xf32>
    %64 = arith.addf %62, %63 : vector<256x128xf32>
    %c0_78 = arith.constant 0 : index
    %c0_79 = arith.constant 0 : index
    %65 = vector.load %arg7[%c0_78, %c0_79] : memref<256x128xf32, #tpu.memory_space<vmem>>, vector<256x128xf32>
    tpu.vector_store %arg7[%c0_78, %c0_79], %64 {strides = array<i32>} : memref<256x128xf32, #tpu.memory_space<vmem>>, vector<256x128xf32>,
    %c0_80 = arith.constant 0 : index
    %c2_81 = arith.constant 2 : index
    %c2_82 = arith.constant 2 : index
    %c0_83 = arith.constant 0 : index
    %66 = vector.load %arg1[%c0_80, %c2_81, %c2_82, %c0_83] : memref<1x18x18x128xf32, #tpu.memory_space<vmem>>, vector<1x16x16x128xf32>
    %67 = vector.shape_cast %66 : vector<1x16x16x128xf32> to vector<16x16x128xf32>
    %68 = vector.shape_cast %67 : vector<16x16x128xf32> to vector<256x128xf32>
    %c1024 = arith.constant 1024 : index
    %c0_84 = arith.constant 0 : index
    %69 = vector.load %arg2[%c1024, %c0_84] : memref<1152x128xf32, #tpu.memory_space<vmem>>, vector<128x128xf32>
    %c0_85 = arith.constant 0 : index
    %c0_86 = arith.constant 0 : index
    %70 = vector.load %arg7[%c0_85, %c0_86] : memref<256x128xf32, #tpu.memory_space<vmem>>, vector<256x128xf32>
    %cst_87 = arith.constant dense<0.000000e+00> : vector<256x128xf32>
    %71 = tpu.matmul %68, %69, %cst_87 {dimension_numbers = #tpu.dot_dimension_numbers<[1], [0], [0], [1], [0, 0, 1, 1], [], []>} : vector<256x128xf32>, vector<128x128xf32>, vector<256x128xf32> -> vector<256x128xf32>
    %72 = arith.addf %70, %71 : vector<256x128xf32>
    %c0_88 = arith.constant 0 : index
    %c0_89 = arith.constant 0 : index
    %73 = vector.load %arg7[%c0_88, %c0_89] : memref<256x128xf32, #tpu.memory_space<vmem>>, vector<256x128xf32>
    tpu.vector_store %arg7[%c0_88, %c0_89], %72 {strides = array<i32>} : memref<256x128xf32, #tpu.memory_space<vmem>>, vector<256x128xf32>,
    %c0_90 = arith.constant 0 : index
    %c0_91 = arith.constant 0 : index
    %74 = vector.load %arg7[%c0_90, %c0_91] : memref<256x128xf32, #tpu.memory_space<vmem>>, vector<256x128xf32>
    %c0_92 = arith.constant 0 : index
    %c0_93 = arith.constant 0 : index
    %75 = vector.load %arg3[%c0_92, %c0_93] : memref<1x128xf32, #tpu.memory_space<vmem>>, vector<1x128xf32>
    %76 = vector.broadcast %75 : vector<1x128xf32> to vector<256x128xf32>
    %77 = arith.addf %74, %76 : vector<256x128xf32>
    %cst_94 = arith.constant 0.000000e+00 : f32
    %78 = vector.broadcast %cst_94 : f32 to vector<256x128xf32>
    %79 = arith.maximumf %77, %78 : vector<256x128xf32>
    %cst_95 = arith.constant dense<0.000000e+00> : vector<128xf32>
    %80 = vector.multi_reduction <add>, %79, %cst_95 [0] : vector<256x128xf32> to vector<128xf32>
    %81 = vector.shape_cast %80 : vector<128xf32> to vector<1x128xf32>
    %cst_96 = arith.constant 3.906250e-03 : f32
    %82 = vector.broadcast %cst_96 : f32 to vector<1x128xf32>
    %83 = arith.mulf %81, %82 : vector<1x128xf32>
    %c0_97 = arith.constant 0 : index
    %c0_98 = arith.constant 0 : index
    %84 = vector.load %arg4[%c0_97, %c0_98] : memref<128x19xf32, #tpu.memory_space<vmem>>, vector<128x19xf32>
    %cst_99 = arith.constant dense<0.000000e+00> : vector<1x19xf32>
    %85 = tpu.matmul %83, %84, %cst_99 {dimension_numbers = #tpu.dot_dimension_numbers<[1], [0], [0], [1], [0, 0, 1, 1], [], []>} : vector<1x128xf32>, vector<128x19xf32>, vector<1x19xf32> -> vector<1x19xf32>
    %c0_100 = arith.constant 0 : index
    %c0_101 = arith.constant 0 : index
    %86 = vector.load %arg5[%c0_100, %c0_101] : memref<1x19xf32, #tpu.memory_space<vmem>>, vector<1x19xf32>
    %87 = arith.addf %85, %86 : vector<1x19xf32>
    %cst_102 = arith.constant 0.000000e+00 : f32
    %88 = vector.broadcast %cst_102 : f32 to vector<1x19xf32>
    %89 = arith.subf %88, %87 : vector<1x19xf32>
    %90 = math.exp %89 : vector<1x19xf32>
    %cst_103 = arith.constant 1.000000e+00 : f32
    %91 = vector.broadcast %cst_103 : f32 to vector<1x19xf32>
    %92 = arith.addf %91, %90 : vector<1x19xf32>
    %cst_104 = arith.constant 1.000000e+00 : f32
    %93 = vector.broadcast %cst_104 : f32 to vector<1x19xf32>
    %94 = arith.divf %93, %92 : vector<1x19xf32>
    %c0_105 = arith.constant 0 : index
    %c0_106 = arith.constant 0 : index
    %c0_107 = arith.constant 0 : index
    %95 = vector.load %arg6[%c0_105, %c0_106, %c0_107] : memref<1x1x19xf32, #tpu.memory_space<vmem>>, vector<1x1x19xf32>
    %96 = vector.shape_cast %95 : vector<1x1x19xf32> to vector<1x19xf32>
    %97 = vector.shape_cast %94 : vector<1x19xf32> to vector<1x1x19xf32>
    tpu.vector_store %arg6[%c0_105, %c0_106, %c0_107], %97 {strides = array<i32>} : memref<1x1x19xf32, #tpu.memory_space<vmem>>, vector<1x1x19xf32>,
    return
  }
  func.func @transform_0(%arg0: i32) -> (i32, i32, i32, i32) {
    %c0_i32 = arith.constant 0 : i32
    %c0_i32_0 = arith.constant 0 : i32
    %c0_i32_1 = arith.constant 0 : i32
    %c0_i32_2 = arith.constant 0 : i32
    return %arg0, %c0_i32, %c0_i32_0, %c0_i32_1 : i32, i32, i32, i32
  }
  func.func @transform_1(%arg0: i32) -> (i32, i32) {
    %c0_i32 = arith.constant 0 : i32
    %c0_i32_0 = arith.constant 0 : i32
    %c0_i32_1 = arith.constant 0 : i32
    return %c0_i32, %c0_i32_0 : i32, i32
  }
  func.func @transform_2(%arg0: i32) -> (i32, i32) {
    %c0_i32 = arith.constant 0 : i32
    %c0_i32_0 = arith.constant 0 : i32
    %c0_i32_1 = arith.constant 0 : i32
    return %c0_i32, %c0_i32_0 : i32, i32
  }
  func.func @transform_3(%arg0: i32) -> (i32, i32) {
    %c0_i32 = arith.constant 0 : i32
    %c0_i32_0 = arith.constant 0 : i32
    %c0_i32_1 = arith.constant 0 : i32
    return %c0_i32, %c0_i32_0 : i32, i32
  }
  func.func @transform_4(%arg0: i32) -> (i32, i32) {
    %c0_i32 = arith.constant 0 : i32
    %c0_i32_0 = arith.constant 0 : i32
    %c0_i32_1 = arith.constant 0 : i32
    return %c0_i32, %c0_i32_0 : i32, i32
  }
  func.func @transform_5(%arg0: i32) -> (i32, i32, i32) {
    %c0_i32 = arith.constant 0 : i32
    %c0_i32_0 = arith.constant 0 : i32
    %c0_i32_1 = arith.constant 0 : i32
    return %arg0, %c0_i32, %c0_i32_0 : i32, i32, i32
  }
}

</mosaic_0001>

<llo_original>
// kernel: aera_head_forward.1
$region0: #{aera_head_forward.1}
  #allocation0 [shape = 'u32[]', space=smem, size = 0x4, offset = 0x4, fixed_abs, tag = 'smem constant byte address 0x4 - core index']
  #allocation1 [shape = 'u32[144,128]{1,0:T(1,128)}', space=vmem, size = 0x12000, scoped, tag = 'internal scratch']
  #allocation2 [shape = 'f32[256,128]{1,0:T(8,128)}', space=vmem, size = 0x20000, scoped, tag = 'scratch operand']
  %s0 = inlined_call_operand.vmem [shape: f32[2,18,18,128], index: 0, kind: input, shape index: {}]
  %s1 = inlined_call_operand.vmem [shape: f32[1152,128], index: 1, kind: input, shape index: {}]
  %s2 = inlined_call_operand.vmem [shape: f32[1,128], index: 2, kind: input, shape index: {}]
  %s3 = inlined_call_operand.vmem [shape: f32[128,19], index: 3, kind: input, shape index: {}]
  %s4 = inlined_call_operand.vmem [shape: f32[1,19], index: 4, kind: input, shape index: {}]
  %s5 = inlined_call_operand.hbm [shape: f32[2,1,19], index: 5, kind: output, shape index: {}]
  %s6 = sld [smem:[#allocation0]]
  $region53: #{aera_head_forward.1} parent=0
    _
  %s8 = ssub.s32 1, %s6
  %s9 = scalar_select 0, %s8, %s6
  $region1: #{aera_head_forward.1} parent=0
    #allocation3 [shape = 'u8[1024]{0}', space=vmem, size = 0x400, scoped, tag = 'output window, operand 0']
    #allocation4 [shape = 's32[2]{0}', space=sflag, size = 0x8, scoped, tag = 'scoped memory for aera_head_forward.1']
    %10 = vsyncpa [#allocation4], 0
    %s11 = scalar_lea.sflag [#allocation4], 1
    %12 = vsyncpa %s11, 0
    loop: start=0, step=1, limit=4
    $region2: #{aera_head_forward.1} parent=1 // loop_pre_header
      _
    $region3: #{aera_head_forward.1} parent=1 // loop_header
      %s14 = sphi 0, %s18
      %p15 = scmp.ge.s32.totalorder %s14, 4
      %s24 = sphi 0, %s26
      %s27 = sphi 0, %s24
      %s28 = sphi 0, %s27
      %s44 = sphi 0, %s28
      %s48 = sphi 0, %s48
      %s50 = sphi 0, %s48
      %s51 = sphi 0, %s50
      %s65 = sphi 0, %s51
      %s69 = sphi 0, %s69
      %s71 = sphi 0, %s69
      %s72 = sphi 0, %s71
      %s86 = sphi 0, %s72
      %s90 = sphi 0, %s90
      %s92 = sphi 0, %s90
      %s93 = sphi 0, %s92
      %s107 = sphi 0, %s93
      %s111 = sphi 0, %s111
      %s113 = sphi 0, %s111
      %s114 = sphi 0, %s113
      %s128 = sphi 0, %s114
      %s134 = sphi 0, %s136
      %s137 = sphi 0, %s134
      %s138 = sphi 0, %s137
      %s154 = sphi 0, %s138
    $region4: #{aera_head_forward.1} parent=1 // loop_header_branch
      %17 = sbr.rel (%p15) target = $region8
    $region5: #{aera_head_forward.1} parent=1 // loop_body
      %s19 = ssub.s32 %s14, 1
      %s20 = ssub.s32 %s14, 2
      %s21 = sadd.s32 %s14, 1
      %s22 = ssub.s32 %s14, %s21
      %p23 = scmp.eq.s32.totalorder %s22, 0
      %s25 = sadd.s32 %s24, 1
      %s26 = scalar_select %p23, %s24, %s25
      %p29 = pneg %p23
      %p30 = scmp.eq.s32.totalorder %s14, 1
      %p31 = por %p29, %p30
      %p32 = scmp.ne.s32.totalorder %s24, %s27
      %p33 = scmp.eq.s32.totalorder %s14, 0
      %p34 = por %p32, %p33
      %p35 = scmp.ne.s32.totalorder %s24, %s27
      %p36 = scmp.eq.s32.totalorder %s19, 1
      %p37 = por %p35, %p36
      %p38 = scmp.ne.s32.totalorder %s27, %s28
      %p39 = scmp.eq.s32.totalorder %s19, 0
      %p40 = por %p38, %p39
      %p41 = scmp.ne.s32.totalorder %s27, %s28
      %p42 = scmp.eq.s32.totalorder %s20, 1
      %p43 = por %p41, %p42
      %p45 = scmp.ne.s32.totalorder %s28, %s44
      %p46 = scmp.eq.s32.totalorder %s20, 0
      %p47 = por %p45, %p46
      %s49 = sadd.s32 %s48, 1
      %p52 = scmp.eq.s32.totalorder %s14, 1
      %p53 = scmp.ne.s32.totalorder %s48, %s50
      %p54 = scmp.eq.s32.totalorder %s14, 0
      %p55 = por %p53, %p54
      %p56 = scmp.ne.s32.totalorder %s48, %s50
      %p57 = scmp.eq.s32.totalorder %s19, 1
      %p58 = por %p56, %p57
      %p59 = scmp.ne.s32.totalorder %s50, %s51
      %p60 = scmp.eq.s32.totalorder %s19, 0
      %p61 = por %p59, %p60
      %p62 = scmp.ne.s32.totalorder %s50, %s51
      %p63 = scmp.eq.s32.totalorder %s20, 1
      %p64 = por %p62, %p63
      %p66 = scmp.ne.s32.totalorder %s51, %s65
      %p67 = scmp.eq.s32.totalorder %s20, 0
      %p68 = por %p66, %p67
      %s70 = sadd.s32 %s69, 1
      %p73 = scmp.eq.s32.totalorder %s14, 1
      %p74 = scmp.ne.s32.totalorder %s69, %s71
      %p75 = scmp.eq.s32.totalorder %s14, 0
      %p76 = por %p74, %p75
      %p77 = scmp.ne.s32.totalorder %s69, %s71
      %p78 = scmp.eq.s32.totalorder %s19, 1
      %p79 = por %p77, %p78
      %p80 = scmp.ne.s32.totalorder %s71, %s72
      %p81 = scmp.eq.s32.totalorder %s19, 0
      %p82 = por %p80, %p81
      %p83 = scmp.ne.s32.totalorder %s71, %s72
      %p84 = scmp.eq.s32.totalorder %s20, 1
      %p85 = por %p83, %p84
      %p87 = scmp.ne.s32.totalorder %s72, %s86
      %p88 = scmp.eq.s32.totalorder %s20, 0
      %p89 = por %p87, %p88
      %s91 = sadd.s32 %s90, 1
      %p94 = scmp.eq.s32.totalorder %s14, 1
      %p95 = scmp.ne.s32.totalorder %s90, %s92
      %p96 = scmp.eq.s32.totalorder %s14, 0
      %p97 = por %p95, %p96
      %p98 = scmp.ne.s32.totalorder %s90, %s92
      %p99 = scmp.eq.s32.totalorder %s19, 1
      %p100 = por %p98, %p99
      %p101 = scmp.ne.s32.totalorder %s92, %s93
      %p102 = scmp.eq.s32.totalorder %s19, 0
      %p103 = por %p101, %p102
      %p104 = scmp.ne.s32.totalorder %s92, %s93
      %p105 = scmp.eq.s32.totalorder %s20, 1
      %p106 = por %p104, %p105
      %p108 = scmp.ne.s32.totalorder %s93, %s107
      %p109 = scmp.eq.s32.totalorder %s20, 0
      %p110 = por %p108, %p109
      %s112 = sadd.s32 %s111, 1
      %p115 = scmp.eq.s32.totalorder %s14, 1
      %p116 = scmp.ne.s32.totalorder %s111, %s113
      %p117 = scmp.eq.s32.totalorder %s14, 0
      %p118 = por %p116, %p117
      %p119 = scmp.ne.s32.totalorder %s111, %s113
      %p120 = scmp.eq.s32.totalorder %s19, 1
      %p121 = por %p119, %p120
      %p122 = scmp.ne.s32.totalorder %s113, %s114
      %p123 = scmp.eq.s32.totalorder %s19, 0
      %p124 = por %p122, %p123
      %p125 = scmp.ne.s32.totalorder %s113, %s114
      %p126 = scmp.eq.s32.totalorder %s20, 1
      %p127 = por %p125, %p126
      %p129 = scmp.ne.s32.totalorder %s114, %s128
      %p130 = scmp.eq.s32.totalorder %s20, 0
      %p131 = por %p129, %p130
      %s132 = ssub.s32 %s14, %s21
      %p133 = scmp.eq.s32.totalorder %s132, 0
      %s135 = sadd.s32 %s134, 1
      %s136 = scalar_select %p133, %s134, %s135
      %p139 = pneg %p133
      %p140 = scmp.eq.s32.totalorder %s14, 1
      %p141 = por %p139, %p140
      %p142 = scmp.ne.s32.totalorder %s134, %s137
      %p143 = scmp.eq.s32.totalorder %s14, 0
      %p144 = por %p142, %p143
      %p145 = scmp.ne.s32.totalorder %s134, %s137
      %p146 = scmp.eq.s32.totalorder %s19, 1
      %p147 = por %p145, %p146
      %p148 = scmp.ne.s32.totalorder %s137, %s138
      %p149 = scmp.eq.s32.totalorder %s19, 0
      %p150 = por %p148, %p149
      %p151 = scmp.ne.s32.totalorder %s137, %s138
      %p152 = scmp.eq.s32.totalorder %s20, 1
      %p153 = por %p151, %p152
      %p155 = scmp.ne.s32.totalorder %s138, %s154
      %p156 = scmp.eq.s32.totalorder %s20, 0
      %p157 = por %p155, %p156
      %p158 = scmp.le.s32.totalorder 1, %s14
      %p159 = scmp.lt.s32.totalorder %s14, 3
      %p160 = pnand %p158, %p159
      %p161 = pneg %p160
      // Predicated region
      $region9: #{aera_head_forward.1} parent=5 // pred_check
        _
      $region10: #{aera_head_forward.1} parent=5 // pred_check_branch
        %163 = sbr.rel (%p160) target = $region12
      $region11: #{aera_head_forward.1} parent=5 // pred_region
        %s164 = ssub.s32 %s14, 1
        // Predicated region
        $region13: #{aera_head_forward.1} parent=11 // pred_check
          %p165 = pneg %p61
        $region14: #{aera_head_forward.1} parent=11 // pred_check_branch
          %167 = sbr.rel (%p165) target = $region16
        $region15: #{aera_head_forward.1} parent=11 // pred_region
          _
        $region16: #{aera_head_forward.1} parent=11 // pred_fallthru
          _
        // Predicated region
        $region17: #{aera_head_forward.1} parent=11 // pred_check
          %p168 = pneg %p82
        $region18: #{aera_head_forward.1} parent=11 // pred_check_branch
          %170 = sbr.rel (%p168) target = $region20
        $region19: #{aera_head_forward.1} parent=11 // pred_region
          _
        $region20: #{aera_head_forward.1} parent=11 // pred_fallthru
          _
        // Predicated region
        $region21: #{aera_head_forward.1} parent=11 // pred_check
          %p171 = pneg %p103
        $region22: #{aera_head_forward.1} parent=11 // pred_check_branch
          %173 = sbr.rel (%p171) target = $region24
        $region23: #{aera_head_forward.1} parent=11 // pred_region
          _
        $region24: #{aera_head_forward.1} parent=11 // pred_fallthru
          _
        // Predicated region
        $region25: #{aera_head_forward.1} parent=11 // pred_check
          %p174 = pneg %p124
        $region26: #{aera_head_forward.1} parent=11 // pred_check_branch
          %176 = sbr.rel (%p174) target = $region28
        $region27: #{aera_head_forward.1} parent=11 // pred_region
          _
        $region28: #{aera_head_forward.1} parent=11 // pred_fallthru
          _
      $region12: #{aera_head_forward.1} parent=5 // pred_fallthru
        _
      %p177 = scmp.lt.s32.totalorder %s14, 2
      // Predicated region
      $region29: #{aera_head_forward.1} parent=5 // pred_check
        %p178 = pneg %p177
      $region30: #{aera_head_forward.1} parent=5 // pred_check_branch
        %180 = sbr.rel (%p178) target = $region32
      $region31: #{aera_head_forward.1} parent=5 // pred_region
        // Predicated region
        $region33: #{aera_head_forward.1} parent=31 // pred_check
          %p181 = pneg %p34
        $region34: #{aera_head_forward.1} parent=31 // pred_check_branch
          %183 = sbr.rel (%p181) target = $region36
        $region35: #{aera_head_forward.1} parent=31 // pred_region
          %p184 = scmp.lt.s32.totalorder %s14, 1
          %s185 = scalar_select %p184, %s14, 1
          %s186 = smul.addr %s185, 54
          %s187 = smul.addr %s186, 8
          %s188 = scalar_lea.vmem %s0, %s187
        $region36: #{aera_head_forward.1} parent=31 // pred_fallthru
          _
      $region32: #{aera_head_forward.1} parent=5 // pred_fallthru
        _
      %p189 = scmp.le.s32.totalorder 1, %s14
      %p190 = scmp.lt.s32.totalorder %s14, 3
      %p191 = pnand %p189, %p190
      %p192 = pneg %p191
      // Predicated region
      $region37: #{aera_head_forward.1} parent=5 // pred_check
        _
      $region38: #{aera_head_forward.1} parent=5 // pred_check_branch
        %194 = sbr.rel (%p191) target = $region40
      $region39: #{aera_head_forward.1} parent=5 // pred_region
        %s195 = ssub.s32 %s14, 1
        %p196 = scmp.lt.s32.totalorder %s19, 1
        %s197 = scalar_select %p196, %s19, 1
        %s198 = smul.addr %s197, 54
        %s199 = smul.addr %s198, 8
        %s200 = scalar_lea.vmem %s0, %s199
        %p201 = pneg %p40
        %p202 = pneg %p37
        %p203 = pneg %p61
        %p204 = pneg %p58
        %p205 = pneg %p82
        %p206 = pneg %p79
        %p207 = pneg %p103
        %p208 = pneg %p100
        %p209 = pneg %p124
        %p210 = pneg %p121
        %p211 = pneg %p150
        %p212 = pneg %p147
        %s213 = sand.u32 %s137, 1
        %s214 = scalar_lea.sflag [#allocation4], %s213
        %s215 = sand.u32 %s137, 1
        %s216 = scalar_lea.vmem [#allocation3], %s215
        %p217 = scmp.lt.s32.totalorder %s19, 1
        %s218 = scalar_select %p217, %s19, 1
        %s219 = smul.addr %s218, 54
        %s220 = smul.addr %s219, 8
        %s221 = scalar_lea.vmem %s0, %s220
        %222 = vst [vmem:[#allocation2] sm:$0xff] 0.0
        %223 = vst [vmem:[#allocation2 + $0x8] sm:$0xff] 0.0
        %224 = vst [vmem:[#allocation2 + $0x10] sm:$0xff] 0.0
        %225 = vst [vmem:[#allocation2 + $0x18] sm:$0xff] 0.0
        %226 = vst [vmem:[#allocation2 + $0x20] sm:$0xff] 0.0
        %227 = vst [vmem:[#allocation2 + $0x28] sm:$0xff] 0.0
        %228 = vst [vmem:[#allocation2 + $0x30] sm:$0xff] 0.0
        %229 = vst [vmem:[#allocation2 + $0x38] sm:$0xff] 0.0
        %230 = vst [vmem:[#allocation2 + $0x40] sm:$0xff] 0.0
        %231 = vst [vmem:[#allocation2 + $0x48] sm:$0xff] 0.0
        %232 = vst [vmem:[#allocation2 + $0x50] sm:$0xff] 0.0
        %233 = vst [vmem:[#allocation2 + $0x58] sm:$0xff] 0.0
        %234 = vst [vmem:[#allocation2 + $0x60] sm:$0xff] 0.0
        %235 = vst [vmem:[#allocation2 + $0x68] sm:$0xff] 0.0
        %236 = vst [vmem:[#allocation2 + $0x70] sm:$0xff] 0.0
        %237 = vst [vmem:[#allocation2 + $0x78] sm:$0xff] 0.0
        %238 = vst [vmem:[#allocation2 + $0x80] sm:$0xff] 0.0
        %239 = vst [vmem:[#allocation2 + $0x88] sm:$0xff] 0.0
        %240 = vst [vmem:[#allocation2 + $0x90] sm:$0xff] 0.0
        %241 = vst [vmem:[#allocation2 + $0x98] sm:$0xff] 0.0
        %242 = vst [vmem:[#allocation2 + $0xa0] sm:$0xff] 0.0
        %243 = vst [vmem:[#allocation2 + $0xa8] sm:$0xff] 0.0
        %244 = vst [vmem:[#allocation2 + $0xb0] sm:$0xff] 0.0
        %245 = vst [vmem:[#allocation2 + $0xb8] sm:$0xff] 0.0
        %246 = vst [vmem:[#allocation2 + $0xc0] sm:$0xff] 0.0
        %247 = vst [vmem:[#allocation2 + $0xc8] sm:$0xff] 0.0
        %248 = vst [vmem:[#allocation2 + $0xd0] sm:$0xff] 0.0
        %249 = vst [vmem:[#allocation2 + $0xd8] sm:$0xff] 0.0
        %250 = vst [vmem:[#allocation2 + $0xe0] sm:$0xff] 0.0
        %251 = vst [vmem:[#allocation2 + $0xe8] sm:$0xff] 0.0
        %252 = vst [vmem:[#allocation2 + $0xf0] sm:$0xff] 0.0
        %253 = vst [vmem:[#allocation2 + $0xf8] sm:$0xff] 0.0
        %v254 = vld [vmem:[%s221] sm:$0xff]
        %v255 = vld [vmem:[%s221 + $0x8] sm:$0xff]
        %v256 = vld [vmem:[%s221 + $0x18] sm:$0xff]
        %v257 = vld [vmem:[%s221 + $0x20] sm:$0xff]
        %v258 = vld [vmem:[%s221 + $0x30] sm:$0xff]
        %v259 = vld [vmem:[%s221 + $0x38] sm:$0xff]
        %v260 = vld [vmem:[%s221 + $0x48] sm:$0xff]
        %v261 = vld [vmem:[%s221 + $0x50] sm:$0xff]
        %v262 = vld [vmem:[%s221 + $0x60] sm:$0xff]
        %v263 = vld [vmem:[%s221 + $0x68] sm:$0xff]
        %v264 = vld [vmem:[%s221 + $0x78] sm:$0xff]
        %v265 = vld [vmem:[%s221 + $0x80] sm:$0xff]
        %v266 = vld [vmem:[%s221 + $0x90] sm:$0xff]
        %v267 = vld [vmem:[%s221 + $0x98] sm:$0xff]
        %v268 = vld [vmem:[%s221 + $0xa8] sm:$0xff]
        %v269 = vld [vmem:[%s221 + $0xb0] sm:$0xff]
        %v270 = vld [vmem:[%s221 + $0xc0] sm:$0xff]
        %v271 = vld [vmem:[%s221 + $0xc8] sm:$0xff]
        %v272 = vld [vmem:[%s221 + $0xd8] sm:$0xff]
        %v273 = vld [vmem:[%s221 + $0xe0] sm:$0xff]
        %v274 = vld [vmem:[%s221 + $0xf0] sm:$0xff]
        %v275 = vld [vmem:[%s221 + $0xf8] sm:$0xff]
        %v276 = vld [vmem:[%s221 + $0x108] sm:$0xff]
        %v277 = vld [vmem:[%s221 + $0x110] sm:$0xff]
        %v278 = vld [vmem:[%s221 + $0x120] sm:$0xff]
        %v279 = vld [vmem:[%s221 + $0x128] sm:$0xff]
        %v280 = vld [vmem:[%s221 + $0x138] sm:$0xff]
        %v281 = vld [vmem:[%s221 + $0x140] sm:$0xff]
        %v282 = vld [vmem:[%s221 + $0x150] sm:$0xff]
        %v283 = vld [vmem:[%s221 + $0x158] sm:$0xff]
        %v284 = vld [vmem:[%s221 + $0x168] sm:$0xff]
        %v285 = vld [vmem:[%s221 + $0x170] sm:$0xff]
        %v286 = vld [vmem:[%s1] sm:$0xff]
        %v287 = vld [vmem:[%s1 + $0x8] sm:$0xff]
        %v288 = vld [vmem:[%s1 + $0x10] sm:$0xff]
        %v289 = vld [vmem:[%s1 + $0x18] sm:$0xff]
        %v290 = vld [vmem:[%s1 + $0x20] sm:$0xff]
        %v291 = vld [vmem:[%s1 + $0x28] sm:$0xff]
        %v292 = vld [vmem:[%s1 + $0x30] sm:$0xff]
        %v293 = vld [vmem:[%s1 + $0x38] sm:$0xff]
        %v294 = vld [vmem:[%s1 + $0x40] sm:$0xff]
        %v295 = vld [vmem:[%s1 + $0x48] sm:$0xff]
        %v296 = vld [vmem:[%s1 + $0x50] sm:$0xff]
        %v297 = vld [vmem:[%s1 + $0x58] sm:$0xff]
        %v298 = vld [vmem:[%s1 + $0x60] sm:$0xff]
        %v299 = vld [vmem:[%s1 + $0x68] sm:$0xff]
        %v300 = vld [vmem:[%s1 + $0x70] sm:$0xff]
        %v301 = vld [vmem:[%s1 + $0x78] sm:$0xff]
        %v302 = vld [vmem:[#allocation2] sm:$0xff]
        %v303 = vld [vmem:[#allocation2 + $0x8] sm:$0xff]
        %v304 = vld [vmem:[#allocation2 + $0x10] sm:$0xff]
        %v305 = vld [vmem:[#allocation2 + $0x18] sm:$0xff]
        %v306 = vld [vmem:[#allocation2 + $0x20] sm:$0xff]
        %v307 = vld [vmem:[#allocation2 + $0x28] sm:$0xff]
        %v308 = vld [vmem:[#allocation2 + $0x30] sm:$0xff]
        %v309 = vld [vmem:[#allocation2 + $0x38] sm:$0xff]
        %v310 = vld [vmem:[#allocation2 + $0x40] sm:$0xff]
        %v311 = vld [vmem:[#allocation2 + $0x48] sm:$0xff]
        %v312 = vld [vmem:[#allocation2 + $0x50] sm:$0xff]
        %v313 = vld [vmem:[#allocation2 + $0x58] sm:$0xff]
        %v314 = vld [vmem:[#allocation2 + $0x60] sm:$0xff]
        %v315 = vld [vmem:[#allocation2 + $0x68] sm:$0xff]
        %v316 = vld [vmem:[#allocation2 + $0x70] sm:$0xff]
        %v317 = vld [vmem:[#allocation2 + $0x78] sm:$0xff]
        %v318 = vld [vmem:[#allocation2 + $0x80] sm:$0xff]
        %v319 = vld [vmem:[#allocation2 + $0x88] sm:$0xff]
        %v320 = vld [vmem:[#allocation2 + $0x90] sm:$0xff]
        %v321 = vld [vmem:[#allocation2 + $0x98] sm:$0xff]
        %v322 = vld [vmem:[#allocation2 + $0xa0] sm:$0xff]
        %v323 = vld [vmem:[#allocation2 + $0xa8] sm:$0xff]
        %v324 = vld [vmem:[#allocation2 + $0xb0] sm:$0xff]
        %v325 = vld [vmem:[#allocation2 + $0xb8] sm:$0xff]
        %v326 = vld [vmem:[#allocation2 + $0xc0] sm:$0xff]
        %v327 = vld [vmem:[#allocation2 + $0xc8] sm:$0xff]
        %v328 = vld [vmem:[#allocation2 + $0xd0] sm:$0xff]
        %v329 = vld [vmem:[#allocation2 + $0xd8] sm:$0xff]
        %v330 = vld [vmem:[#allocation2 + $0xe0] sm:$0xff]
        %v331 = vld [vmem:[#allocation2 + $0xe8] sm:$0xff]
        %v332 = vld [vmem:[#allocation2 + $0xf0] sm:$0xff]
        %v333 = vld [vmem:[#allocation2 + $0xf8] sm:$0xff]
        %334 = vmatprep.subr.mxu0 0.0
        %335 = vmatpush1.msra.mxu0 %v301
        %336 = vmatprep.subr.mxu0 0.0
        %337 = vmatpush1.msra.mxu0 %v300
        %338 = vmatprep.subr.mxu0 0.0
        %339 = vmatpush1.msra.mxu0 %v299
        %340 = vmatprep.subr.mxu0 0.0
        %341 = vmatpush1.msra.mxu0 %v298
        %342 = vmatprep.subr.mxu0 0.0
        %343 = vmatpush1.msra.mxu0 %v297
        %344 = vmatprep.subr.mxu0 0.0
        %345 = vmatpush1.msra.mxu0 %v296
        %346 = vmatprep.subr.mxu0 0.0
        %347 = vmatpush1.msra.mxu0 %v295
        %348 = vmatprep.subr.mxu0 0.0
        %349 = vmatpush1.msra.mxu0 %v294
        %350 = vmatprep.subr.mxu0 0.0
        %351 = vmatpush1.msra.mxu0 %v293
        %352 = vmatprep.subr.mxu0 0.0
        %353 = vmatpush1.msra.mxu0 %v292
        %354 = vmatprep.subr.mxu0 0.0
        %355 = vmatpush1.msra.mxu0 %v291
        %356 = vmatprep.subr.mxu0 0.0
        %357 = vmatpush1.msra.mxu0 %v290
        %358 = vmatprep.subr.mxu0 0.0
        %359 = vmatpush1.msra.mxu0 %v289
        %360 = vmatprep.subr.mxu0 0.0
        %361 = vmatpush1.msra.mxu0 %v288
        %362 = vmatprep.subr.mxu0 0.0
        %363 = vmatpush1.msra.mxu0 %v287
        %364 = vmatprep.subr.mxu0 0.0
        %365 = vmatpush1.msra.mxu0 %v286
        %366 = vmatprep.subr.mxu0 0.0
        %367 = vmatpush2.msra.mxu0 0.0
        %368 = vmatprep.subr.mxu0 0.0
        %369 = vmatpush2.msra.mxu0 0.0
        %370 = vmatprep.subr.mxu0 0.0
        %371 = vmatpush2.msra.mxu0 0.0
        %372 = vmatprep.subr.mxu0 0.0
        %373 = vmatpush2.msra.mxu0 0.0
        %374 = vmatprep.subr.mxu0 0.0
        %375 = vmatpush2.msra.mxu0 0.0
        %376 = vmatprep.subr.mxu0 0.0
        %377 = vmatpush2.msra.mxu0 0.0
        %378 = vmatprep.subr.mxu0 0.0
        %379 = vmatpush2.msra.mxu0 0.0
        %380 = vmatprep.subr.mxu0 0.0
        %381 = vmatpush2.msra.mxu0 0.0
        %382 = vmatprep.subr.mxu0 0.0
        %383 = vmatpush2.msra.mxu0 0.0
        %384 = vmatprep.subr.mxu0 0.0
        %385 = vmatpush2.msra.mxu0 0.0
        %386 = vmatprep.subr.mxu0 0.0
        %387 = vmatpush2.msra.mxu0 0.0
        %388 = vmatprep.subr.mxu0 0.0
        %389 = vmatpush2.msra.mxu0 0.0
        %390 = vmatprep.subr.mxu0 0.0
        %391 = vmatpush2.msra.mxu0 0.0
        %392 = vmatprep.subr.mxu0 0.0
        %393 = vmatpush2.msra.mxu0 0.0
        %394 = vmatprep.subr.mxu0 0.0
        %395 = vmatpush2.msra.mxu0 0.0
        %396 = vmatprep.subr.mxu0 0.0
        %397 = vmatpush2.msra.mxu0 0.0
        %398 = vmatprep.mubr.f32.mxu0 0.0
        %399 = vmatmul.mubr.f32.gmra.mxu0 %v254
        %v400 = vpop.f32.mrf.mxu0
        %v401 = vadd.f32 0.0, %v400
        %v402 = vpop.f32.mrf.mxu0
        %403 = vmatprep.mubr.f32.mxu0 0.0
        %404 = vmatmul.mubr.f32.gmra.mxu0 %v255
        %v405 = vpop.f32.mrf.mxu0
        %v406 = vadd.f32 0.0, %v405
        %v407 = vpop.f32.mrf.mxu0
        %408 = vmatprep.mubr.f32.mxu0 0.0
        %409 = vmatmul.mubr.f32.gmra.mxu0 %v256
        %v410 = vpop.f32.mrf.mxu0
        %v411 = vadd.f32 0.0, %v410
        %v412 = vpop.f32.mrf.mxu0
        %413 = vmatprep.mubr.f32.mxu0 0.0
        %414 = vmatmul.mubr.f32.gmra.mxu0 %v257
        %v415 = vpop.f32.mrf.mxu0
        %v416 = vadd.f32 0.0, %v415
        %v417 = vpop.f32.mrf.mxu0
        %418 = vmatprep.mubr.f32.mxu0 0.0
        %419 = vmatmul.mubr.f32.gmra.mxu0 %v258
        %v420 = vpop.f32.mrf.mxu0
        %v421 = vadd.f32 0.0, %v420
        %v422 = vpop.f32.mrf.mxu0
        %423 = vmatprep.mubr.f32.mxu0 0.0
        %424 = vmatmul.mubr.f32.gmra.mxu0 %v259
        %v425 = vpop.f32.mrf.mxu0
        %v426 = vadd.f32 0.0, %v425
        %v427 = vpop.f32.mrf.mxu0
        %428 = vmatprep.mubr.f32.mxu0 0.0
        %429 = vmatmul.mubr.f32.gmra.mxu0 %v260
        %v430 = vpop.f32.mrf.mxu0
        %v431 = vadd.f32 0.0, %v430
        %v432 = vpop.f32.mrf.mxu0
        %433 = vmatprep.mubr.f32.mxu0 0.0
        %434 = vmatmul.mubr.f32.gmra.mxu0 %v261
        %v435 = vpop.f32.mrf.mxu0
        %v436 = vadd.f32 0.0, %v435
        %v437 = vpop.f32.mrf.mxu0
        %438 = vmatprep.mubr.f32.mxu0 0.0
        %439 = vmatmul.mubr.f32.gmra.mxu0 %v262
        %v440 = vpop.f32.mrf.mxu0
        %v441 = vadd.f32 0.0, %v440
        %v442 = vpop.f32.mrf.mxu0
        %443 = vmatprep.mubr.f32.mxu0 0.0
        %444 = vmatmul.mubr.f32.gmra.mxu0 %v263
        %v445 = vpop.f32.mrf.mxu0
        %v446 = vadd.f32 0.0, %v445
        %v447 = vpop.f32.mrf.mxu0
        %448 = vmatprep.mubr.f32.mxu0 0.0
        %449 = vmatmul.mubr.f32.gmra.mxu0 %v264
        %v450 = vpop.f32.mrf.mxu0
        %v451 = vadd.f32 0.0, %v450
        %v452 = vpop.f32.mrf.mxu0
        %453 = vmatprep.mubr.f32.mxu0 0.0
        %454 = vmatmul.mubr.f32.gmra.mxu0 %v265
        %v455 = vpop.f32.mrf.mxu0
        %v456 = vadd.f32 0.0, %v455
        %v457 = vpop.f32.mrf.mxu0
        %458 = vmatprep.mubr.f32.mxu0 0.0
        %459 = vmatmul.mubr.f32.gmra.mxu0 %v266
        %v460 = vpop.f32.mrf.mxu0
        %v461 = vadd.f32 0.0, %v460
        %v462 = vpop.f32.mrf.mxu0
        %463 = vmatprep.mubr.f32.mxu0 0.0
        %464 = vmatmul.mubr.f32.gmra.mxu0 %v267
        %v465 = vpop.f32.mrf.mxu0
        %v466 = vadd.f32 0.0, %v465
        %v467 = vpop.f32.mrf.mxu0
        %468 = vmatprep.mubr.f32.mxu0 0.0
        %469 = vmatmul.mubr.f32.gmra.mxu0 %v268
        %v470 = vpop.f32.mrf.mxu0
        %v471 = vadd.f32 0.0, %v470
        %v472 = vpop.f32.mrf.mxu0
        %473 = vmatprep.mubr.f32.mxu0 0.0
        %474 = vmatmul.mubr.f32.gmra.mxu0 %v269
        %v475 = vpop.f32.mrf.mxu0
        %v476 = vadd.f32 0.0, %v475
        %v477 = vpop.f32.mrf.mxu0
        %478 = vmatprep.mubr.f32.mxu0 0.0
        %479 = vmatmul.mubr.f32.gmra.mxu0 %v270
        %v480 = vpop.f32.mrf.mxu0
        %v481 = vadd.f32 0.0, %v480
        %v482 = vpop.f32.mrf.mxu0
        %483 = vmatprep.mubr.f32.mxu0 0.0
        %484 = vmatmul.mubr.f32.gmra.mxu0 %v271
        %v485 = vpop.f32.mrf.mxu0
        %v486 = vadd.f32 0.0, %v485
        %v487 = vpop.f32.mrf.mxu0
        %488 = vmatprep.mubr.f32.mxu0 0.0
        %489 = vmatmul.mubr.f32.gmra.mxu0 %v272
        %v490 = vpop.f32.mrf.mxu0
        %v491 = vadd.f32 0.0, %v490
        %v492 = vpop.f32.mrf.mxu0
        %493 = vmatprep.mubr.f32.mxu0 0.0
        %494 = vmatmul.mubr.f32.gmra.mxu0 %v273
        %v495 = vpop.f32.mrf.mxu0
        %v496 = vadd.f32 0.0, %v495
        %v497 = vpop.f32.mrf.mxu0
        %498 = vmatprep.mubr.f32.mxu0 0.0
        %499 = vmatmul.mubr.f32.gmra.mxu0 %v274
        %v500 = vpop.f32.mrf.mxu0
        %v501 = vadd.f32 0.0, %v500
        %v502 = vpop.f32.mrf.mxu0
        %503 = vmatprep.mubr.f32.mxu0 0.0
        %504 = vmatmul.mubr.f32.gmra.mxu0 %v275
        %v505 = vpop.f32.mrf.mxu0
        %v506 = vadd.f32 0.0, %v505
        %v507 = vpop.f32.mrf.mxu0
        %508 = vmatprep.mubr.f32.mxu0 0.0
        %509 = vmatmul.mubr.f32.gmra.mxu0 %v276
        %v510 = vpop.f32.mrf.mxu0
        %v511 = vadd.f32 0.0, %v510
        %v512 = vpop.f32.mrf.mxu0
        %513 = vmatprep.mubr.f32.mxu0 0.0
        %514 = vmatmul.mubr.f32.gmra.mxu0 %v277
        %v515 = vpop.f32.mrf.mxu0
        %v516 = vadd.f32 0.0, %v515
        %v517 = vpop.f32.mrf.mxu0
        %518 = vmatprep.mubr.f32.mxu0 0.0
        %519 = vmatmul.mubr.f32.gmra.mxu0 %v278
        %v520 = vpop.f32.mrf.mxu0
        %v521 = vadd.f32 0.0, %v520
        %v522 = vpop.f32.mrf.mxu0
        %523 = vmatprep.mubr.f32.mxu0 0.0
        %524 = vmatmul.mubr.f32.gmra.mxu0 %v279
        %v525 = vpop.f32.mrf.mxu0
        %v526 = vadd.f32 0.0, %v525
        %v527 = vpop.f32.mrf.mxu0
        %528 = vmatprep.mubr.f32.mxu0 0.0
        %529 = vmatmul.mubr.f32.gmra.mxu0 %v280
        %v530 = vpop.f32.mrf.mxu0
        %v531 = vadd.f32 0.0, %v530
        %v532 = vpop.f32.mrf.mxu0
        %533 = vmatprep.mubr.f32.mxu0 0.0
        %534 = vmatmul.mubr.f32.gmra.mxu0 %v281
        %v535 = vpop.f32.mrf.mxu0
        %v536 = vadd.f32 0.0, %v535
        %v537 = vpop.f32.mrf.mxu0
        %538 = vmatprep.mubr.f32.mxu0 0.0
        %539 = vmatmul.mubr.f32.gmra.mxu0 %v282
        %v540 = vpop.f32.mrf.mxu0
        %v541 = vadd.f32 0.0, %v540
        %v542 = vpop.f32.mrf.mxu0
        %543 = vmatprep.mubr.f32.mxu0 0.0
        %544 = vmatmul.mubr.f32.gmra.mxu0 %v283
        %v545 = vpop.f32.mrf.mxu0
        %v546 = vadd.f32 0.0, %v545
        %v547 = vpop.f32.mrf.mxu0
        %548 = vmatprep.mubr.f32.mxu0 0.0
        %549 = vmatmul.mubr.f32.gmra.mxu0 %v284
        %v550 = vpop.f32.mrf.mxu0
        %v551 = vadd.f32 0.0, %v550
        %v552 = vpop.f32.mrf.mxu0
        %553 = vmatprep.mubr.f32.mxu0 0.0
        %554 = vmatmul.mubr.f32.gmra.mxu0 %v285
        %v555 = vpop.f32.mrf.mxu0
        %v556 = vadd.f32 0.0, %v555
        %v557 = vpop.f32.mrf.mxu0
        %558 = vdwg.mxu0
        %v559 = vadd.f32 %v302, %v401
        %v560 = vadd.f32 %v303, %v406
        %v561 = vadd.f32 %v304, %v411
        %v562 = vadd.f32 %v305, %v416
        %v563 = vadd.f32 %v306, %v421
        %v564 = vadd.f32 %v307, %v426
        %v565 = vadd.f32 %v308, %v431
        %v566 = vadd.f32 %v309, %v436
        %v567 = vadd.f32 %v310, %v441
        %v568 = vadd.f32 %v311, %v446
        %v569 = vadd.f32 %v312, %v451
        %v570 = vadd.f32 %v313, %v456
        %v571 = vadd.f32 %v314, %v461
        %v572 = vadd.f32 %v315, %v466
        %v573 = vadd.f32 %v316, %v471
        %v574 = vadd.f32 %v317, %v476
        %v575 = vadd.f32 %v318, %v481
        %v576 = vadd.f32 %v319, %v486
        %v577 = vadd.f32 %v320, %v491
        %v578 = vadd.f32 %v321, %v496
        %v579 = vadd.f32 %v322, %v501
        %v580 = vadd.f32 %v323, %v506
        %v581 = vadd.f32 %v324, %v511
        %v582 = vadd.f32 %v325, %v516
        %v583 = vadd.f32 %v326, %v521
        %v584 = vadd.f32 %v327, %v526
        %v585 = vadd.f32 %v328, %v531
        %v586 = vadd.f32 %v329, %v536
        %v587 = vadd.f32 %v330, %v541
        %v588 = vadd.f32 %v331, %v546
        %v589 = vadd.f32 %v332, %v551
        %v590 = vadd.f32 %v333, %v556
        %591 = vst [vmem:[#allocation2] sm:$0xff] %v559
        %592 = vst [vmem:[#allocation2 + $0x8] sm:$0xff] %v560
        %593 = vst [vmem:[#allocation2 + $0x10] sm:$0xff] %v561
        %594 = vst [vmem:[#allocation2 + $0x18] sm:$0xff] %v562
        %595 = vst [vmem:[#allocation2 + $0x20] sm:$0xff] %v563
        %596 = vst [vmem:[#allocation2 + $0x28] sm:$0xff] %v564
        %597 = vst [vmem:[#allocation2 + $0x30] sm:$0xff] %v565
        %598 = vst [vmem:[#allocation2 + $0x38] sm:$0xff] %v566
        %599 = vst [vmem:[#allocation2 + $0x40] sm:$0xff] %v567
        %600 = vst [vmem:[#allocation2 + $0x48] sm:$0xff] %v568
        %601 = vst [vmem:[#allocation2 + $0x50] sm:$0xff] %v569
        %602 = vst [vmem:[#allocation2 + $0x58] sm:$0xff] %v570
        %603 = vst [vmem:[#allocation2 + $0x60] sm:$0xff] %v571
        %604 = vst [vmem:[#allocation2 + $0x68] sm:$0xff] %v572
        %605 = vst [vmem:[#allocation2 + $0x70] sm:$0xff] %v573
        %606 = vst [vmem:[#allocation2 + $0x78] sm:$0xff] %v574
        %607 = vst [vmem:[#allocation2 + $0x80] sm:$0xff] %v575
        %608 = vst [vmem:[#allocation2 + $0x88] sm:$0xff] %v576
        %609 = vst [vmem:[#allocation2 + $0x90] sm:$0xff] %v577
        %610 = vst [vmem:[#allocation2 + $0x98] sm:$0xff] %v578
        %611 = vst [vmem:[#allocation2 + $0xa0] sm:$0xff] %v579
        %612 = vst [vmem:[#allocation2 + $0xa8] sm:$0xff] %v580
        %613 = vst [vmem:[#allocation2 + $0xb0] sm:$0xff] %v581
        %614 = vst [vmem:[#allocation2 + $0xb8] sm:$0xff] %v582
        %615 = vst [vmem:[#allocation2 + $0xc0] sm:$0xff] %v583
        %616 = vst [vmem:[#allocation2 + $0xc8] sm:$0xff] %v584
        %617 = vst [vmem:[#allocation2 + $0xd0] sm:$0xff] %v585
        %618 = vst [vmem:[#allocation2 + $0xd8] sm:$0xff] %v586
        %619 = vst [vmem:[#allocation2 + $0xe0] sm:$0xff] %v587
        %620 = vst [vmem:[#allocation2 + $0xe8] sm:$0xff] %v588
        %621 = vst [vmem:[#allocation2 + $0xf0] sm:$0xff] %v589
        %622 = vst [vmem:[#allocation2 + $0xf8] sm:$0xff] %v590
        %v623 = vld [vmem:[%s221 + $0x1] sm:$0xff]
        %v624 = vld [vmem:[%s221 + $0x9] sm:$0xff]
        %v625 = vld [vmem:[%s221 + $0x19] sm:$0xff]
        %v626 = vld [vmem:[%s221 + $0x21] sm:$0xff]
        %v627 = vld [vmem:[%s221 + $0x31] sm:$0xff]
        %v628 = vld [vmem:[%s221 + $0x39] sm:$0xff]
        %v629 = vld [vmem:[%s221 + $0x49] sm:$0xff]
        %v630 = vld [vmem:[%s221 + $0x51] sm:$0xff]
        %v631 = vld [vmem:[%s221 + $0x61] sm:$0xff]
        %v632 = vld [vmem:[%s221 + $0x69] sm:$0xff]
        %v633 = vld [vmem:[%s221 + $0x79] sm:$0xff]
        %v634 = vld [vmem:[%s221 + $0x81] sm:$0xff]
        %v635 = vld [vmem:[%s221 + $0x91] sm:$0xff]
        %v636 = vld [vmem:[%s221 + $0x99] sm:$0xff]
        %v637 = vld [vmem:[%s221 + $0xa9] sm:$0xff]
        %v638 = vld [vmem:[%s221 + $0xb1] sm:$0xff]
        %v639 = vld [vmem:[%s221 + $0xc1] sm:$0xff]
        %v640 = vld [vmem:[%s221 + $0xc9] sm:$0xff]
        %v641 = vld [vmem:[%s221 + $0xd9] sm:$0xff]
        %v642 = vld [vmem:[%s221 + $0xe1] sm:$0xff]
        %v643 = vld [vmem:[%s221 + $0xf1] sm:$0xff]
        %v644 = vld [vmem:[%s221 + $0xf9] sm:$0xff]
        %v645 = vld [vmem:[%s221 + $0x109] sm:$0xff]
        %v646 = vld [vmem:[%s221 + $0x111] sm:$0xff]
        %v647 = vld [vmem:[%s221 + $0x121] sm:$0xff]
        %v648 = vld [vmem:[%s221 + $0x129] sm:$0xff]
        %v649 = vld [vmem:[%s221 + $0x139] sm:$0xff]
        %v650 = vld [vmem:[%s221 + $0x141] sm:$0xff]
        %v651 = vld [vmem:[%s221 + $0x151] sm:$0xff]
        %v652 = vld [vmem:[%s221 + $0x159] sm:$0xff]
        %v653 = vld [vmem:[%s221 + $0x169] sm:$0xff]
        %v654 = vld [vmem:[%s221 + $0x171] sm:$0xff]
        %v655 = vld [vmem:[%s1 + $0x80] sm:$0xff]
        %v656 = vld [vmem:[%s1 + $0x88] sm:$0xff]
        %v657 = vld [vmem:[%s1 + $0x90] sm:$0xff]
        %v658 = vld [vmem:[%s1 + $0x98] sm:$0xff]
        %v659 = vld [vmem:[%s1 + $0xa0] sm:$0xff]
        %v660 = vld [vmem:[%s1 + $0xa8] sm:$0xff]
        %v661 = vld [vmem:[%s1 + $0xb0] sm:$0xff]
        %v662 = vld [vmem:[%s1 + $0xb8] sm:$0xff]
        %v663 = vld [vmem:[%s1 + $0xc0] sm:$0xff]
        %v664 = vld [vmem:[%s1 + $0xc8] sm:$0xff]
        %v665 = vld [vmem:[%s1 + $0xd0] sm:$0xff]
        %v666 = vld [vmem:[%s1 + $0xd8] sm:$0xff]
        %v667 = vld [vmem:[%s1 + $0xe0] sm:$0xff]
        %v668 = vld [vmem:[%s1 + $0xe8] sm:$0xff]
        %v669 = vld [vmem:[%s1 + $0xf0] sm:$0xff]
        %v670 = vld [vmem:[%s1 + $0xf8] sm:$0xff]
        %v671 = vld [vmem:[#allocation2] sm:$0xff]
        %v672 = vld [vmem:[#allocation2 + $0x8] sm:$0xff]
        %v673 = vld [vmem:[#allocation2 + $0x10] sm:$0xff]
        %v674 = vld [vmem:[#allocation2 + $0x18] sm:$0xff]
        %v675 = vld [vmem:[#allocation2 + $0x20] sm:$0xff]
        %v676 = vld [vmem:[#allocation2 + $0x28] sm:$0xff]
        %v677 = vld [vmem:[#allocation2 + $0x30] sm:$0xff]
        %v678 = vld [vmem:[#allocation2 + $0x38] sm:$0xff]
        %v679 = vld [vmem:[#allocation2 + $0x40] sm:$0xff]
        %v680 = vld [vmem:[#allocation2 + $0x48] sm:$0xff]
        %v681 = vld [vmem:[#allocation2 + $0x50] sm:$0xff]
        %v682 = vld [vmem:[#allocation2 + $0x58] sm:$0xff]
        %v683 = vld [vmem:[#allocation2 + $0x60] sm:$0xff]
        %v684 = vld [vmem:[#allocation2 + $0x68] sm:$0xff]
        %v685 = vld [vmem:[#allocation2 + $0x70] sm:$0xff]
        %v686 = vld [vmem:[#allocation2 + $0x78] sm:$0xff]
        %v687 = vld [vmem:[#allocation2 + $0x80] sm:$0xff]
        %v688 = vld [vmem:[#allocation2 + $0x88] sm:$0xff]
        %v689 = vld [vmem:[#allocation2 + $0x90] sm:$0xff]
        %v690 = vld [vmem:[#allocation2 + $0x98] sm:$0xff]
        %v691 = vld [vmem:[#allocation2 + $0xa0] sm:$0xff]
        %v692 = vld [vmem:[#allocation2 + $0xa8] sm:$0xff]
        %v693 = vld [vmem:[#allocation2 + $0xb0] sm:$0xff]
        %v694 = vld [vmem:[#allocation2 + $0xb8] sm:$0xff]
        %v695 = vld [vmem:[#allocation2 + $0xc0] sm:$0xff]
        %v696 = vld [vmem:[#allocation2 + $0xc8] sm:$0xff]
        %v697 = vld [vmem:[#allocation2 + $0xd0] sm:$0xff]
        %v698 = vld [vmem:[#allocation2 + $0xd8] sm:$0xff]
        %v699 = vld [vmem:[#allocation2 + $0xe0] sm:$0xff]
        %v700 = vld [vmem:[#allocation2 + $0xe8] sm:$0xff]
        %v701 = vld [vmem:[#allocation2 + $0xf0] sm:$0xff]
        %v702 = vld [vmem:[#allocation2 + $0xf8] sm:$0xff]
        %703 = vmatprep.subr.mxu0 0.0
        %704 = vmatpush1.msra.mxu0 %v670
        %705 = vmatprep.subr.mxu0 0.0
        %706 = vmatpush1.msra.mxu0 %v669
        %707 = vmatprep.subr.mxu0 0.0
        %708 = vmatpush1.msra.mxu0 %v668
        %709 = vmatprep.subr.mxu0 0.0
        %710 = vmatpush1.msra.mxu0 %v667
        %711 = vmatprep.subr.mxu0 0.0
        %712 = vmatpush1.msra.mxu0 %v666
        %713 = vmatprep.subr.mxu0 0.0
        %714 = vmatpush1.msra.mxu0 %v665
        %715 = vmatprep.subr.mxu0 0.0
        %716 = vmatpush1.msra.mxu0 %v664
        %717 = vmatprep.subr.mxu0 0.0
        %718 = vmatpush1.msra.mxu0 %v663
        %719 = vmatprep.subr.mxu0 0.0
        %720 = vmatpush1.msra.mxu0 %v662
        %721 = vmatprep.subr.mxu0 0.0
        %722 = vmatpush1.msra.mxu0 %v661
        %723 = vmatprep.subr.mxu0 0.0
        %724 = vmatpush1.msra.mxu0 %v660
        %725 = vmatprep.subr.mxu0 0.0
        %726 = vmatpush1.msra.mxu0 %v659
        %727 = vmatprep.subr.mxu0 0.0
        %728 = vmatpush1.msra.mxu0 %v658
        %729 = vmatprep.subr.mxu0 0.0
        %730 = vmatpush1.msra.mxu0 %v657
        %731 = vmatprep.subr.mxu0 0.0
        %732 = vmatpush1.msra.mxu0 %v656
        %733 = vmatprep.subr.mxu0 0.0
        %734 = vmatpush1.msra.mxu0 %v655
        %735 = vmatprep.subr.mxu0 0.0
        %736 = vmatpush2.msra.mxu0 0.0
        %737 = vmatprep.subr.mxu0 0.0
        %738 = vmatpush2.msra.mxu0 0.0
        %739 = vmatprep.subr.mxu0 0.0
        %740 = vmatpush2.msra.mxu0 0.0
        %741 = vmatprep.subr.mxu0 0.0
        %742 = vmatpush2.msra.mxu0 0.0
        %743 = vmatprep.subr.mxu0 0.0
        %744 = vmatpush2.msra.mxu0 0.0
        %745 = vmatprep.subr.mxu0 0.0
        %746 = vmatpush2.msra.mxu0 0.0
        %747 = vmatprep.subr.mxu0 0.0
        %748 = vmatpush2.msra.mxu0 0.0
        %749 = vmatprep.subr.mxu0 0.0
        %750 = vmatpush2.msra.mxu0 0.0
        %751 = vmatprep.subr.mxu0 0.0
        %752 = vmatpush2.msra.mxu0 0.0
        %753 = vmatprep.subr.mxu0 0.0
        %754 = vmatpush2.msra.mxu0 0.0
        %755 = vmatprep.subr.mxu0 0.0
        %756 = vmatpush2.msra.mxu0 0.0
        %757 = vmatprep.subr.mxu0 0.0
        %758 = vmatpush2.msra.mxu0 0.0
        %759 = vmatprep.subr.mxu0 0.0
        %760 = vmatpush2.msra.mxu0 0.0
        %761 = vmatprep.subr.mxu0 0.0
        %762 = vmatpush2.msra.mxu0 0.0
        %763 = vmatprep.subr.mxu0 0.0
        %764 = vmatpush2.msra.mxu0 0.0
        %765 = vmatprep.subr.mxu0 0.0
        %766 = vmatpush2.msra.mxu0 0.0
        %767 = vmatprep.mubr.f32.mxu0 0.0
        %768 = vmatmul.mubr.f32.gmra.mxu0 %v623
        %v769 = vpop.f32.mrf.mxu0
        %v770 = vadd.f32 0.0, %v769
        %v771 = vpop.f32.mrf.mxu0
        %772 = vmatprep.mubr.f32.mxu0 0.0
        %773 = vmatmul.mubr.f32.gmra.mxu0 %v624
        %v774 = vpop.f32.mrf.mxu0
        %v775 = vadd.f32 0.0, %v774
        %v776 = vpop.f32.mrf.mxu0
        %777 = vmatprep.mubr.f32.mxu0 0.0
        %778 = vmatmul.mubr.f32.gmra.mxu0 %v625
        %v779 = vpop.f32.mrf.mxu0
        %v780 = vadd.f32 0.0, %v779
        %v781 = vpop.f32.mrf.mxu0
        %782 = vmatprep.mubr.f32.mxu0 0.0
        %783 = vmatmul.mubr.f32.gmra.mxu0 %v626
        %v784 = vpop.f32.mrf.mxu0
        %v785 = vadd.f32 0.0, %v784
        %v786 = vpop.f32.mrf.mxu0
        %787 = vmatprep.mubr.f32.mxu0 0.0
        %788 = vmatmul.mubr.f32.gmra.mxu0 %v627
        %v789 = vpop.f32.mrf.mxu0
        %v790 = vadd.f32 0.0, %v789
        %v791 = vpop.f32.mrf.mxu0
        %792 = vmatprep.mubr.f32.mxu0 0.0
        %793 = vmatmul.mubr.f32.gmra.mxu0 %v628
        %v794 = vpop.f32.mrf.mxu0
        %v795 = vadd.f32 0.0, %v794
        %v796 = vpop.f32.mrf.mxu0
        %797 = vmatprep.mubr.f32.mxu0 0.0
        %798 = vmatmul.mubr.f32.gmra.mxu0 %v629
        %v799 = vpop.f32.mrf.mxu0
        %v800 = vadd.f32 0.0, %v799
        %v801 = vpop.f32.mrf.mxu0
        %802 = vmatprep.mubr.f32.mxu0 0.0
        %803 = vmatmul.mubr.f32.gmra.mxu0 %v630
        %v804 = vpop.f32.mrf.mxu0
        %v805 = vadd.f32 0.0, %v804
        %v806 = vpop.f32.mrf.mxu0
        %807 = vmatprep.mubr.f32.mxu0 0.0
        %808 = vmatmul.mubr.f32.gmra.mxu0 %v631
        %v809 = vpop.f32.mrf.mxu0
        %v810 = vadd.f32 0.0, %v809
        %v811 = vpop.f32.mrf.mxu0
        %812 = vmatprep.mubr.f32.mxu0 0.0
        %813 = vmatmul.mubr.f32.gmra.mxu0 %v632
        %v814 = vpop.f32.mrf.mxu0
        %v815 = vadd.f32 0.0, %v814
        %v816 = vpop.f32.mrf.mxu0
        %817 = vmatprep.mubr.f32.mxu0 0.0
        %818 = vmatmul.mubr.f32.gmra.mxu0 %v633
        %v819 = vpop.f32.mrf.mxu0
        %v820 = vadd.f32 0.0, %v819
        %v821 = vpop.f32.mrf.mxu0
        %822 = vmatprep.mubr.f32.mxu0 0.0
        %823 = vmatmul.mubr.f32.gmra.mxu0 %v634
        %v824 = vpop.f32.mrf.mxu0
        %v825 = vadd.f32 0.0, %v824
        %v826 = vpop.f32.mrf.mxu0
        %827 = vmatprep.mubr.f32.mxu0 0.0
        %828 = vmatmul.mubr.f32.gmra.mxu0 %v635
        %v829 = vpop.f32.mrf.mxu0
        %v830 = vadd.f32 0.0, %v829
        %v831 = vpop.f32.mrf.mxu0
        %832 = vmatprep.mubr.f32.mxu0 0.0
        %833 = vmatmul.mubr.f32.gmra.mxu0 %v636
        %v834 = vpop.f32.mrf.mxu0
        %v835 = vadd.f32 0.0, %v834
        %v836 = vpop.f32.mrf.mxu0
        %837 = vmatprep.mubr.f32.mxu0 0.0
        %838 = vmatmul.mubr.f32.gmra.mxu0 %v637
        %v839 = vpop.f32.mrf.mxu0
        %v840 = vadd.f32 0.0, %v839
        %v841 = vpop.f32.mrf.mxu0
        %842 = vmatprep.mubr.f32.mxu0 0.0
        %843 = vmatmul.mubr.f32.gmra.mxu0 %v638
        %v844 = vpop.f32.mrf.mxu0
        %v845 = vadd.f32 0.0, %v844
        %v846 = vpop.f32.mrf.mxu0
        %847 = vmatprep.mubr.f32.mxu0 0.0
        %848 = vmatmul.mubr.f32.gmra.mxu0 %v639
        %v849 = vpop.f32.mrf.mxu0
        %v850 = vadd.f32 0.0, %v849
        %v851 = vpop.f32.mrf.mxu0
        %852 = vmatprep.mubr.f32.mxu0 0.0
        %853 = vmatmul.mubr.f32.gmra.mxu0 %v640
        %v854 = vpop.f32.mrf.mxu0
        %v855 = vadd.f32 0.0, %v854
        %v856 = vpop.f32.mrf.mxu0
        %857 = vmatprep.mubr.f32.mxu0 0.0
        %858 = vmatmul.mubr.f32.gmra.mxu0 %v641
        %v859 = vpop.f32.mrf.mxu0
        %v860 = vadd.f32 0.0, %v859
        %v861 = vpop.f32.mrf.mxu0
        %862 = vmatprep.mubr.f32.mxu0 0.0
        %863 = vmatmul.mubr.f32.gmra.mxu0 %v642
        %v864 = vpop.f32.mrf.mxu0
        %v865 = vadd.f32 0.0, %v864
        %v866 = vpop.f32.mrf.mxu0
        %867 = vmatprep.mubr.f32.mxu0 0.0
        %868 = vmatmul.mubr.f32.gmra.mxu0 %v643
        %v869 = vpop.f32.mrf.mxu0
        %v870 = vadd.f32 0.0, %v869
        %v871 = vpop.f32.mrf.mxu0
        %872 = vmatprep.mubr.f32.mxu0 0.0
        %873 = vmatmul.mubr.f32.gmra.mxu0 %v644
        %v874 = vpop.f32.mrf.mxu0
        %v875 = vadd.f32 0.0, %v874
        %v876 = vpop.f32.mrf.mxu0
        %877 = vmatprep.mubr.f32.mxu0 0.0
        %878 = vmatmul.mubr.f32.gmra.mxu0 %v645
        %v879 = vpop.f32.mrf.mxu0
        %v880 = vadd.f32 0.0, %v879
        %v881 = vpop.f32.mrf.mxu0
        %882 = vmatprep.mubr.f32.mxu0 0.0
        %883 = vmatmul.mubr.f32.gmra.mxu0 %v646
        %v884 = vpop.f32.mrf.mxu0
        %v885 = vadd.f32 0.0, %v884
        %v886 = vpop.f32.mrf.mxu0
        %887 = vmatprep.mubr.f32.mxu0 0.0
        %888 = vmatmul.mubr.f32.gmra.mxu0 %v647
        %v889 = vpop.f32.mrf.mxu0
        %v890 = vadd.f32 0.0, %v889
        %v891 = vpop.f32.mrf.mxu0
        %892 = vmatprep.mubr.f32.mxu0 0.0
        %893 = vmatmul.mubr.f32.gmra.mxu0 %v648
        %v894 = vpop.f32.mrf.mxu0
        %v895 = vadd.f32 0.0, %v894
        %v896 = vpop.f32.mrf.mxu0
        %897 = vmatprep.mubr.f32.mxu0 0.0
        %898 = vmatmul.mubr.f32.gmra.mxu0 %v649
        %v899 = vpop.f32.mrf.mxu0
        %v900 = vadd.f32 0.0, %v899
        %v901 = vpop.f32.mrf.mxu0
        %902 = vmatprep.mubr.f32.mxu0 0.0
        %903 = vmatmul.mubr.f32.gmra.mxu0 %v650
        %v904 = vpop.f32.mrf.mxu0
        %v905 = vadd.f32 0.0, %v904
        %v906 = vpop.f32.mrf.mxu0
        %907 = vmatprep.mubr.f32.mxu0 0.0
        %908 = vmatmul.mubr.f32.gmra.mxu0 %v651
        %v909 = vpop.f32.mrf.mxu0
        %v910 = vadd.f32 0.0, %v909
        %v911 = vpop.f32.mrf.mxu0
        %912 = vmatprep.mubr.f32.mxu0 0.0
        %913 = vmatmul.mubr.f32.gmra.mxu0 %v652
        %v914 = vpop.f32.mrf.mxu0
        %v915 = vadd.f32 0.0, %v914
        %v916 = vpop.f32.mrf.mxu0
        %917 = vmatprep.mubr.f32.mxu0 0.0
        %918 = vmatmul.mubr.f32.gmra.mxu0 %v653
        %v919 = vpop.f32.mrf.mxu0
        %v920 = vadd.f32 0.0, %v919
        %v921 = vpop.f32.mrf.mxu0
        %922 = vmatprep.mubr.f32.mxu0 0.0
        %923 = vmatmul.mubr.f32.gmra.mxu0 %v654
        %v924 = vpop.f32.mrf.mxu0
        %v925 = vadd.f32 0.0, %v924
        %v926 = vpop.f32.mrf.mxu0
        %927 = vdwg.mxu0
        %v928 = vadd.f32 %v671, %v770
        %v929 = vadd.f32 %v672, %v775
        %v930 = vadd.f32 %v673, %v780
        %v931 = vadd.f32 %v674, %v785
        %v932 = vadd.f32 %v675, %v790
        %v933 = vadd.f32 %v676, %v795
        %v934 = vadd.f32 %v677, %v800
        %v935 = vadd.f32 %v678, %v805
        %v936 = vadd.f32 %v679, %v810
        %v937 = vadd.f32 %v680, %v815
        %v938 = vadd.f32 %v681, %v820
        %v939 = vadd.f32 %v682, %v825
        %v940 = vadd.f32 %v683, %v830
        %v941 = vadd.f32 %v684, %v835
        %v942 = vadd.f32 %v685, %v840
        %v943 = vadd.f32 %v686, %v845
        %v944 = vadd.f32 %v687, %v850
        %v945 = vadd.f32 %v688, %v855
        %v946 = vadd.f32 %v689, %v860
        %v947 = vadd.f32 %v690, %v865
        %v948 = vadd.f32 %v691, %v870
        %v949 = vadd.f32 %v692, %v875
        %v950 = vadd.f32 %v693, %v880
        %v951 = vadd.f32 %v694, %v885
        %v952 = vadd.f32 %v695, %v890
        %v953 = vadd.f32 %v696, %v895
        %v954 = vadd.f32 %v697, %v900
        %v955 = vadd.f32 %v698, %v905
        %v956 = vadd.f32 %v699, %v910
        %v957 = vadd.f32 %v700, %v915
        %v958 = vadd.f32 %v701, %v920
        %v959 = vadd.f32 %v702, %v925
        %960 = vst [vmem:[#allocation2] sm:$0xff] %v928
        %961 = vst [vmem:[#allocation2 + $0x8] sm:$0xff] %v929
        %962 = vst [vmem:[#allocation2 + $0x10] sm:$0xff] %v930
        %963 = vst [vmem:[#allocation2 + $0x18] sm:$0xff] %v931
        %964 = vst [vmem:[#allocation2 + $0x20] sm:$0xff] %v932
        %965 = vst [vmem:[#allocation2 + $0x28] sm:$0xff] %v933
        %966 = vst [vmem:[#allocation2 + $0x30] sm:$0xff] %v934
        %967 = vst [vmem:[#allocation2 + $0x38] sm:$0xff] %v935
        %968 = vst [vmem:[#allocation2 + $0x40] sm:$0xff] %v936
        %969 = vst [vmem:[#allocation2 + $0x48] sm:$0xff] %v937
        %970 = vst [vmem:[#allocation2 + $0x50] sm:$0xff] %v938
        %971 = vst [vmem:[#allocation2 + $0x58] sm:$0xff] %v939
        %972 = vst [vmem:[#allocation2 + $0x60] sm:$0xff] %v940
        %973 = vst [vmem:[#allocation2 + $0x68] sm:$0xff] %v941
        %974 = vst [vmem:[#allocation2 + $0x70] sm:$0xff] %v942
        %975 = vst [vmem:[#allocation2 + $0x78] sm:$0xff] %v943
        %976 = vst [vmem:[#allocation2 + $0x80] sm:$0xff] %v944
        %977 = vst [vmem:[#allocation2 + $0x88] sm:$0xff] %v945
        %978 = vst [vmem:[#allocation2 + $0x90] sm:$0xff] %v946
        %979 = vst [vmem:[#allocation2 + $0x98] sm:$0xff] %v947
        %980 = vst [vmem:[#allocation2 + $0xa0] sm:$0xff] %v948
        %981 = vst [vmem:[#allocation2 + $0xa8] sm:$0xff] %v949
        %982 = vst [vmem:[#allocation2 + $0xb0] sm:$0xff] %v950
        %983 = vst [vmem:[#allocation2 + $0xb8] sm:$0xff] %v951
        %984 = vst [vmem:[#allocation2 + $0xc0] sm:$0xff] %v952
        %985 = vst [vmem:[#allocation2 + $0xc8] sm:$0xff] %v953
        %986 = vst [vmem:[#allocation2 + $0xd0] sm:$0xff] %v954
        %987 = vst [vmem:[#allocation2 + $0xd8] sm:$0xff] %v955
        %988 = vst [vmem:[#allocation2 + $0xe0] sm:$0xff] %v956
        %989 = vst [vmem:[#allocation2 + $0xe8] sm:$0xff] %v957
        %990 = vst [vmem:[#allocation2 + $0xf0] sm:$0xff] %v958
        %991 = vst [vmem:[#allocation2 + $0xf8] sm:$0xff] %v959
        %v992 = vld [vmem:[%s221 + $0x2] sm:$0xff]
        %v993 = vld [vmem:[%s221 + $0xa] sm:$0xff]
        %v994 = vld [vmem:[%s221 + $0x1a] sm:$0xff]
        %v995 = vld [vmem:[%s221 + $0x22] sm:$0xff]
        %v996 = vld [vmem:[%s221 + $0x32] sm:$0xff]
        %v997 = vld [vmem:[%s221 + $0x3a] sm:$0xff]
        %v998 = vld [vmem:[%s221 + $0x4a] sm:$0xff]
        %v999 = vld [vmem:[%s221 + $0x52] sm:$0xff]
        %v1000 = vld [vmem:[%s221 + $0x62] sm:$0xff]
        %v1001 = vld [vmem:[%s221 + $0x6a] sm:$0xff]
        %v1002 = vld [vmem:[%s221 + $0x7a] sm:$0xff]
        %v1003 = vld [vmem:[%s221 + $0x82] sm:$0xff]
        %v1004 = vld [vmem:[%s221 + $0x92] sm:$0xff]
        %v1005 = vld [vmem:[%s221 + $0x9a] sm:$0xff]
        %v1006 = vld [vmem:[%s221 + $0xaa] sm:$0xff]
        %v1007 = vld [vmem:[%s221 + $0xb2] sm:$0xff]
        %v1008 = vld [vmem:[%s221 + $0xc2] sm:$0xff]
        %v1009 = vld [vmem:[%s221 + $0xca] sm:$0xff]
        %v1010 = vld [vmem:[%s221 + $0xda] sm:$0xff]
        %v1011 = vld [vmem:[%s221 + $0xe2] sm:$0xff]
        %v1012 = vld [vmem:[%s221 + $0xf2] sm:$0xff]
        %v1013 = vld [vmem:[%s221 + $0xfa] sm:$0xff]
        %v1014 = vld [vmem:[%s221 + $0x10a] sm:$0xff]
        %v1015 = vld [vmem:[%s221 + $0x112] sm:$0xff]
        %v1016 = vld [vmem:[%s221 + $0x122] sm:$0xff]
        %v1017 = vld [vmem:[%s221 + $0x12a] sm:$0xff]
        %v1018 = vld [vmem:[%s221 + $0x13a] sm:$0xff]
        %v1019 = vld [vmem:[%s221 + $0x142] sm:$0xff]
        %v1020 = vld [vmem:[%s221 + $0x152] sm:$0xff]
        %v1021 = vld [vmem:[%s221 + $0x15a] sm:$0xff]
        %v1022 = vld [vmem:[%s221 + $0x16a] sm:$0xff]
        %v1023 = vld [vmem:[%s221 + $0x172] sm:$0xff]
        %v1024 = vld [vmem:[%s1 + $0x100] sm:$0xff]
        %v1025 = vld [vmem:[%s1 + $0x108] sm:$0xff]
        %v1026 = vld [vmem:[%s1 + $0x110] sm:$0xff]
        %v1027 = vld [vmem:[%s1 + $0x118] sm:$0xff]
        %v1028 = vld [vmem:[%s1 + $0x120] sm:$0xff]
        %v1029 = vld [vmem:[%s1 + $0x128] sm:$0xff]
        %v1030 = vld [vmem:[%s1 + $0x130] sm:$0xff]
        %v1031 = vld [vmem:[%s1 + $0x138] sm:$0xff]
        %v1032 = vld [vmem:[%s1 + $0x140] sm:$0xff]
        %v1033 = vld [vmem:[%s1 + $0x148] sm:$0xff]
        %v1034 = vld [vmem:[%s1 + $0x150] sm:$0xff]
        %v1035 = vld [vmem:[%s1 + $0x158] sm:$0xff]
        %v1036 = vld [vmem:[%s1 + $0x160] sm:$0xff]
        %v1037 = vld [vmem:[%s1 + $0x168] sm:$0xff]
        %v1038 = vld [vmem:[%s1 + $0x170] sm:$0xff]
        %v1039 = vld [vmem:[%s1 + $0x178] sm:$0xff]
        %v1040 = vld [vmem:[#allocation2] sm:$0xff]
        %v1041 = vld [vmem:[#allocation2 + $0x8] sm:$0xff]
        %v1042 = vld [vmem:[#allocation2 + $0x10] sm:$0xff]
        %v1043 = vld [vmem:[#allocation2 + $0x18] sm:$0xff]
        %v1044 = vld [vmem:[#allocation2 + $0x20] sm:$0xff]
        %v1045 = vld [vmem:[#allocation2 + $0x28] sm:$0xff]
        %v1046 = vld [vmem:[#allocation2 + $0x30] sm:$0xff]
        %v1047 = vld [vmem:[#allocation2 + $0x38] sm:$0xff]
        %v1048 = vld [vmem:[#allocation2 + $0x40] sm:$0xff]
        %v1049 = vld [vmem:[#allocation2 + $0x48] sm:$0xff]
        %v1050 = vld [vmem:[#allocation2 + $0x50] sm:$0xff]
        %v1051 = vld [vmem:[#allocation2 + $0x58] sm:$0xff]
        %v1052 = vld [vmem:[#allocation2 + $0x60] sm:$0xff]
        %v1053 = vld [vmem:[#allocation2 + $0x68] sm:$0xff]
        %v1054 = vld [vmem:[#allocation2 + $0x70] sm:$0xff]
        %v1055 = vld [vmem:[#allocation2 + $0x78] sm:$0xff]
        %v1056 = vld [vmem:[#allocation2 + $0x80] sm:$0xff]
        %v1057 = vld [vmem:[#allocation2 + $0x88] sm:$0xff]
        %v1058 = vld [vmem:[#allocation2 + $0x90] sm:$0xff]
        %v1059 = vld [vmem:[#allocation2 + $0x98] sm:$0xff]
        %v1060 = vld [vmem:[#allocation2 + $0xa0] sm:$0xff]
        %v1061 = vld [vmem:[#allocation2 + $0xa8] sm:$0xff]
        %v1062 = vld [vmem:[#allocation2 + $0xb0] sm:$0xff]
        %v1063 = vld [vmem:[#allocation2 + $0xb8] sm:$0xff]
        %v1064 = vld [vmem:[#allocation2 + $0xc0] sm:$0xff]
        %v1065 = vld [vmem:[#allocation2 + $0xc8] sm:$0xff]
        %v1066 = vld [vmem:[#allocation2 + $0xd0] sm:$0xff]
        %v1067 = vld [vmem:[#allocation2 + $0xd8] sm:$0xff]
        %v1068 = vld [vmem:[#allocation2 + $0xe0] sm:$0xff]
        %v1069 = vld [vmem:[#allocation2 + $0xe8] sm:$0xff]
        %v1070 = vld [vmem:[#allocation2 + $0xf0] sm:$0xff]
        %v1071 = vld [vmem:[#allocation2 + $0xf8] sm:$0xff]
        %1072 = vmatprep.subr.mxu0 0.0
        %1073 = vmatpush1.msra.mxu0 %v1039
        %1074 = vmatprep.subr.mxu0 0.0
        %1075 = vmatpush1.msra.mxu0 %v1038
        %1076 = vmatprep.subr.mxu0 0.0
        %1077 = vmatpush1.msra.mxu0 %v1037
        %1078 = vmatprep.subr.mxu0 0.0
        %1079 = vmatpush1.msra.mxu0 %v1036
        %1080 = vmatprep.subr.mxu0 0.0
        %1081 = vmatpush1.msra.mxu0 %v1035
        %1082 = vmatprep.subr.mxu0 0.0
        %1083 = vmatpush1.msra.mxu0 %v1034
        %1084 = vmatprep.subr.mxu0 0.0
        %1085 = vmatpush1.msra.mxu0 %v1033
        %1086 = vmatprep.subr.mxu0 0.0
        %1087 = vmatpush1.msra.mxu0 %v1032
        %1088 = vmatprep.subr.mxu0 0.0
        %1089 = vmatpush1.msra.mxu0 %v1031
        %1090 = vmatprep.subr.mxu0 0.0
        %1091 = vmatpush1.msra.mxu0 %v1030
        %1092 = vmatprep.subr.mxu0 0.0
        %1093 = vmatpush1.msra.mxu0 %v1029
        %1094 = vmatprep.subr.mxu0 0.0
        %1095 = vmatpush1.msra.mxu0 %v1028
        %1096 = vmatprep.subr.mxu0 0.0
        %1097 = vmatpush1.msra.mxu0 %v1027
        %1098 = vmatprep.subr.mxu0 0.0
        %1099 = vmatpush1.msra.mxu0 %v1026
        %1100 = vmatprep.subr.mxu0 0.0
        %1101 = vmatpush1.msra.mxu0 %v1025
        %1102 = vmatprep.subr.mxu0 0.0
        %1103 = vmatpush1.msra.mxu0 %v1024
        %1104 = vmatprep.subr.mxu0 0.0
        %1105 = vmatpush2.msra.mxu0 0.0
        %1106 = vmatprep.subr.mxu0 0.0
        %1107 = vmatpush2.msra.mxu0 0.0
        %1108 = vmatprep.subr.mxu0 0.0
        %1109 = vmatpush2.msra.mxu0 0.0
        %1110 = vmatprep.subr.mxu0 0.0
        %1111 = vmatpush2.msra.mxu0 0.0
        %1112 = vmatprep.subr.mxu0 0.0
        %1113 = vmatpush2.msra.mxu0 0.0
        %1114 = vmatprep.subr.mxu0 0.0
        %1115 = vmatpush2.msra.mxu0 0.0
        %1116 = vmatprep.subr.mxu0 0.0
        %1117 = vmatpush2.msra.mxu0 0.0
        %1118 = vmatprep.subr.mxu0 0.0
        %1119 = vmatpush2.msra.mxu0 0.0
        %1120 = vmatprep.subr.mxu0 0.0
        %1121 = vmatpush2.msra.mxu0 0.0
        %1122 = vmatprep.subr.mxu0 0.0
        %1123 = vmatpush2.msra.mxu0 0.0
        %1124 = vmatprep.subr.mxu0 0.0
        %1125 = vmatpush2.msra.mxu0 0.0
        %1126 = vmatprep.subr.mxu0 0.0
        %1127 = vmatpush2.msra.mxu0 0.0
        %1128 = vmatprep.subr.mxu0 0.0
        %1129 = vmatpush2.msra.mxu0 0.0
        %1130 = vmatprep.subr.mxu0 0.0
        %1131 = vmatpush2.msra.mxu0 0.0
        %1132 = vmatprep.subr.mxu0 0.0
        %1133 = vmatpush2.msra.mxu0 0.0
        %1134 = vmatprep.subr.mxu0 0.0
        %1135 = vmatpush2.msra.mxu0 0.0
        %1136 = vmatprep.mubr.f32.mxu0 0.0
        %1137 = vmatmul.mubr.f32.gmra.mxu0 %v992
        %v1138 = vpop.f32.mrf.mxu0
        %v1139 = vadd.f32 0.0, %v1138
        %v1140 = vpop.f32.mrf.mxu0
        %1141 = vmatprep.mubr.f32.mxu0 0.0
        %1142 = vmatmul.mubr.f32.gmra.mxu0 %v993
        %v1143 = vpop.f32.mrf.mxu0
        %v1144 = vadd.f32 0.0, %v1143
        %v1145 = vpop.f32.mrf.mxu0
        %1146 = vmatprep.mubr.f32.mxu0 0.0
        %1147 = vmatmul.mubr.f32.gmra.mxu0 %v994
        %v1148 = vpop.f32.mrf.mxu0
        %v1149 = vadd.f32 0.0, %v1148
        %v1150 = vpop.f32.mrf.mxu0
        %1151 = vmatprep.mubr.f32.mxu0 0.0
        %1152 = vmatmul.mubr.f32.gmra.mxu0 %v995
        %v1153 = vpop.f32.mrf.mxu0
        %v1154 = vadd.f32 0.0, %v1153
        %v1155 = vpop.f32.mrf.mxu0
        %1156 = vmatprep.mubr.f32.mxu0 0.0
        %1157 = vmatmul.mubr.f32.gmra.mxu0 %v996
        %v1158 = vpop.f32.mrf.mxu0
        %v1159 = vadd.f32 0.0, %v1158
        %v1160 = vpop.f32.mrf.mxu0
        %1161 = vmatprep.mubr.f32.mxu0 0.0
        %1162 = vmatmul.mubr.f32.gmra.mxu0 %v997
        %v1163 = vpop.f32.mrf.mxu0
        %v1164 = vadd.f32 0.0, %v1163
        %v1165 = vpop.f32.mrf.mxu0
        %1166 = vmatprep.mubr.f32.mxu0 0.0
        %1167 = vmatmul.mubr.f32.gmra.mxu0 %v998
        %v1168 = vpop.f32.mrf.mxu0
        %v1169 = vadd.f32 0.0, %v1168
        %v1170 = vpop.f32.mrf.mxu0
        %1171 = vmatprep.mubr.f32.mxu0 0.0
        %1172 = vmatmul.mubr.f32.gmra.mxu0 %v999
        %v1173 = vpop.f32.mrf.mxu0
        %v1174 = vadd.f32 0.0, %v1173
        %v1175 = vpop.f32.mrf.mxu0
        %1176 = vmatprep.mubr.f32.mxu0 0.0
        %1177 = vmatmul.mubr.f32.gmra.mxu0 %v1000
        %v1178 = vpop.f32.mrf.mxu0
        %v1179 = vadd.f32 0.0, %v1178
        %v1180 = vpop.f32.mrf.mxu0
        %1181 = vmatprep.mubr.f32.mxu0 0.0
        %1182 = vmatmul.mubr.f32.gmra.mxu0 %v1001
        %v1183 = vpop.f32.mrf.mxu0
        %v1184 = vadd.f32 0.0, %v1183
        %v1185 = vpop.f32.mrf.mxu0
        %1186 = vmatprep.mubr.f32.mxu0 0.0
        %1187 = vmatmul.mubr.f32.gmra.mxu0 %v1002
        %v1188 = vpop.f32.mrf.mxu0
        %v1189 = vadd.f32 0.0, %v1188
        %v1190 = vpop.f32.mrf.mxu0
        %1191 = vmatprep.mubr.f32.mxu0 0.0
        %1192 = vmatmul.mubr.f32.gmra.mxu0 %v1003
        %v1193 = vpop.f32.mrf.mxu0
        %v1194 = vadd.f32 0.0, %v1193
        %v1195 = vpop.f32.mrf.mxu0
        %1196 = vmatprep.mubr.f32.mxu0 0.0
        %1197 = vmatmul.mubr.f32.gmra.mxu0 %v1004
        %v1198 = vpop.f32.mrf.mxu0
        %v1199 = vadd.f32 0.0, %v1198
        %v1200 = vpop.f32.mrf.mxu0
        %1201 = vmatprep.mubr.f32.mxu0 0.0
        %1202 = vmatmul.mubr.f32.gmra.mxu0 %v1005
        %v1203 = vpop.f32.mrf.mxu0
        %v1204 = vadd.f32 0.0, %v1203
        %v1205 = vpop.f32.mrf.mxu0
        %1206 = vmatprep.mubr.f32.mxu0 0.0
        %1207 = vmatmul.mubr.f32.gmra.mxu0 %v1006
        %v1208 = vpop.f32.mrf.mxu0
        %v1209 = vadd.f32 0.0, %v1208
        %v1210 = vpop.f32.mrf.mxu0
        %1211 = vmatprep.mubr.f32.mxu0 0.0
        %1212 = vmatmul.mubr.f32.gmra.mxu0 %v1007
        %v1213 = vpop.f32.mrf.mxu0
        %v1214 = vadd.f32 0.0, %v1213
        %v1215 = vpop.f32.mrf.mxu0
        %1216 = vmatprep.mubr.f32.mxu0 0.0
        %1217 = vmatmul.mubr.f32.gmra.mxu0 %v1008
        %v1218 = vpop.f32.mrf.mxu0
        %v1219 = vadd.f32 0.0, %v1218
        %v1220 = vpop.f32.mrf.mxu0
        %1221 = vmatprep.mubr.f32.mxu0 0.0
        %1222 = vmatmul.mubr.f32.gmra.mxu0 %v1009
        %v1223 = vpop.f32.mrf.mxu0
        %v1224 = vadd.f32 0.0, %v1223
        %v1225 = vpop.f32.mrf.mxu0
        %1226 = vmatprep.mubr.f32.mxu0 0.0
        %1227 = vmatmul.mubr.f32.gmra.mxu0 %v1010
        %v1228 = vpop.f32.mrf.mxu0
        %v1229 = vadd.f32 0.0, %v1228
        %v1230 = vpop.f32.mrf.mxu0
        %1231 = vmatprep.mubr.f32.mxu0 0.0
        %1232 = vmatmul.mubr.f32.gmra.mxu0 %v1011
        %v1233 = vpop.f32.mrf.mxu0
        %v1234 = vadd.f32 0.0, %v1233
        %v1235 = vpop.f32.mrf.mxu0
        %1236 = vmatprep.mubr.f32.mxu0 0.0
        %1237 = vmatmul.mubr.f32.gmra.mxu0 %v1012
        %v1238 = vpop.f32.mrf.mxu0
        %v1239 = vadd.f32 0.0, %v1238
        %v1240 = vpop.f32.mrf.mxu0
        %1241 = vmatprep.mubr.f32.mxu0 0.0
        %1242 = vmatmul.mubr.f32.gmra.mxu0 %v1013
        %v1243 = vpop.f32.mrf.mxu0
        %v1244 = vadd.f32 0.0, %v1243
        %v1245 = vpop.f32.mrf.mxu0
        %1246 = vmatprep.mubr.f32.mxu0 0.0
        %1247 = vmatmul.mubr.f32.gmra.mxu0 %v1014
        %v1248 = vpop.f32.mrf.mxu0
        %v1249 = vadd.f32 0.0, %v1248
        %v1250 = vpop.f32.mrf.mxu0
        %1251 = vmatprep.mubr.f32.mxu0 0.0
        %1252 = vmatmul.mubr.f32.gmra.mxu0 %v1015
        %v1253 = vpop.f32.mrf.mxu0
        %v1254 = vadd.f32 0.0, %v1253
        %v1255 = vpop.f32.mrf.mxu0
        %1256 = vmatprep.mubr.f32.mxu0 0.0
        %1257 = vmatmul.mubr.f32.gmra.mxu0 %v1016
        %v1258 = vpop.f32.mrf.mxu0
        %v1259 = vadd.f32 0.0, %v1258
        %v1260 = vpop.f32.mrf.mxu0
        %1261 = vmatprep.mubr.f32.mxu0 0.0
        %1262 = vmatmul.mubr.f32.gmra.mxu0 %v1017
        %v1263 = vpop.f32.mrf.mxu0
        %v1264 = vadd.f32 0.0, %v1263
        %v1265 = vpop.f32.mrf.mxu0
        %1266 = vmatprep.mubr.f32.mxu0 0.0
        %1267 = vmatmul.mubr.f32.gmra.mxu0 %v1018
        %v1268 = vpop.f32.mrf.mxu0
        %v1269 = vadd.f32 0.0, %v1268
        %v1270 = vpop.f32.mrf.mxu0
        %1271 = vmatprep.mubr.f32.mxu0 0.0
        %1272 = vmatmul.mubr.f32.gmra.mxu0 %v1019
        %v1273 = vpop.f32.mrf.mxu0
        %v1274 = vadd.f32 0.0, %v1273
        %v1275 = vpop.f32.mrf.mxu0
        %1276 = vmatprep.mubr.f32.mxu0 0.0
        %1277 = vmatmul.mubr.f32.gmra.mxu0 %v1020
        %v1278 = vpop.f32.mrf.mxu0
        %v1279 = vadd.f32 0.0, %v1278
        %v1280 = vpop.f32.mrf.mxu0
        %1281 = vmatprep.mubr.f32.mxu0 0.0
        %1282 = vmatmul.mubr.f32.gmra.mxu0 %v1021
        %v1283 = vpop.f32.mrf.mxu0
        %v1284 = vadd.f32 0.0, %v1283
        %v1285 = vpop.f32.mrf.mxu0
        %1286 = vmatprep.mubr.f32.mxu0 0.0
        %1287 = vmatmul.mubr.f32.gmra.mxu0 %v1022
        %v1288 = vpop.f32.mrf.mxu0
        %v1289 = vadd.f32 0.0, %v1288
        %v1290 = vpop.f32.mrf.mxu0
        %1291 = vmatprep.mubr.f32.mxu0 0.0
        %1292 = vmatmul.mubr.f32.gmra.mxu0 %v1023
        %v1293 = vpop.f32.mrf.mxu0
        %v1294 = vadd.f32 0.0, %v1293
        %v1295 = vpop.f32.mrf.mxu0
        %1296 = vdwg.mxu0
        %v1297 = vadd.f32 %v1040, %v1139
        %v1298 = vadd.f32 %v1041, %v1144
        %v1299 = vadd.f32 %v1042, %v1149
        %v1300 = vadd.f32 %v1043, %v1154
        %v1301 = vadd.f32 %v1044, %v1159
        %v1302 = vadd.f32 %v1045, %v1164
        %v1303 = vadd.f32 %v1046, %v1169
        %v1304 = vadd.f32 %v1047, %v1174
        %v1305 = vadd.f32 %v1048, %v1179
        %v1306 = vadd.f32 %v1049, %v1184
        %v1307 = vadd.f32 %v1050, %v1189
        %v1308 = vadd.f32 %v1051, %v1194
        %v1309 = vadd.f32 %v1052, %v1199
        %v1310 = vadd.f32 %v1053, %v1204
        %v1311 = vadd.f32 %v1054, %v1209
        %v1312 = vadd.f32 %v1055, %v1214
        %v1313 = vadd.f32 %v1056, %v1219
        %v1314 = vadd.f32 %v1057, %v1224
        %v1315 = vadd.f32 %v1058, %v1229
        %v1316 = vadd.f32 %v1059, %v1234
        %v1317 = vadd.f32 %v1060, %v1239
        %v1318 = vadd.f32 %v1061, %v1244
        %v1319 = vadd.f32 %v1062, %v1249
        %v1320 = vadd.f32 %v1063, %v1254
        %v1321 = vadd.f32 %v1064, %v1259
        %v1322 = vadd.f32 %v1065, %v1264
        %v1323 = vadd.f32 %v1066, %v1269
        %v1324 = vadd.f32 %v1067, %v1274
        %v1325 = vadd.f32 %v1068, %v1279
        %v1326 = vadd.f32 %v1069, %v1284
        %v1327 = vadd.f32 %v1070, %v1289
        %v1328 = vadd.f32 %v1071, %v1294
        %1329 = vst [vmem:[#allocation2] sm:$0xff] %v1297
        %1330 = vst [vmem:[#allocation2 + $0x8] sm:$0xff] %v1298
        %1331 = vst [vmem:[#allocation2 + $0x10] sm:$0xff] %v1299
        %1332 = vst [vmem:[#allocation2 + $0x18] sm:$0xff] %v1300
        %1333 = vst [vmem:[#allocation2 + $0x20] sm:$0xff] %v1301
        %1334 = vst [vmem:[#allocation2 + $0x28] sm:$0xff] %v1302
        %1335 = vst [vmem:[#allocation2 + $0x30] sm:$0xff] %v1303
        %1336 = vst [vmem:[#allocation2 + $0x38] sm:$0xff] %v1304
        %1337 = vst [vmem:[#allocation2 + $0x40] sm:$0xff] %v1305
        %1338 = vst [vmem:[#allocation2 + $0x48] sm:$0xff] %v1306
        %1339 = vst [vmem:[#allocation2 + $0x50] sm:$0xff] %v1307
        %1340 = vst [vmem:[#allocation2 + $0x58] sm:$0xff] %v1308
        %1341 = vst [vmem:[#allocation2 + $0x60] sm:$0xff] %v1309
        %1342 = vst [vmem:[#allocation2 + $0x68] sm:$0xff] %v1310
        %1343 = vst [vmem:[#allocation2 + $0x70] sm:$0xff] %v1311
        %1344 = vst [vmem:[#allocation2 + $0x78] sm:$0xff] %v1312
        %1345 = vst [vmem:[#allocation2 + $0x80] sm:$0xff] %v1313
        %1346 = vst [vmem:[#allocation2 + $0x88] sm:$0xff] %v1314
        %1347 = vst [vmem:[#allocation2 + $0x90] sm:$0xff] %v1315
        %1348 = vst [vmem:[#allocation2 + $0x98] sm:$0xff] %v1316
        %1349 = vst [vmem:[#allocation2 + $0xa0] sm:$0xff] %v1317
        %1350 = vst [vmem:[#allocation2 + $0xa8] sm:$0xff] %v1318
        %1351 = vst [vmem:[#allocation2 + $0xb0] sm:$0xff] %v1319
        %1352 = vst [vmem:[#allocation2 + $0xb8] sm:$0xff] %v1320
        %1353 = vst [vmem:[#allocation2 + $0xc0] sm:$0xff] %v1321
        %1354 = vst [vmem:[#allocation2 + $0xc8] sm:$0xff] %v1322
        %1355 = vst [vmem:[#allocation2 + $0xd0] sm:$0xff] %v1323
        %1356 = vst [vmem:[#allocation2 + $0xd8] sm:$0xff] %v1324
        %1357 = vst [vmem:[#allocation2 + $0xe0] sm:$0xff] %v1325
        %1358 = vst [vmem:[#allocation2 + $0xe8] sm:$0xff] %v1326
        %1359 = vst [vmem:[#allocation2 + $0xf0] sm:$0xff] %v1327
        %1360 = vst [vmem:[#allocation2 + $0xf8] sm:$0xff] %v1328
        %s1361 = scalar_lea.vmem %s221, 24
        %v1362 = vld [vmem:[%s1361] sm:$0xff]
        %v1363 = vld [vmem:[%s1361 + $0x8] sm:$0xff]
        %v1364 = vld [vmem:[%s1361 + $0x18] sm:$0xff]
        %v1365 = vld [vmem:[%s1361 + $0x20] sm:$0xff]
        %v1366 = vld [vmem:[%s1361 + $0x30] sm:$0xff]
        %v1367 = vld [vmem:[%s1361 + $0x38] sm:$0xff]
        %v1368 = vld [vmem:[%s1361 + $0x48] sm:$0xff]
        %v1369 = vld [vmem:[%s1361 + $0x50] sm:$0xff]
        %v1370 = vld [vmem:[%s1361 + $0x60] sm:$0xff]
        %v1371 = vld [vmem:[%s1361 + $0x68] sm:$0xff]
        %v1372 = vld [vmem:[%s1361 + $0x78] sm:$0xff]
        %v1373 = vld [vmem:[%s1361 + $0x80] sm:$0xff]
        %v1374 = vld [vmem:[%s1361 + $0x90] sm:$0xff]
        %v1375 = vld [vmem:[%s1361 + $0x98] sm:$0xff]
        %v1376 = vld [vmem:[%s1361 + $0xa8] sm:$0xff]
        %v1377 = vld [vmem:[%s1361 + $0xb0] sm:$0xff]
        %v1378 = vld [vmem:[%s1361 + $0xc0] sm:$0xff]
        %v1379 = vld [vmem:[%s1361 + $0xc8] sm:$0xff]
        %v1380 = vld [vmem:[%s1361 + $0xd8] sm:$0xff]
        %v1381 = vld [vmem:[%s1361 + $0xe0] sm:$0xff]
        %v1382 = vld [vmem:[%s1361 + $0xf0] sm:$0xff]
        %v1383 = vld [vmem:[%s1361 + $0xf8] sm:$0xff]
        %v1384 = vld [vmem:[%s1361 + $0x108] sm:$0xff]
        %v1385 = vld [vmem:[%s1361 + $0x110] sm:$0xff]
        %v1386 = vld [vmem:[%s1361 + $0x120] sm:$0xff]
        %v1387 = vld [vmem:[%s1361 + $0x128] sm:$0xff]
        %v1388 = vld [vmem:[%s1361 + $0x138] sm:$0xff]
        %v1389 = vld [vmem:[%s1361 + $0x140] sm:$0xff]
        %v1390 = vld [vmem:[%s1361 + $0x150] sm:$0xff]
        %v1391 = vld [vmem:[%s1361 + $0x158] sm:$0xff]
        %v1392 = vld [vmem:[%s1361 + $0x168] sm:$0xff]
        %v1393 = vld [vmem:[%s1361 + $0x170] sm:$0xff]
        %v1394 = vld [vmem:[%s1 + $0x180] sm:$0xff]
        %v1395 = vld [vmem:[%s1 + $0x188] sm:$0xff]
        %v1396 = vld [vmem:[%s1 + $0x190] sm:$0xff]
        %v1397 = vld [vmem:[%s1 + $0x198] sm:$0xff]
        %v1398 = vld [vmem:[%s1 + $0x1a0] sm:$0xff]
        %v1399 = vld [vmem:[%s1 + $0x1a8] sm:$0xff]
        %v1400 = vld [vmem:[%s1 + $0x1b0] sm:$0xff]
        %v1401 = vld [vmem:[%s1 + $0x1b8] sm:$0xff]
        %v1402 = vld [vmem:[%s1 + $0x1c0] sm:$0xff]
        %v1403 = vld [vmem:[%s1 + $0x1c8] sm:$0xff]
        %v1404 = vld [vmem:[%s1 + $0x1d0] sm:$0xff]
        %v1405 = vld [vmem:[%s1 + $0x1d8] sm:$0xff]
        %v1406 = vld [vmem:[%s1 + $0x1e0] sm:$0xff]
        %v1407 = vld [vmem:[%s1 + $0x1e8] sm:$0xff]
        %v1408 = vld [vmem:[%s1 + $0x1f0] sm:$0xff]
        %v1409 = vld [vmem:[%s1 + $0x1f8] sm:$0xff]
        %v1410 = vld [vmem:[#allocation2] sm:$0xff]
        %v1411 = vld [vmem:[#allocation2 + $0x8] sm:$0xff]
        %v1412 = vld [vmem:[#allocation2 + $0x10] sm:$0xff]
        %v1413 = vld [vmem:[#allocation2 + $0x18] sm:$0xff]
        %v1414 = vld [vmem:[#allocation2 + $0x20] sm:$0xff]
        %v1415 = vld [vmem:[#allocation2 + $0x28] sm:$0xff]
        %v1416 = vld [vmem:[#allocation2 + $0x30] sm:$0xff]
        %v1417 = vld [vmem:[#allocation2 + $0x38] sm:$0xff]
        %v1418 = vld [vmem:[#allocation2 + $0x40] sm:$0xff]
        %v1419 = vld [vmem:[#allocation2 + $0x48] sm:$0xff]
        %v1420 = vld [vmem:[#allocation2 + $0x50] sm:$0xff]
        %v1421 = vld [vmem:[#allocation2 + $0x58] sm:$0xff]
        %v1422 = vld [vmem:[#allocation2 + $0x60] sm:$0xff]
        %v1423 = vld [vmem:[#allocation2 + $0x68] sm:$0xff]
        %v1424 = vld [vmem:[#allocation2 + $0x70] sm:$0xff]
        %v1425 = vld [vmem:[#allocation2 + $0x78] sm:$0xff]
        %v1426 = vld [vmem:[#allocation2 + $0x80] sm:$0xff]
        %v1427 = vld [vmem:[#allocation2 + $0x88] sm:$0xff]
        %v1428 = vld [vmem:[#allocation2 + $0x90] sm:$0xff]
        %v1429 = vld [vmem:[#allocation2 + $0x98] sm:$0xff]
        %v1430 = vld [vmem:[#allocation2 + $0xa0] sm:$0xff]
        %v1431 = vld [vmem:[#allocation2 + $0xa8] sm:$0xff]
        %v1432 = vld [vmem:[#allocation2 + $0xb0] sm:$0xff]
        %v1433 = vld [vmem:[#allocation2 + $0xb8] sm:$0xff]
        %v1434 = vld [vmem:[#allocation2 + $0xc0] sm:$0xff]
        %v1435 = vld [vmem:[#allocation2 + $0xc8] sm:$0xff]
        %v1436 = vld [vmem:[#allocation2 + $0xd0] sm:$0xff]
        %v1437 = vld [vmem:[#allocation2 + $0xd8] sm:$0xff]
        %v1438 = vld [vmem:[#allocation2 + $0xe0] sm:$0xff]
        %v1439 = vld [vmem:[#allocation2 + $0xe8] sm:$0xff]
        %v1440 = vld [vmem:[#allocation2 + $0xf0] sm:$0xff]
        %v1441 = vld [vmem:[#allocation2 + $0xf8] sm:$0xff]
        %1442 = vmatprep.subr.mxu0 0.0
        %1443 = vmatpush1.msra.mxu0 %v1409
        %1444 = vmatprep.subr.mxu0 0.0
        %1445 = vmatpush1.msra.mxu0 %v1408
        %1446 = vmatprep.subr.mxu0 0.0
        %1447 = vmatpush1.msra.mxu0 %v1407
        %1448 = vmatprep.subr.mxu0 0.0
        %1449 = vmatpush1.msra.mxu0 %v1406
        %1450 = vmatprep.subr.mxu0 0.0
        %1451 = vmatpush1.msra.mxu0 %v1405
        %1452 = vmatprep.subr.mxu0 0.0
        %1453 = vmatpush1.msra.mxu0 %v1404
        %1454 = vmatprep.subr.mxu0 0.0
        %1455 = vmatpush1.msra.mxu0 %v1403
        %1456 = vmatprep.subr.mxu0 0.0
        %1457 = vmatpush1.msra.mxu0 %v1402
        %1458 = vmatprep.subr.mxu0 0.0
        %1459 = vmatpush1.msra.mxu0 %v1401
        %1460 = vmatprep.subr.mxu0 0.0
        %1461 = vmatpush1.msra.mxu0 %v1400
        %1462 = vmatprep.subr.mxu0 0.0
        %1463 = vmatpush1.msra.mxu0 %v1399
        %1464 = vmatprep.subr.mxu0 0.0
        %1465 = vmatpush1.msra.mxu0 %v1398
        %1466 = vmatprep.subr.mxu0 0.0
        %1467 = vmatpush1.msra.mxu0 %v1397
        %1468 = vmatprep.subr.mxu0 0.0
        %1469 = vmatpush1.msra.mxu0 %v1396
        %1470 = vmatprep.subr.mxu0 0.0
        %1471 = vmatpush1.msra.mxu0 %v1395
        %1472 = vmatprep.subr.mxu0 0.0
        %1473 = vmatpush1.msra.mxu0 %v1394
        %1474 = vmatprep.subr.mxu0 0.0
        %1475 = vmatpush2.msra.mxu0 0.0
        %1476 = vmatprep.subr.mxu0 0.0
        %1477 = vmatpush2.msra.mxu0 0.0
        %1478 = vmatprep.subr.mxu0 0.0
        %1479 = vmatpush2.msra.mxu0 0.0
        %1480 = vmatprep.subr.mxu0 0.0
        %1481 = vmatpush2.msra.mxu0 0.0
        %1482 = vmatprep.subr.mxu0 0.0
        %1483 = vmatpush2.msra.mxu0 0.0
        %1484 = vmatprep.subr.mxu0 0.0
        %1485 = vmatpush2.msra.mxu0 0.0
        %1486 = vmatprep.subr.mxu0 0.0
        %1487 = vmatpush2.msra.mxu0 0.0
        %1488 = vmatprep.subr.mxu0 0.0
        %1489 = vmatpush2.msra.mxu0 0.0
        %1490 = vmatprep.subr.mxu0 0.0
        %1491 = vmatpush2.msra.mxu0 0.0
        %1492 = vmatprep.subr.mxu0 0.0
        %1493 = vmatpush2.msra.mxu0 0.0
        %1494 = vmatprep.subr.mxu0 0.0
        %1495 = vmatpush2.msra.mxu0 0.0
        %1496 = vmatprep.subr.mxu0 0.0
        %1497 = vmatpush2.msra.mxu0 0.0
        %1498 = vmatprep.subr.mxu0 0.0
        %1499 = vmatpush2.msra.mxu0 0.0
        %1500 = vmatprep.subr.mxu0 0.0
        %1501 = vmatpush2.msra.mxu0 0.0
        %1502 = vmatprep.subr.mxu0 0.0
        %1503 = vmatpush2.msra.mxu0 0.0
        %1504 = vmatprep.subr.mxu0 0.0
        %1505 = vmatpush2.msra.mxu0 0.0
        %1506 = vmatprep.mubr.f32.mxu0 0.0
        %1507 = vmatmul.mubr.f32.gmra.mxu0 %v1362
        %v1508 = vpop.f32.mrf.mxu0
        %v1509 = vadd.f32 0.0, %v1508
        %v1510 = vpop.f32.mrf.mxu0
        %1511 = vmatprep.mubr.f32.mxu0 0.0
        %1512 = vmatmul.mubr.f32.gmra.mxu0 %v1363
        %v1513 = vpop.f32.mrf.mxu0
        %v1514 = vadd.f32 0.0, %v1513
        %v1515 = vpop.f32.mrf.mxu0
        %1516 = vmatprep.mubr.f32.mxu0 0.0
        %1517 = vmatmul.mubr.f32.gmra.mxu0 %v1364
        %v1518 = vpop.f32.mrf.mxu0
        %v1519 = vadd.f32 0.0, %v1518
        %v1520 = vpop.f32.mrf.mxu0
        %1521 = vmatprep.mubr.f32.mxu0 0.0
        %1522 = vmatmul.mubr.f32.gmra.mxu0 %v1365
        %v1523 = vpop.f32.mrf.mxu0
        %v1524 = vadd.f32 0.0, %v1523
        %v1525 = vpop.f32.mrf.mxu0
        %1526 = vmatprep.mubr.f32.mxu0 0.0
        %1527 = vmatmul.mubr.f32.gmra.mxu0 %v1366
        %v1528 = vpop.f32.mrf.mxu0
        %v1529 = vadd.f32 0.0, %v1528
        %v1530 = vpop.f32.mrf.mxu0
        %1531 = vmatprep.mubr.f32.mxu0 0.0
        %1532 = vmatmul.mubr.f32.gmra.mxu0 %v1367
        %v1533 = vpop.f32.mrf.mxu0
        %v1534 = vadd.f32 0.0, %v1533
        %v1535 = vpop.f32.mrf.mxu0
        %1536 = vmatprep.mubr.f32.mxu0 0.0
        %1537 = vmatmul.mubr.f32.gmra.mxu0 %v1368
        %v1538 = vpop.f32.mrf.mxu0
        %v1539 = vadd.f32 0.0, %v1538
        %v1540 = vpop.f32.mrf.mxu0
        %1541 = vmatprep.mubr.f32.mxu0 0.0
        %1542 = vmatmul.mubr.f32.gmra.mxu0 %v1369
        %v1543 = vpop.f32.mrf.mxu0
        %v1544 = vadd.f32 0.0, %v1543
        %v1545 = vpop.f32.mrf.mxu0
        %1546 = vmatprep.mubr.f32.mxu0 0.0
        %1547 = vmatmul.mubr.f32.gmra.mxu0 %v1370
        %v1548 = vpop.f32.mrf.mxu0
        %v1549 = vadd.f32 0.0, %v1548
        %v1550 = vpop.f32.mrf.mxu0
        %1551 = vmatprep.mubr.f32.mxu0 0.0
        %1552 = vmatmul.mubr.f32.gmra.mxu0 %v1371
        %v1553 = vpop.f32.mrf.mxu0
        %v1554 = vadd.f32 0.0, %v1553
        %v1555 = vpop.f32.mrf.mxu0
        %1556 = vmatprep.mubr.f32.mxu0 0.0
        %1557 = vmatmul.mubr.f32.gmra.mxu0 %v1372
        %v1558 = vpop.f32.mrf.mxu0
        %v1559 = vadd.f32 0.0, %v1558
        %v1560 = vpop.f32.mrf.mxu0
        %1561 = vmatprep.mubr.f32.mxu0 0.0
        %1562 = vmatmul.mubr.f32.gmra.mxu0 %v1373
        %v1563 = vpop.f32.mrf.mxu0
        %v1564 = vadd.f32 0.0, %v1563
        %v1565 = vpop.f32.mrf.mxu0
        %1566 = vmatprep.mubr.f32.mxu0 0.0
        %1567 = vmatmul.mubr.f32.gmra.mxu0 %v1374
        %v1568 = vpop.f32.mrf.mxu0
        %v1569 = vadd.f32 0.0, %v1568
        %v1570 = vpop.f32.mrf.mxu0
        %1571 = vmatprep.mubr.f32.mxu0 0.0
        %1572 = vmatmul.mubr.f32.gmra.mxu0 %v1375
        %v1573 = vpop.f32.mrf.mxu0
        %v1574 = vadd.f32 0.0, %v1573
        %v1575 = vpop.f32.mrf.mxu0
        %1576 = vmatprep.mubr.f32.mxu0 0.0
        %1577 = vmatmul.mubr.f32.gmra.mxu0 %v1376
        %v1578 = vpop.f32.mrf.mxu0
        %v1579 = vadd.f32 0.0, %v1578
        %v1580 = vpop.f32.mrf.mxu0
        %1581 = vmatprep.mubr.f32.mxu0 0.0
        %1582 = vmatmul.mubr.f32.gmra.mxu0 %v1377
        %v1583 = vpop.f32.mrf.mxu0
        %v1584 = vadd.f32 0.0, %v1583
        %v1585 = vpop.f32.mrf.mxu0
        %1586 = vmatprep.mubr.f32.mxu0 0.0
        %1587 = vmatmul.mubr.f32.gmra.mxu0 %v1378
        %v1588 = vpop.f32.mrf.mxu0
        %v1589 = vadd.f32 0.0, %v1588
        %v1590 = vpop.f32.mrf.mxu0
        %1591 = vmatprep.mubr.f32.mxu0 0.0
        %1592 = vmatmul.mubr.f32.gmra.mxu0 %v1379
        %v1593 = vpop.f32.mrf.mxu0
        %v1594 = vadd.f32 0.0, %v1593
        %v1595 = vpop.f32.mrf.mxu0
        %1596 = vmatprep.mubr.f32.mxu0 0.0
        %1597 = vmatmul.mubr.f32.gmra.mxu0 %v1380
        %v1598 = vpop.f32.mrf.mxu0
        %v1599 = vadd.f32 0.0, %v1598
        %v1600 = vpop.f32.mrf.mxu0
        %1601 = vmatprep.mubr.f32.mxu0 0.0
        %1602 = vmatmul.mubr.f32.gmra.mxu0 %v1381
        %v1603 = vpop.f32.mrf.mxu0
        %v1604 = vadd.f32 0.0, %v1603
        %v1605 = vpop.f32.mrf.mxu0
        %1606 = vmatprep.mubr.f32.mxu0 0.0
        %1607 = vmatmul.mubr.f32.gmra.mxu0 %v1382
        %v1608 = vpop.f32.mrf.mxu0
        %v1609 = vadd.f32 0.0, %v1608
        %v1610 = vpop.f32.mrf.mxu0
        %1611 = vmatprep.mubr.f32.mxu0 0.0
        %1612 = vmatmul.mubr.f32.gmra.mxu0 %v1383
        %v1613 = vpop.f32.mrf.mxu0
        %v1614 = vadd.f32 0.0, %v1613
        %v1615 = vpop.f32.mrf.mxu0
        %1616 = vmatprep.mubr.f32.mxu0 0.0
        %1617 = vmatmul.mubr.f32.gmra.mxu0 %v1384
        %v1618 = vpop.f32.mrf.mxu0
        %v1619 = vadd.f32 0.0, %v1618
        %v1620 = vpop.f32.mrf.mxu0
        %1621 = vmatprep.mubr.f32.mxu0 0.0
        %1622 = vmatmul.mubr.f32.gmra.mxu0 %v1385
        %v1623 = vpop.f32.mrf.mxu0
        %v1624 = vadd.f32 0.0, %v1623
        %v1625 = vpop.f32.mrf.mxu0
        %1626 = vmatprep.mubr.f32.mxu0 0.0
        %1627 = vmatmul.mubr.f32.gmra.mxu0 %v1386
        %v1628 = vpop.f32.mrf.mxu0
        %v1629 = vadd.f32 0.0, %v1628
        %v1630 = vpop.f32.mrf.mxu0
        %1631 = vmatprep.mubr.f32.mxu0 0.0
        %1632 = vmatmul.mubr.f32.gmra.mxu0 %v1387
        %v1633 = vpop.f32.mrf.mxu0
        %v1634 = vadd.f32 0.0, %v1633
        %v1635 = vpop.f32.mrf.mxu0
        %1636 = vmatprep.mubr.f32.mxu0 0.0
        %1637 = vmatmul.mubr.f32.gmra.mxu0 %v1388
        %v1638 = vpop.f32.mrf.mxu0
        %v1639 = vadd.f32 0.0, %v1638
        %v1640 = vpop.f32.mrf.mxu0
        %1641 = vmatprep.mubr.f32.mxu0 0.0
        %1642 = vmatmul.mubr.f32.gmra.mxu0 %v1389
        %v1643 = vpop.f32.mrf.mxu0
        %v1644 = vadd.f32 0.0, %v1643
        %v1645 = vpop.f32.mrf.mxu0
        %1646 = vmatprep.mubr.f32.mxu0 0.0
        %1647 = vmatmul.mubr.f32.gmra.mxu0 %v1390
        %v1648 = vpop.f32.mrf.mxu0
        %v1649 = vadd.f32 0.0, %v1648
        %v1650 = vpop.f32.mrf.mxu0
        %1651 = vmatprep.mubr.f32.mxu0 0.0
        %1652 = vmatmul.mubr.f32.gmra.mxu0 %v1391
        %v1653 = vpop.f32.mrf.mxu0
        %v1654 = vadd.f32 0.0, %v1653
        %v1655 = vpop.f32.mrf.mxu0
        %1656 = vmatprep.mubr.f32.mxu0 0.0
        %1657 = vmatmul.mubr.f32.gmra.mxu0 %v1392
        %v1658 = vpop.f32.mrf.mxu0
        %v1659 = vadd.f32 0.0, %v1658
        %v1660 = vpop.f32.mrf.mxu0
        %1661 = vmatprep.mubr.f32.mxu0 0.0
        %1662 = vmatmul.mubr.f32.gmra.mxu0 %v1393
        %v1663 = vpop.f32.mrf.mxu0
        %v1664 = vadd.f32 0.0, %v1663
        %v1665 = vpop.f32.mrf.mxu0
        %1666 = vdwg.mxu0
        %v1667 = vadd.f32 %v1410, %v1509
        %v1668 = vadd.f32 %v1411, %v1514
        %v1669 = vadd.f32 %v1412, %v1519
        %v1670 = vadd.f32 %v1413, %v1524
        %v1671 = vadd.f32 %v1414, %v1529
        %v1672 = vadd.f32 %v1415, %v1534
        %v1673 = vadd.f32 %v1416, %v1539
        %v1674 = vadd.f32 %v1417, %v1544
        %v1675 = vadd.f32 %v1418, %v1549
        %v1676 = vadd.f32 %v1419, %v1554
        %v1677 = vadd.f32 %v1420, %v1559
        %v1678 = vadd.f32 %v1421, %v1564
        %v1679 = vadd.f32 %v1422, %v1569
        %v1680 = vadd.f32 %v1423, %v1574
        %v1681 = vadd.f32 %v1424, %v1579
        %v1682 = vadd.f32 %v1425, %v1584
        %v1683 = vadd.f32 %v1426, %v1589
        %v1684 = vadd.f32 %v1427, %v1594
        %v1685 = vadd.f32 %v1428, %v1599
        %v1686 = vadd.f32 %v1429, %v1604
        %v1687 = vadd.f32 %v1430, %v1609
        %v1688 = vadd.f32 %v1431, %v1614
        %v1689 = vadd.f32 %v1432, %v1619
        %v1690 = vadd.f32 %v1433, %v1624
        %v1691 = vadd.f32 %v1434, %v1629
        %v1692 = vadd.f32 %v1435, %v1634
        %v1693 = vadd.f32 %v1436, %v1639
        %v1694 = vadd.f32 %v1437, %v1644
        %v1695 = vadd.f32 %v1438, %v1649
        %v1696 = vadd.f32 %v1439, %v1654
        %v1697 = vadd.f32 %v1440, %v1659
        %v1698 = vadd.f32 %v1441, %v1664
        %1699 = vst [vmem:[#allocation2] sm:$0xff] %v1667
        %1700 = vst [vmem:[#allocation2 + $0x8] sm:$0xff] %v1668
        %1701 = vst [vmem:[#allocation2 + $0x10] sm:$0xff] %v1669
        %1702 = vst [vmem:[#allocation2 + $0x18] sm:$0xff] %v1670
        %1703 = vst [vmem:[#allocation2 + $0x20] sm:$0xff] %v1671
        %1704 = vst [vmem:[#allocation2 + $0x28] sm:$0xff] %v1672
        %1705 = vst [vmem:[#allocation2 + $0x30] sm:$0xff] %v1673
        %1706 = vst [vmem:[#allocation2 + $0x38] sm:$0xff] %v1674
        %1707 = vst [vmem:[#allocation2 + $0x40] sm:$0xff] %v1675
        %1708 = vst [vmem:[#allocation2 + $0x48] sm:$0xff] %v1676
        %1709 = vst [vmem:[#allocation2 + $0x50] sm:$0xff] %v1677
        %1710 = vst [vmem:[#allocation2 + $0x58] sm:$0xff] %v1678
        %1711 = vst [vmem:[#allocation2 + $0x60] sm:$0xff] %v1679
        %1712 = vst [vmem:[#allocation2 + $0x68] sm:$0xff] %v1680
        %1713 = vst [vmem:[#allocation2 + $0x70] sm:$0xff] %v1681
        %1714 = vst [vmem:[#allocation2 + $0x78] sm:$0xff] %v1682
        %1715 = vst [vmem:[#allocation2 + $0x80] sm:$0xff] %v1683
        %1716 = vst [vmem:[#allocation2 + $0x88] sm:$0xff] %v1684
        %1717 = vst [vmem:[#allocation2 + $0x90] sm:$0xff] %v1685
        %1718 = vst [vmem:[#allocation2 + $0x98] sm:$0xff] %v1686
        %1719 = vst [vmem:[#allocation2 + $0xa0] sm:$0xff] %v1687
        %1720 = vst [vmem:[#allocation2 + $0xa8] sm:$0xff] %v1688
        %1721 = vst [vmem:[#allocation2 + $0xb0] sm:$0xff] %v1689
        %1722 = vst [vmem:[#allocation2 + $0xb8] sm:$0xff] %v1690
        %1723 = vst [vmem:[#allocation2 + $0xc0] sm:$0xff] %v1691
        %1724 = vst [vmem:[#allocation2 + $0xc8] sm:$0xff] %v1692
        %1725 = vst [vmem:[#allocation2 + $0xd0] sm:$0xff] %v1693
        %1726 = vst [vmem:[#allocation2 + $0xd8] sm:$0xff] %v1694
        %1727 = vst [vmem:[#allocation2 + $0xe0] sm:$0xff] %v1695
        %1728 = vst [vmem:[#allocation2 + $0xe8] sm:$0xff] %v1696
        %1729 = vst [vmem:[#allocation2 + $0xf0] sm:$0xff] %v1697
        %1730 = vst [vmem:[#allocation2 + $0xf8] sm:$0xff] %v1698
        %v1731 = vld [vmem:[%s1361 + $0x1] sm:$0xff]
        %v1732 = vld [vmem:[%s1361 + $0x9] sm:$0xff]
        %v1733 = vld [vmem:[%s1361 + $0x19] sm:$0xff]
        %v1734 = vld [vmem:[%s1361 + $0x21] sm:$0xff]
        %v1735 = vld [vmem:[%s1361 + $0x31] sm:$0xff]
        %v1736 = vld [vmem:[%s1361 + $0x39] sm:$0xff]
        %v1737 = vld [vmem:[%s1361 + $0x49] sm:$0xff]
        %v1738 = vld [vmem:[%s1361 + $0x51] sm:$0xff]
        %v1739 = vld [vmem:[%s1361 + $0x61] sm:$0xff]
        %v1740 = vld [vmem:[%s1361 + $0x69] sm:$0xff]
        %v1741 = vld [vmem:[%s1361 + $0x79] sm:$0xff]
        %v1742 = vld [vmem:[%s1361 + $0x81] sm:$0xff]
        %v1743 = vld [vmem:[%s1361 + $0x91] sm:$0xff]
        %v1744 = vld [vmem:[%s1361 + $0x99] sm:$0xff]
        %v1745 = vld [vmem:[%s1361 + $0xa9] sm:$0xff]
        %v1746 = vld [vmem:[%s1361 + $0xb1] sm:$0xff]
        %v1747 = vld [vmem:[%s1361 + $0xc1] sm:$0xff]
        %v1748 = vld [vmem:[%s1361 + $0xc9] sm:$0xff]
        %v1749 = vld [vmem:[%s1361 + $0xd9] sm:$0xff]
        %v1750 = vld [vmem:[%s1361 + $0xe1] sm:$0xff]
        %v1751 = vld [vmem:[%s1361 + $0xf1] sm:$0xff]
        %v1752 = vld [vmem:[%s1361 + $0xf9] sm:$0xff]
        %v1753 = vld [vmem:[%s1361 + $0x109] sm:$0xff]
        %v1754 = vld [vmem:[%s1361 + $0x111] sm:$0xff]
        %v1755 = vld [vmem:[%s1361 + $0x121] sm:$0xff]
        %v1756 = vld [vmem:[%s1361 + $0x129] sm:$0xff]
        %v1757 = vld [vmem:[%s1361 + $0x139] sm:$0xff]
        %v1758 = vld [vmem:[%s1361 + $0x141] sm:$0xff]
        %v1759 = vld [vmem:[%s1361 + $0x151] sm:$0xff]
        %v1760 = vld [vmem:[%s1361 + $0x159] sm:$0xff]
        %v1761 = vld [vmem:[%s1361 + $0x169] sm:$0xff]
        %v1762 = vld [vmem:[%s1361 + $0x171] sm:$0xff]
        %v1763 = vld [vmem:[%s1 + $0x200] sm:$0xff]
        %v1764 = vld [vmem:[%s1 + $0x208] sm:$0xff]
        %v1765 = vld [vmem:[%s1 + $0x210] sm:$0xff]
        %v1766 = vld [vmem:[%s1 + $0x218] sm:$0xff]
        %v1767 = vld [vmem:[%s1 + $0x220] sm:$0xff]
        %v1768 = vld [vmem:[%s1 + $0x228] sm:$0xff]
        %v1769 = vld [vmem:[%s1 + $0x230] sm:$0xff]
        %v1770 = vld [vmem:[%s1 + $0x238] sm:$0xff]
        %v1771 = vld [vmem:[%s1 + $0x240] sm:$0xff]
        %v1772 = vld [vmem:[%s1 + $0x248] sm:$0xff]
        %v1773 = vld [vmem:[%s1 + $0x250] sm:$0xff]
        %v1774 = vld [vmem:[%s1 + $0x258] sm:$0xff]
        %v1775 = vld [vmem:[%s1 + $0x260] sm:$0xff]
        %v1776 = vld [vmem:[%s1 + $0x268] sm:$0xff]
        %v1777 = vld [vmem:[%s1 + $0x270] sm:$0xff]
        %v1778 = vld [vmem:[%s1 + $0x278] sm:$0xff]
        %v1779 = vld [vmem:[#allocation2] sm:$0xff]
        %v1780 = vld [vmem:[#allocation2 + $0x8] sm:$0xff]
        %v1781 = vld [vmem:[#allocation2 + $0x10] sm:$0xff]
        %v1782 = vld [vmem:[#allocation2 + $0x18] sm:$0xff]
        %v1783 = vld [vmem:[#allocation2 + $0x20] sm:$0xff]
        %v1784 = vld [vmem:[#allocation2 + $0x28] sm:$0xff]
        %v1785 = vld [vmem:[#allocation2 + $0x30] sm:$0xff]
        %v1786 = vld [vmem:[#allocation2 + $0x38] sm:$0xff]
        %v1787 = vld [vmem:[#allocation2 + $0x40] sm:$0xff]
        %v1788 = vld [vmem:[#allocation2 + $0x48] sm:$0xff]
        %v1789 = vld [vmem:[#allocation2 + $0x50] sm:$0xff]
        %v1790 = vld [vmem:[#allocation2 + $0x58] sm:$0xff]
        %v1791 = vld [vmem:[#allocation2 + $0x60] sm:$0xff]
        %v1792 = vld [vmem:[#allocation2 + $0x68] sm:$0xff]
        %v1793 = vld [vmem:[#allocation2 + $0x70] sm:$0xff]
        %v1794 = vld [vmem:[#allocation2 + $0x78] sm:$0xff]
        %v1795 = vld [vmem:[#allocation2 + $0x80] sm:$0xff]
        %v1796 = vld [vmem:[#allocation2 + $0x88] sm:$0xff]
        %v1797 = vld [vmem:[#allocation2 + $0x90] sm:$0xff]
        %v1798 = vld [vmem:[#allocation2 + $0x98] sm:$0xff]
        %v1799 = vld [vmem:[#allocation2 + $0xa0] sm:$0xff]
        %v1800 = vld [vmem:[#allocation2 + $0xa8] sm:$0xff]
        %v1801 = vld [vmem:[#allocation2 + $0xb0] sm:$0xff]
        %v1802 = vld [vmem:[#allocation2 + $0xb8] sm:$0xff]
        %v1803 = vld [vmem:[#allocation2 + $0xc0] sm:$0xff]
        %v1804 = vld [vmem:[#allocation2 + $0xc8] sm:$0xff]
        %v1805 = vld [vmem:[#allocation2 + $0xd0] sm:$0xff]
        %v1806 = vld [vmem:[#allocation2 + $0xd8] sm:$0xff]
        %v1807 = vld [vmem:[#allocation2 + $0xe0] sm:$0xff]
        %v1808 = vld [vmem:[#allocation2 + $0xe8] sm:$0xff]
        %v1809 = vld [vmem:[#allocation2 + $0xf0] sm:$0xff]
        %v1810 = vld [vmem:[#allocation2 + $0xf8] sm:$0xff]
        %1811 = vmatprep.subr.mxu0 0.0
        %1812 = vmatpush1.msra.mxu0 %v1778
        %1813 = vmatprep.subr.mxu0 0.0
        %1814 = vmatpush1.msra.mxu0 %v1777
        %1815 = vmatprep.subr.mxu0 0.0
        %1816 = vmatpush1.msra.mxu0 %v1776
        %1817 = vmatprep.subr.mxu0 0.0
        %1818 = vmatpush1.msra.mxu0 %v1775
        %1819 = vmatprep.subr.mxu0 0.0
        %1820 = vmatpush1.msra.mxu0 %v1774
        %1821 = vmatprep.subr.mxu0 0.0
        %1822 = vmatpush1.msra.mxu0 %v1773
        %1823 = vmatprep.subr.mxu0 0.0
        %1824 = vmatpush1.msra.mxu0 %v1772
        %1825 = vmatprep.subr.mxu0 0.0
        %1826 = vmatpush1.msra.mxu0 %v1771
        %1827 = vmatprep.subr.mxu0 0.0
        %1828 = vmatpush1.msra.mxu0 %v1770
        %1829 = vmatprep.subr.mxu0 0.0
        %1830 = vmatpush1.msra.mxu0 %v1769
        %1831 = vmatprep.subr.mxu0 0.0
        %1832 = vmatpush1.msra.mxu0 %v1768
        %1833 = vmatprep.subr.mxu0 0.0
        %1834 = vmatpush1.msra.mxu0 %v1767
        %1835 = vmatprep.subr.mxu0 0.0
        %1836 = vmatpush1.msra.mxu0 %v1766
        %1837 = vmatprep.subr.mxu0 0.0
        %1838 = vmatpush1.msra.mxu0 %v1765
        %1839 = vmatprep.subr.mxu0 0.0
        %1840 = vmatpush1.msra.mxu0 %v1764
        %1841 = vmatprep.subr.mxu0 0.0
        %1842 = vmatpush1.msra.mxu0 %v1763
        %1843 = vmatprep.subr.mxu0 0.0
        %1844 = vmatpush2.msra.mxu0 0.0
        %1845 = vmatprep.subr.mxu0 0.0
        %1846 = vmatpush2.msra.mxu0 0.0
        %1847 = vmatprep.subr.mxu0 0.0
        %1848 = vmatpush2.msra.mxu0 0.0
        %1849 = vmatprep.subr.mxu0 0.0
        %1850 = vmatpush2.msra.mxu0 0.0
        %1851 = vmatprep.subr.mxu0 0.0
        %1852 = vmatpush2.msra.mxu0 0.0
        %1853 = vmatprep.subr.mxu0 0.0
        %1854 = vmatpush2.msra.mxu0 0.0
        %1855 = vmatprep.subr.mxu0 0.0
        %1856 = vmatpush2.msra.mxu0 0.0
        %1857 = vmatprep.subr.mxu0 0.0
        %1858 = vmatpush2.msra.mxu0 0.0
        %1859 = vmatprep.subr.mxu0 0.0
        %1860 = vmatpush2.msra.mxu0 0.0
        %1861 = vmatprep.subr.mxu0 0.0
        %1862 = vmatpush2.msra.mxu0 0.0
        %1863 = vmatprep.subr.mxu0 0.0
        %1864 = vmatpush2.msra.mxu0 0.0
        %1865 = vmatprep.subr.mxu0 0.0
        %1866 = vmatpush2.msra.mxu0 0.0
        %1867 = vmatprep.subr.mxu0 0.0
        %1868 = vmatpush2.msra.mxu0 0.0
        %1869 = vmatprep.subr.mxu0 0.0
        %1870 = vmatpush2.msra.mxu0 0.0
        %1871 = vmatprep.subr.mxu0 0.0
        %1872 = vmatpush2.msra.mxu0 0.0
        %1873 = vmatprep.subr.mxu0 0.0
        %1874 = vmatpush2.msra.mxu0 0.0
        %1875 = vmatprep.mubr.f32.mxu0 0.0
        %1876 = vmatmul.mubr.f32.gmra.mxu0 %v1731
        %v1877 = vpop.f32.mrf.mxu0
        %v1878 = vadd.f32 0.0, %v1877
        %v1879 = vpop.f32.mrf.mxu0
        %1880 = vmatprep.mubr.f32.mxu0 0.0
        %1881 = vmatmul.mubr.f32.gmra.mxu0 %v1732
        %v1882 = vpop.f32.mrf.mxu0
        %v1883 = vadd.f32 0.0, %v1882
        %v1884 = vpop.f32.mrf.mxu0
        %1885 = vmatprep.mubr.f32.mxu0 0.0
        %1886 = vmatmul.mubr.f32.gmra.mxu0 %v1733
        %v1887 = vpop.f32.mrf.mxu0
        %v1888 = vadd.f32 0.0, %v1887
        %v1889 = vpop.f32.mrf.mxu0
        %1890 = vmatprep.mubr.f32.mxu0 0.0
        %1891 = vmatmul.mubr.f32.gmra.mxu0 %v1734
        %v1892 = vpop.f32.mrf.mxu0
        %v1893 = vadd.f32 0.0, %v1892
        %v1894 = vpop.f32.mrf.mxu0
        %1895 = vmatprep.mubr.f32.mxu0 0.0
        %1896 = vmatmul.mubr.f32.gmra.mxu0 %v1735
        %v1897 = vpop.f32.mrf.mxu0
        %v1898 = vadd.f32 0.0, %v1897
        %v1899 = vpop.f32.mrf.mxu0
        %1900 = vmatprep.mubr.f32.mxu0 0.0
        %1901 = vmatmul.mubr.f32.gmra.mxu0 %v1736
        %v1902 = vpop.f32.mrf.mxu0
        %v1903 = vadd.f32 0.0, %v1902
        %v1904 = vpop.f32.mrf.mxu0
        %1905 = vmatprep.mubr.f32.mxu0 0.0
        %1906 = vmatmul.mubr.f32.gmra.mxu0 %v1737
        %v1907 = vpop.f32.mrf.mxu0
        %v1908 = vadd.f32 0.0, %v1907
        %v1909 = vpop.f32.mrf.mxu0
        %1910 = vmatprep.mubr.f32.mxu0 0.0
        %1911 = vmatmul.mubr.f32.gmra.mxu0 %v1738
        %v1912 = vpop.f32.mrf.mxu0
        %v1913 = vadd.f32 0.0, %v1912
        %v1914 = vpop.f32.mrf.mxu0
        %1915 = vmatprep.mubr.f32.mxu0 0.0
        %1916 = vmatmul.mubr.f32.gmra.mxu0 %v1739
        %v1917 = vpop.f32.mrf.mxu0
        %v1918 = vadd.f32 0.0, %v1917
        %v1919 = vpop.f32.mrf.mxu0
        %1920 = vmatprep.mubr.f32.mxu0 0.0
        %1921 = vmatmul.mubr.f32.gmra.mxu0 %v1740
        %v1922 = vpop.f32.mrf.mxu0
        %v1923 = vadd.f32 0.0, %v1922
        %v1924 = vpop.f32.mrf.mxu0
        %1925 = vmatprep.mubr.f32.mxu0 0.0
        %1926 = vmatmul.mubr.f32.gmra.mxu0 %v1741
        %v1927 = vpop.f32.mrf.mxu0
        %v1928 = vadd.f32 0.0, %v1927
        %v1929 = vpop.f32.mrf.mxu0
        %1930 = vmatprep.mubr.f32.mxu0 0.0
        %1931 = vmatmul.mubr.f32.gmra.mxu0 %v1742
        %v1932 = vpop.f32.mrf.mxu0
        %v1933 = vadd.f32 0.0, %v1932
        %v1934 = vpop.f32.mrf.mxu0
        %1935 = vmatprep.mubr.f32.mxu0 0.0
        %1936 = vmatmul.mubr.f32.gmra.mxu0 %v1743
        %v1937 = vpop.f32.mrf.mxu0
        %v1938 = vadd.f32 0.0, %v1937
        %v1939 = vpop.f32.mrf.mxu0
        %1940 = vmatprep.mubr.f32.mxu0 0.0
        %1941 = vmatmul.mubr.f32.gmra.mxu0 %v1744
        %v1942 = vpop.f32.mrf.mxu0
        %v1943 = vadd.f32 0.0, %v1942
        %v1944 = vpop.f32.mrf.mxu0
        %1945 = vmatprep.mubr.f32.mxu0 0.0
        %1946 = vmatmul.mubr.f32.gmra.mxu0 %v1745
        %v1947 = vpop.f32.mrf.mxu0
        %v1948 = vadd.f32 0.0, %v1947
        %v1949 = vpop.f32.mrf.mxu0
        %1950 = vmatprep.mubr.f32.mxu0 0.0
        %1951 = vmatmul.mubr.f32.gmra.mxu0 %v1746
        %v1952 = vpop.f32.mrf.mxu0
        %v1953 = vadd.f32 0.0, %v1952
        %v1954 = vpop.f32.mrf.mxu0
        %1955 = vmatprep.mubr.f32.mxu0 0.0
        %1956 = vmatmul.mubr.f32.gmra.mxu0 %v1747
        %v1957 = vpop.f32.mrf.mxu0
        %v1958 = vadd.f32 0.0, %v1957
        %v1959 = vpop.f32.mrf.mxu0
        %1960 = vmatprep.mubr.f32.mxu0 0.0
        %1961 = vmatmul.mubr.f32.gmra.mxu0 %v1748
        %v1962 = vpop.f32.mrf.mxu0
        %v1963 = vadd.f32 0.0, %v1962
        %v1964 = vpop.f32.mrf.mxu0
        %1965 = vmatprep.mubr.f32.mxu0 0.0
        %1966 = vmatmul.mubr.f32.gmra.mxu0 %v1749
        %v1967 = vpop.f32.mrf.mxu0
        %v1968 = vadd.f32 0.0, %v1967
        %v1969 = vpop.f32.mrf.mxu0
        %1970 = vmatprep.mubr.f32.mxu0 0.0
        %1971 = vmatmul.mubr.f32.gmra.mxu0 %v1750
        %v1972 = vpop.f32.mrf.mxu0
        %v1973 = vadd.f32 0.0, %v1972
        %v1974 = vpop.f32.mrf.mxu0
        %1975 = vmatprep.mubr.f32.mxu0 0.0
        %1976 = vmatmul.mubr.f32.gmra.mxu0 %v1751
        %v1977 = vpop.f32.mrf.mxu0
        %v1978 = vadd.f32 0.0, %v1977
        %v1979 = vpop.f32.mrf.mxu0
        %1980 = vmatprep.mubr.f32.mxu0 0.0
        %1981 = vmatmul.mubr.f32.gmra.mxu0 %v1752
        %v1982 = vpop.f32.mrf.mxu0
        %v1983 = vadd.f32 0.0, %v1982
        %v1984 = vpop.f32.mrf.mxu0
        %1985 = vmatprep.mubr.f32.mxu0 0.0
        %1986 = vmatmul.mubr.f32.gmra.mxu0 %v1753
        %v1987 = vpop.f32.mrf.mxu0
        %v1988 = vadd.f32 0.0, %v1987
        %v1989 = vpop.f32.mrf.mxu0
        %1990 = vmatprep.mubr.f32.mxu0 0.0
        %1991 = vmatmul.mubr.f32.gmra.mxu0 %v1754
        %v1992 = vpop.f32.mrf.mxu0
        %v1993 = vadd.f32 0.0, %v1992
        %v1994 = vpop.f32.mrf.mxu0
        %1995 = vmatprep.mubr.f32.mxu0 0.0
        %1996 = vmatmul.mubr.f32.gmra.mxu0 %v1755
        %v1997 = vpop.f32.mrf.mxu0
        %v1998 = vadd.f32 0.0, %v1997
        %v1999 = vpop.f32.mrf.mxu0
        %2000 = vmatprep.mubr.f32.mxu0 0.0
        %2001 = vmatmul.mubr.f32.gmra.mxu0 %v1756
        %v2002 = vpop.f32.mrf.mxu0
        %v2003 = vadd.f32 0.0, %v2002
        %v2004 = vpop.f32.mrf.mxu0
        %2005 = vmatprep.mubr.f32.mxu0 0.0
        %2006 = vmatmul.mubr.f32.gmra.mxu0 %v1757
        %v2007 = vpop.f32.mrf.mxu0
        %v2008 = vadd.f32 0.0, %v2007
        %v2009 = vpop.f32.mrf.mxu0
        %2010 = vmatprep.mubr.f32.mxu0 0.0
        %2011 = vmatmul.mubr.f32.gmra.mxu0 %v1758
        %v2012 = vpop.f32.mrf.mxu0
        %v2013 = vadd.f32 0.0, %v2012
        %v2014 = vpop.f32.mrf.mxu0
        %2015 = vmatprep.mubr.f32.mxu0 0.0
        %2016 = vmatmul.mubr.f32.gmra.mxu0 %v1759
        %v2017 = vpop.f32.mrf.mxu0
        %v2018 = vadd.f32 0.0, %v2017
        %v2019 = vpop.f32.mrf.mxu0
        %2020 = vmatprep.mubr.f32.mxu0 0.0
        %2021 = vmatmul.mubr.f32.gmra.mxu0 %v1760
        %v2022 = vpop.f32.mrf.mxu0
        %v2023 = vadd.f32 0.0, %v2022
        %v2024 = vpop.f32.mrf.mxu0
        %2025 = vmatprep.mubr.f32.mxu0 0.0
        %2026 = vmatmul.mubr.f32.gmra.mxu0 %v1761
        %v2027 = vpop.f32.mrf.mxu0
        %v2028 = vadd.f32 0.0, %v2027
        %v2029 = vpop.f32.mrf.mxu0
        %2030 = vmatprep.mubr.f32.mxu0 0.0
        %2031 = vmatmul.mubr.f32.gmra.mxu0 %v1762
        %v2032 = vpop.f32.mrf.mxu0
        %v2033 = vadd.f32 0.0, %v2032
        %v2034 = vpop.f32.mrf.mxu0
        %2035 = vdwg.mxu0
        %v2036 = vadd.f32 %v1779, %v1878
        %v2037 = vadd.f32 %v1780, %v1883
        %v2038 = vadd.f32 %v1781, %v1888
        %v2039 = vadd.f32 %v1782, %v1893
        %v2040 = vadd.f32 %v1783, %v1898
        %v2041 = vadd.f32 %v1784, %v1903
        %v2042 = vadd.f32 %v1785, %v1908
        %v2043 = vadd.f32 %v1786, %v1913
        %v2044 = vadd.f32 %v1787, %v1918
        %v2045 = vadd.f32 %v1788, %v1923
        %v2046 = vadd.f32 %v1789, %v1928
        %v2047 = vadd.f32 %v1790, %v1933
        %v2048 = vadd.f32 %v1791, %v1938
        %v2049 = vadd.f32 %v1792, %v1943
        %v2050 = vadd.f32 %v1793, %v1948
        %v2051 = vadd.f32 %v1794, %v1953
        %v2052 = vadd.f32 %v1795, %v1958
        %v2053 = vadd.f32 %v1796, %v1963
        %v2054 = vadd.f32 %v1797, %v1968
        %v2055 = vadd.f32 %v1798, %v1973
        %v2056 = vadd.f32 %v1799, %v1978
        %v2057 = vadd.f32 %v1800, %v1983
        %v2058 = vadd.f32 %v1801, %v1988
        %v2059 = vadd.f32 %v1802, %v1993
        %v2060 = vadd.f32 %v1803, %v1998
        %v2061 = vadd.f32 %v1804, %v2003
        %v2062 = vadd.f32 %v1805, %v2008
        %v2063 = vadd.f32 %v1806, %v2013
        %v2064 = vadd.f32 %v1807, %v2018
        %v2065 = vadd.f32 %v1808, %v2023
        %v2066 = vadd.f32 %v1809, %v2028
        %v2067 = vadd.f32 %v1810, %v2033
        %2068 = vst [vmem:[#allocation2] sm:$0xff] %v2036
        %2069 = vst [vmem:[#allocation2 + $0x8] sm:$0xff] %v2037
        %2070 = vst [vmem:[#allocation2 + $0x10] sm:$0xff] %v2038
        %2071 = vst [vmem:[#allocation2 + $0x18] sm:$0xff] %v2039
        %2072 = vst [vmem:[#allocation2 + $0x20] sm:$0xff] %v2040
        %2073 = vst [vmem:[#allocation2 + $0x28] sm:$0xff] %v2041
        %2074 = vst [vmem:[#allocation2 + $0x30] sm:$0xff] %v2042
        %2075 = vst [vmem:[#allocation2 + $0x38] sm:$0xff] %v2043
        %2076 = vst [vmem:[#allocation2 + $0x40] sm:$0xff] %v2044
        %2077 = vst [vmem:[#allocation2 + $0x48] sm:$0xff] %v2045
        %2078 = vst [vmem:[#allocation2 + $0x50] sm:$0xff] %v2046
        %2079 = vst [vmem:[#allocation2 + $0x58] sm:$0xff] %v2047
        %2080 = vst [vmem:[#allocation2 + $0x60] sm:$0xff] %v2048
        %2081 = vst [vmem:[#allocation2 + $0x68] sm:$0xff] %v2049
        %2082 = vst [vmem:[#allocation2 + $0x70] sm:$0xff] %v2050
        %2083 = vst [vmem:[#allocation2 + $0x78] sm:$0xff] %v2051
        %2084 = vst [vmem:[#allocation2 + $0x80] sm:$0xff] %v2052
        %2085 = vst [vmem:[#allocation2 + $0x88] sm:$0xff] %v2053
        %2086 = vst [vmem:[#allocation2 + $0x90] sm:$0xff] %v2054
        %2087 = vst [vmem:[#allocation2 + $0x98] sm:$0xff] %v2055
        %2088 = vst [vmem:[#allocation2 + $0xa0] sm:$0xff] %v2056
        %2089 = vst [vmem:[#allocation2 + $0xa8] sm:$0xff] %v2057
        %2090 = vst [vmem:[#allocation2 + $0xb0] sm:$0xff] %v2058
        %2091 = vst [vmem:[#allocation2 + $0xb8] sm:$0xff] %v2059
        %2092 = vst [vmem:[#allocation2 + $0xc0] sm:$0xff] %v2060
        %2093 = vst [vmem:[#allocation2 + $0xc8] sm:$0xff] %v2061
        %2094 = vst [vmem:[#allocation2 + $0xd0] sm:$0xff] %v2062
        %2095 = vst [vmem:[#allocation2 + $0xd8] sm:$0xff] %v2063
        %2096 = vst [vmem:[#allocation2 + $0xe0] sm:$0xff] %v2064
        %2097 = vst [vmem:[#allocation2 + $0xe8] sm:$0xff] %v2065
        %2098 = vst [vmem:[#allocation2 + $0xf0] sm:$0xff] %v2066
        %2099 = vst [vmem:[#allocation2 + $0xf8] sm:$0xff] %v2067
        %v2100 = vld [vmem:[%s1361 + $0x2] sm:$0xff]
        %v2101 = vld [vmem:[%s1361 + $0xa] sm:$0xff]
        %v2102 = vld [vmem:[%s1361 + $0x1a] sm:$0xff]
        %v2103 = vld [vmem:[%s1361 + $0x22] sm:$0xff]
        %v2104 = vld [vmem:[%s1361 + $0x32] sm:$0xff]
        %v2105 = vld [vmem:[%s1361 + $0x3a] sm:$0xff]
        %v2106 = vld [vmem:[%s1361 + $0x4a] sm:$0xff]
        %v2107 = vld [vmem:[%s1361 + $0x52] sm:$0xff]
        %v2108 = vld [vmem:[%s1361 + $0x62] sm:$0xff]
        %v2109 = vld [vmem:[%s1361 + $0x6a] sm:$0xff]
        %v2110 = vld [vmem:[%s1361 + $0x7a] sm:$0xff]
        %v2111 = vld [vmem:[%s1361 + $0x82] sm:$0xff]
        %v2112 = vld [vmem:[%s1361 + $0x92] sm:$0xff]
        %v2113 = vld [vmem:[%s1361 + $0x9a] sm:$0xff]
        %v2114 = vld [vmem:[%s1361 + $0xaa] sm:$0xff]
        %v2115 = vld [vmem:[%s1361 + $0xb2] sm:$0xff]
        %v2116 = vld [vmem:[%s1361 + $0xc2] sm:$0xff]
        %v2117 = vld [vmem:[%s1361 + $0xca] sm:$0xff]
        %v2118 = vld [vmem:[%s1361 + $0xda] sm:$0xff]
        %v2119 = vld [vmem:[%s1361 + $0xe2] sm:$0xff]
        %v2120 = vld [vmem:[%s1361 + $0xf2] sm:$0xff]
        %v2121 = vld [vmem:[%s1361 + $0xfa] sm:$0xff]
        %v2122 = vld [vmem:[%s1361 + $0x10a] sm:$0xff]
        %v2123 = vld [vmem:[%s1361 + $0x112] sm:$0xff]
        %v2124 = vld [vmem:[%s1361 + $0x122] sm:$0xff]
        %v2125 = vld [vmem:[%s1361 + $0x12a] sm:$0xff]
        %v2126 = vld [vmem:[%s1361 + $0x13a] sm:$0xff]
        %v2127 = vld [vmem:[%s1361 + $0x142] sm:$0xff]
        %v2128 = vld [vmem:[%s1361 + $0x152] sm:$0xff]
        %v2129 = vld [vmem:[%s1361 + $0x15a] sm:$0xff]
        %v2130 = vld [vmem:[%s1361 + $0x16a] sm:$0xff]
        %v2131 = vld [vmem:[%s1361 + $0x172] sm:$0xff]
        %v2132 = vld [vmem:[%s1 + $0x280] sm:$0xff]
        %v2133 = vld [vmem:[%s1 + $0x288] sm:$0xff]
        %v2134 = vld [vmem:[%s1 + $0x290] sm:$0xff]
        %v2135 = vld [vmem:[%s1 + $0x298] sm:$0xff]
        %v2136 = vld [vmem:[%s1 + $0x2a0] sm:$0xff]
        %v2137 = vld [vmem:[%s1 + $0x2a8] sm:$0xff]
        %v2138 = vld [vmem:[%s1 + $0x2b0] sm:$0xff]
        %v2139 = vld [vmem:[%s1 + $0x2b8] sm:$0xff]
        %v2140 = vld [vmem:[%s1 + $0x2c0] sm:$0xff]
        %v2141 = vld [vmem:[%s1 + $0x2c8] sm:$0xff]
        %v2142 = vld [vmem:[%s1 + $0x2d0] sm:$0xff]
        %v2143 = vld [vmem:[%s1 + $0x2d8] sm:$0xff]
        %v2144 = vld [vmem:[%s1 + $0x2e0] sm:$0xff]
        %v2145 = vld [vmem:[%s1 + $0x2e8] sm:$0xff]
        %v2146 = vld [vmem:[%s1 + $0x2f0] sm:$0xff]
        %v2147 = vld [vmem:[%s1 + $0x2f8] sm:$0xff]
        %v2148 = vld [vmem:[#allocation2] sm:$0xff]
        %v2149 = vld [vmem:[#allocation2 + $0x8] sm:$0xff]
        %v2150 = vld [vmem:[#allocation2 + $0x10] sm:$0xff]
        %v2151 = vld [vmem:[#allocation2 + $0x18] sm:$0xff]
        %v2152 = vld [vmem:[#allocation2 + $0x20] sm:$0xff]
        %v2153 = vld [vmem:[#allocation2 + $0x28] sm:$0xff]
        %v2154 = vld [vmem:[#allocation2 + $0x30] sm:$0xff]
        %v2155 = vld [vmem:[#allocation2 + $0x38] sm:$0xff]
        %v2156 = vld [vmem:[#allocation2 + $0x40] sm:$0xff]
        %v2157 = vld [vmem:[#allocation2 + $0x48] sm:$0xff]
        %v2158 = vld [vmem:[#allocation2 + $0x50] sm:$0xff]
        %v2159 = vld [vmem:[#allocation2 + $0x58] sm:$0xff]
        %v2160 = vld [vmem:[#allocation2 + $0x60] sm:$0xff]
        %v2161 = vld [vmem:[#allocation2 + $0x68] sm:$0xff]
        %v2162 = vld [vmem:[#allocation2 + $0x70] sm:$0xff]
        %v2163 = vld [vmem:[#allocation2 + $0x78] sm:$0xff]
        %v2164 = vld [vmem:[#allocation2 + $0x80] sm:$0xff]
        %v2165 = vld [vmem:[#allocation2 + $0x88] sm:$0xff]
        %v2166 = vld [vmem:[#allocation2 + $0x90] sm:$0xff]
        %v2167 = vld [vmem:[#allocation2 + $0x98] sm:$0xff]
        %v2168 = vld [vmem:[#allocation2 + $0xa0] sm:$0xff]
        %v2169 = vld [vmem:[#allocation2 + $0xa8] sm:$0xff]
        %v2170 = vld [vmem:[#allocation2 + $0xb0] sm:$0xff]
        %v2171 = vld [vmem:[#allocation2 + $0xb8] sm:$0xff]
        %v2172 = vld [vmem:[#allocation2 + $0xc0] sm:$0xff]
        %v2173 = vld [vmem:[#allocation2 + $0xc8] sm:$0xff]
        %v2174 = vld [vmem:[#allocation2 + $0xd0] sm:$0xff]
        %v2175 = vld [vmem:[#allocation2 + $0xd8] sm:$0xff]
        %v2176 = vld [vmem:[#allocation2 + $0xe0] sm:$0xff]
        %v2177 = vld [vmem:[#allocation2 + $0xe8] sm:$0xff]
        %v2178 = vld [vmem:[#allocation2 + $0xf0] sm:$0xff]
        %v2179 = vld [vmem:[#allocation2 + $0xf8] sm:$0xff]
        %2180 = vmatprep.subr.mxu0 0.0
        %2181 = vmatpush1.msra.mxu0 %v2147
        %2182 = vmatprep.subr.mxu0 0.0
        %2183 = vmatpush1.msra.mxu0 %v2146
        %2184 = vmatprep.subr.mxu0 0.0
        %2185 = vmatpush1.msra.mxu0 %v2145
        %2186 = vmatprep.subr.mxu0 0.0
        %2187 = vmatpush1.msra.mxu0 %v2144
        %2188 = vmatprep.subr.mxu0 0.0
        %2189 = vmatpush1.msra.mxu0 %v2143
        %2190 = vmatprep.subr.mxu0 0.0
        %2191 = vmatpush1.msra.mxu0 %v2142
        %2192 = vmatprep.subr.mxu0 0.0
        %2193 = vmatpush1.msra.mxu0 %v2141
        %2194 = vmatprep.subr.mxu0 0.0
        %2195 = vmatpush1.msra.mxu0 %v2140
        %2196 = vmatprep.subr.mxu0 0.0
        %2197 = vmatpush1.msra.mxu0 %v2139
        %2198 = vmatprep.subr.mxu0 0.0
        %2199 = vmatpush1.msra.mxu0 %v2138
        %2200 = vmatprep.subr.mxu0 0.0
        %2201 = vmatpush1.msra.mxu0 %v2137
        %2202 = vmatprep.subr.mxu0 0.0
        %2203 = vmatpush1.msra.mxu0 %v2136
        %2204 = vmatprep.subr.mxu0 0.0
        %2205 = vmatpush1.msra.mxu0 %v2135
        %2206 = vmatprep.subr.mxu0 0.0
        %2207 = vmatpush1.msra.mxu0 %v2134
        %2208 = vmatprep.subr.mxu0 0.0
        %2209 = vmatpush1.msra.mxu0 %v2133
        %2210 = vmatprep.subr.mxu0 0.0
        %2211 = vmatpush1.msra.mxu0 %v2132
        %2212 = vmatprep.subr.mxu0 0.0
        %2213 = vmatpush2.msra.mxu0 0.0
        %2214 = vmatprep.subr.mxu0 0.0
        %2215 = vmatpush2.msra.mxu0 0.0
        %2216 = vmatprep.subr.mxu0 0.0
        %2217 = vmatpush2.msra.mxu0 0.0
        %2218 = vmatprep.subr.mxu0 0.0
        %2219 = vmatpush2.msra.mxu0 0.0
        %2220 = vmatprep.subr.mxu0 0.0
        %2221 = vmatpush2.msra.mxu0 0.0
        %2222 = vmatprep.subr.mxu0 0.0
        %2223 = vmatpush2.msra.mxu0 0.0
        %2224 = vmatprep.subr.mxu0 0.0
        %2225 = vmatpush2.msra.mxu0 0.0
        %2226 = vmatprep.subr.mxu0 0.0
        %2227 = vmatpush2.msra.mxu0 0.0
        %2228 = vmatprep.subr.mxu0 0.0
        %2229 = vmatpush2.msra.mxu0 0.0
        %2230 = vmatprep.subr.mxu0 0.0
        %2231 = vmatpush2.msra.mxu0 0.0
        %2232 = vmatprep.subr.mxu0 0.0
        %2233 = vmatpush2.msra.mxu0 0.0
        %2234 = vmatprep.subr.mxu0 0.0
        %2235 = vmatpush2.msra.mxu0 0.0
        %2236 = vmatprep.subr.mxu0 0.0
        %2237 = vmatpush2.msra.mxu0 0.0
        %2238 = vmatprep.subr.mxu0 0.0
        %2239 = vmatpush2.msra.mxu0 0.0
        %2240 = vmatprep.subr.mxu0 0.0
        %2241 = vmatpush2.msra.mxu0 0.0
        %2242 = vmatprep.subr.mxu0 0.0
        %2243 = vmatpush2.msra.mxu0 0.0
        %2244 = vmatprep.mubr.f32.mxu0 0.0
        %2245 = vmatmul.mubr.f32.gmra.mxu0 %v2100
        %v2246 = vpop.f32.mrf.mxu0
        %v2247 = vadd.f32 0.0, %v2246
        %v2248 = vpop.f32.mrf.mxu0
        %2249 = vmatprep.mubr.f32.mxu0 0.0
        %2250 = vmatmul.mubr.f32.gmra.mxu0 %v2101
        %v2251 = vpop.f32.mrf.mxu0
        %v2252 = vadd.f32 0.0, %v2251
        %v2253 = vpop.f32.mrf.mxu0
        %2254 = vmatprep.mubr.f32.mxu0 0.0
        %2255 = vmatmul.mubr.f32.gmra.mxu0 %v2102
        %v2256 = vpop.f32.mrf.mxu0
        %v2257 = vadd.f32 0.0, %v2256
        %v2258 = vpop.f32.mrf.mxu0
        %2259 = vmatprep.mubr.f32.mxu0 0.0
        %2260 = vmatmul.mubr.f32.gmra.mxu0 %v2103
        %v2261 = vpop.f32.mrf.mxu0
        %v2262 = vadd.f32 0.0, %v2261
        %v2263 = vpop.f32.mrf.mxu0
        %2264 = vmatprep.mubr.f32.mxu0 0.0
        %2265 = vmatmul.mubr.f32.gmra.mxu0 %v2104
        %v2266 = vpop.f32.mrf.mxu0
        %v2267 = vadd.f32 0.0, %v2266
        %v2268 = vpop.f32.mrf.mxu0
        %2269 = vmatprep.mubr.f32.mxu0 0.0
        %2270 = vmatmul.mubr.f32.gmra.mxu0 %v2105
        %v2271 = vpop.f32.mrf.mxu0
        %v2272 = vadd.f32 0.0, %v2271
        %v2273 = vpop.f32.mrf.mxu0
        %2274 = vmatprep.mubr.f32.mxu0 0.0
        %2275 = vmatmul.mubr.f32.gmra.mxu0 %v2106
        %v2276 = vpop.f32.mrf.mxu0
        %v2277 = vadd.f32 0.0, %v2276
        %v2278 = vpop.f32.mrf.mxu0
        %2279 = vmatprep.mubr.f32.mxu0 0.0
        %2280 = vmatmul.mubr.f32.gmra.mxu0 %v2107
        %v2281 = vpop.f32.mrf.mxu0
        %v2282 = vadd.f32 0.0, %v2281
        %v2283 = vpop.f32.mrf.mxu0
        %2284 = vmatprep.mubr.f32.mxu0 0.0
        %2285 = vmatmul.mubr.f32.gmra.mxu0 %v2108
        %v2286 = vpop.f32.mrf.mxu0
        %v2287 = vadd.f32 0.0, %v2286
        %v2288 = vpop.f32.mrf.mxu0
        %2289 = vmatprep.mubr.f32.mxu0 0.0
        %2290 = vmatmul.mubr.f32.gmra.mxu0 %v2109
        %v2291 = vpop.f32.mrf.mxu0
        %v2292 = vadd.f32 0.0, %v2291
        %v2293 = vpop.f32.mrf.mxu0
        %2294 = vmatprep.mubr.f32.mxu0 0.0
        %2295 = vmatmul.mubr.f32.gmra.mxu0 %v2110
        %v2296 = vpop.f32.mrf.mxu0
        %v2297 = vadd.f32 0.0, %v2296
        %v2298 = vpop.f32.mrf.mxu0
        %2299 = vmatprep.mubr.f32.mxu0 0.0
        %2300 = vmatmul.mubr.f32.gmra.mxu0 %v2111
        %v2301 = vpop.f32.mrf.mxu0
        %v2302 = vadd.f32 0.0, %v2301
        %v2303 = vpop.f32.mrf.mxu0
        %2304 = vmatprep.mubr.f32.mxu0 0.0
        %2305 = vmatmul.mubr.f32.gmra.mxu0 %v2112
        %v2306 = vpop.f32.mrf.mxu0
        %v2307 = vadd.f32 0.0, %v2306
        %v2308 = vpop.f32.mrf.mxu0
        %2309 = vmatprep.mubr.f32.mxu0 0.0
        %2310 = vmatmul.mubr.f32.gmra.mxu0 %v2113
        %v2311 = vpop.f32.mrf.mxu0
        %v2312 = vadd.f32 0.0, %v2311
        %v2313 = vpop.f32.mrf.mxu0
        %2314 = vmatprep.mubr.f32.mxu0 0.0
        %2315 = vmatmul.mubr.f32.gmra.mxu0 %v2114
        %v2316 = vpop.f32.mrf.mxu0
        %v2317 = vadd.f32 0.0, %v2316
        %v2318 = vpop.f32.mrf.mxu0
        %2319 = vmatprep.mubr.f32.mxu0 0.0
        %2320 = vmatmul.mubr.f32.gmra.mxu0 %v2115
        %v2321 = vpop.f32.mrf.mxu0
        %v2322 = vadd.f32 0.0, %v2321
        %v2323 = vpop.f32.mrf.mxu0
        %2324 = vmatprep.mubr.f32.mxu0 0.0
        %2325 = vmatmul.mubr.f32.gmra.mxu0 %v2116
        %v2326 = vpop.f32.mrf.mxu0
        %v2327 = vadd.f32 0.0, %v2326
        %v2328 = vpop.f32.mrf.mxu0
        %2329 = vmatprep.mubr.f32.mxu0 0.0
        %2330 = vmatmul.mubr.f32.gmra.mxu0 %v2117
        %v2331 = vpop.f32.mrf.mxu0
        %v2332 = vadd.f32 0.0, %v2331
        %v2333 = vpop.f32.mrf.mxu0
        %2334 = vmatprep.mubr.f32.mxu0 0.0
        %2335 = vmatmul.mubr.f32.gmra.mxu0 %v2118
        %v2336 = vpop.f32.mrf.mxu0
        %v2337 = vadd.f32 0.0, %v2336
        %v2338 = vpop.f32.mrf.mxu0
        %2339 = vmatprep.mubr.f32.mxu0 0.0
        %2340 = vmatmul.mubr.f32.gmra.mxu0 %v2119
        %v2341 = vpop.f32.mrf.mxu0
        %v2342 = vadd.f32 0.0, %v2341
        %v2343 = vpop.f32.mrf.mxu0
        %2344 = vmatprep.mubr.f32.mxu0 0.0
        %2345 = vmatmul.mubr.f32.gmra.mxu0 %v2120
        %v2346 = vpop.f32.mrf.mxu0
        %v2347 = vadd.f32 0.0, %v2346
        %v2348 = vpop.f32.mrf.mxu0
        %2349 = vmatprep.mubr.f32.mxu0 0.0
        %2350 = vmatmul.mubr.f32.gmra.mxu0 %v2121
        %v2351 = vpop.f32.mrf.mxu0
        %v2352 = vadd.f32 0.0, %v2351
        %v2353 = vpop.f32.mrf.mxu0
        %2354 = vmatprep.mubr.f32.mxu0 0.0
        %2355 = vmatmul.mubr.f32.gmra.mxu0 %v2122
        %v2356 = vpop.f32.mrf.mxu0
        %v2357 = vadd.f32 0.0, %v2356
        %v2358 = vpop.f32.mrf.mxu0
        %2359 = vmatprep.mubr.f32.mxu0 0.0
        %2360 = vmatmul.mubr.f32.gmra.mxu0 %v2123
        %v2361 = vpop.f32.mrf.mxu0
        %v2362 = vadd.f32 0.0, %v2361
        %v2363 = vpop.f32.mrf.mxu0
        %2364 = vmatprep.mubr.f32.mxu0 0.0
        %2365 = vmatmul.mubr.f32.gmra.mxu0 %v2124
        %v2366 = vpop.f32.mrf.mxu0
        %v2367 = vadd.f32 0.0, %v2366
        %v2368 = vpop.f32.mrf.mxu0
        %2369 = vmatprep.mubr.f32.mxu0 0.0
        %2370 = vmatmul.mubr.f32.gmra.mxu0 %v2125
        %v2371 = vpop.f32.mrf.mxu0
        %v2372 = vadd.f32 0.0, %v2371
        %v2373 = vpop.f32.mrf.mxu0
        %2374 = vmatprep.mubr.f32.mxu0 0.0
        %2375 = vmatmul.mubr.f32.gmra.mxu0 %v2126
        %v2376 = vpop.f32.mrf.mxu0
        %v2377 = vadd.f32 0.0, %v2376
        %v2378 = vpop.f32.mrf.mxu0
        %2379 = vmatprep.mubr.f32.mxu0 0.0
        %2380 = vmatmul.mubr.f32.gmra.mxu0 %v2127
        %v2381 = vpop.f32.mrf.mxu0
        %v2382 = vadd.f32 0.0, %v2381
        %v2383 = vpop.f32.mrf.mxu0
        %2384 = vmatprep.mubr.f32.mxu0 0.0
        %2385 = vmatmul.mubr.f32.gmra.mxu0 %v2128
        %v2386 = vpop.f32.mrf.mxu0
        %v2387 = vadd.f32 0.0, %v2386
        %v2388 = vpop.f32.mrf.mxu0
        %2389 = vmatprep.mubr.f32.mxu0 0.0
        %2390 = vmatmul.mubr.f32.gmra.mxu0 %v2129
        %v2391 = vpop.f32.mrf.mxu0
        %v2392 = vadd.f32 0.0, %v2391
        %v2393 = vpop.f32.mrf.mxu0
        %2394 = vmatprep.mubr.f32.mxu0 0.0
        %2395 = vmatmul.mubr.f32.gmra.mxu0 %v2130
        %v2396 = vpop.f32.mrf.mxu0
        %v2397 = vadd.f32 0.0, %v2396
        %v2398 = vpop.f32.mrf.mxu0
        %2399 = vmatprep.mubr.f32.mxu0 0.0
        %2400 = vmatmul.mubr.f32.gmra.mxu0 %v2131
        %v2401 = vpop.f32.mrf.mxu0
        %v2402 = vadd.f32 0.0, %v2401
        %v2403 = vpop.f32.mrf.mxu0
        %2404 = vdwg.mxu0
        %v2405 = vadd.f32 %v2148, %v2247
        %v2406 = vadd.f32 %v2149, %v2252
        %v2407 = vadd.f32 %v2150, %v2257
        %v2408 = vadd.f32 %v2151, %v2262
        %v2409 = vadd.f32 %v2152, %v2267
        %v2410 = vadd.f32 %v2153, %v2272
        %v2411 = vadd.f32 %v2154, %v2277
        %v2412 = vadd.f32 %v2155, %v2282
        %v2413 = vadd.f32 %v2156, %v2287
        %v2414 = vadd.f32 %v2157, %v2292
        %v2415 = vadd.f32 %v2158, %v2297
        %v2416 = vadd.f32 %v2159, %v2302
        %v2417 = vadd.f32 %v2160, %v2307
        %v2418 = vadd.f32 %v2161, %v2312
        %v2419 = vadd.f32 %v2162, %v2317
        %v2420 = vadd.f32 %v2163, %v2322
        %v2421 = vadd.f32 %v2164, %v2327
        %v2422 = vadd.f32 %v2165, %v2332
        %v2423 = vadd.f32 %v2166, %v2337
        %v2424 = vadd.f32 %v2167, %v2342
        %v2425 = vadd.f32 %v2168, %v2347
        %v2426 = vadd.f32 %v2169, %v2352
        %v2427 = vadd.f32 %v2170, %v2357
        %v2428 = vadd.f32 %v2171, %v2362
        %v2429 = vadd.f32 %v2172, %v2367
        %v2430 = vadd.f32 %v2173, %v2372
        %v2431 = vadd.f32 %v2174, %v2377
        %v2432 = vadd.f32 %v2175, %v2382
        %v2433 = vadd.f32 %v2176, %v2387
        %v2434 = vadd.f32 %v2177, %v2392
        %v2435 = vadd.f32 %v2178, %v2397
        %v2436 = vadd.f32 %v2179, %v2402
        %2437 = vst [vmem:[#allocation2] sm:$0xff] %v2405
        %2438 = vst [vmem:[#allocation2 + $0x8] sm:$0xff] %v2406
        %2439 = vst [vmem:[#allocation2 + $0x10] sm:$0xff] %v2407
        %2440 = vst [vmem:[#allocation2 + $0x18] sm:$0xff] %v2408
        %2441 = vst [vmem:[#allocation2 + $0x20] sm:$0xff] %v2409
        %2442 = vst [vmem:[#allocation2 + $0x28] sm:$0xff] %v2410
        %2443 = vst [vmem:[#allocation2 + $0x30] sm:$0xff] %v2411
        %2444 = vst [vmem:[#allocation2 + $0x38] sm:$0xff] %v2412
        %2445 = vst [vmem:[#allocation2 + $0x40] sm:$0xff] %v2413
        %2446 = vst [vmem:[#allocation2 + $0x48] sm:$0xff] %v2414
        %2447 = vst [vmem:[#allocation2 + $0x50] sm:$0xff] %v2415
        %2448 = vst [vmem:[#allocation2 + $0x58] sm:$0xff] %v2416
        %2449 = vst [vmem:[#allocation2 + $0x60] sm:$0xff] %v2417
        %2450 = vst [vmem:[#allocation2 + $0x68] sm:$0xff] %v2418
        %2451 = vst [vmem:[#allocation2 + $0x70] sm:$0xff] %v2419
        %2452 = vst [vmem:[#allocation2 + $0x78] sm:$0xff] %v2420
        %2453 = vst [vmem:[#allocation2 + $0x80] sm:$0xff] %v2421
        %2454 = vst [vmem:[#allocation2 + $0x88] sm:$0xff] %v2422
        %2455 = vst [vmem:[#allocation2 + $0x90] sm:$0xff] %v2423
        %2456 = vst [vmem:[#allocation2 + $0x98] sm:$0xff] %v2424
        %2457 = vst [vmem:[#allocation2 + $0xa0] sm:$0xff] %v2425
        %2458 = vst [vmem:[#allocation2 + $0xa8] sm:$0xff] %v2426
        %2459 = vst [vmem:[#allocation2 + $0xb0] sm:$0xff] %v2427
        %2460 = vst [vmem:[#allocation2 + $0xb8] sm:$0xff] %v2428
        %2461 = vst [vmem:[#allocation2 + $0xc0] sm:$0xff] %v2429
        %2462 = vst [vmem:[#allocation2 + $0xc8] sm:$0xff] %v2430
        %2463 = vst [vmem:[#allocation2 + $0xd0] sm:$0xff] %v2431
        %2464 = vst [vmem:[#allocation2 + $0xd8] sm:$0xff] %v2432
        %2465 = vst [vmem:[#allocation2 + $0xe0] sm:$0xff] %v2433
        %2466 = vst [vmem:[#allocation2 + $0xe8] sm:$0xff] %v2434
        %2467 = vst [vmem:[#allocation2 + $0xf0] sm:$0xff] %v2435
        %2468 = vst [vmem:[#allocation2 + $0xf8] sm:$0xff] %v2436
        %s2469 = scalar_lea.vmem %s221, 48
        %v2470 = vld [vmem:[%s2469] sm:$0xff]
        %v2471 = vld [vmem:[%s2469 + $0x8] sm:$0xff]
        %v2472 = vld [vmem:[%s2469 + $0x18] sm:$0xff]
        %v2473 = vld [vmem:[%s2469 + $0x20] sm:$0xff]
        %v2474 = vld [vmem:[%s2469 + $0x30] sm:$0xff]
        %v2475 = vld [vmem:[%s2469 + $0x38] sm:$0xff]
        %v2476 = vld [vmem:[%s2469 + $0x48] sm:$0xff]
        %v2477 = vld [vmem:[%s2469 + $0x50] sm:$0xff]
        %v2478 = vld [vmem:[%s2469 + $0x60] sm:$0xff]
        %v2479 = vld [vmem:[%s2469 + $0x68] sm:$0xff]
        %v2480 = vld [vmem:[%s2469 + $0x78] sm:$0xff]
        %v2481 = vld [vmem:[%s2469 + $0x80] sm:$0xff]
        %v2482 = vld [vmem:[%s2469 + $0x90] sm:$0xff]
        %v2483 = vld [vmem:[%s2469 + $0x98] sm:$0xff]
        %v2484 = vld [vmem:[%s2469 + $0xa8] sm:$0xff]
        %v2485 = vld [vmem:[%s2469 + $0xb0] sm:$0xff]
        %v2486 = vld [vmem:[%s2469 + $0xc0] sm:$0xff]
        %v2487 = vld [vmem:[%s2469 + $0xc8] sm:$0xff]
        %v2488 = vld [vmem:[%s2469 + $0xd8] sm:$0xff]
        %v2489 = vld [vmem:[%s2469 + $0xe0] sm:$0xff]
        %v2490 = vld [vmem:[%s2469 + $0xf0] sm:$0xff]
        %v2491 = vld [vmem:[%s2469 + $0xf8] sm:$0xff]
        %v2492 = vld [vmem:[%s2469 + $0x108] sm:$0xff]
        %v2493 = vld [vmem:[%s2469 + $0x110] sm:$0xff]
        %v2494 = vld [vmem:[%s2469 + $0x120] sm:$0xff]
        %v2495 = vld [vmem:[%s2469 + $0x128] sm:$0xff]
        %v2496 = vld [vmem:[%s2469 + $0x138] sm:$0xff]
        %v2497 = vld [vmem:[%s2469 + $0x140] sm:$0xff]
        %v2498 = vld [vmem:[%s2469 + $0x150] sm:$0xff]
        %v2499 = vld [vmem:[%s2469 + $0x158] sm:$0xff]
        %v2500 = vld [vmem:[%s2469 + $0x168] sm:$0xff]
        %v2501 = vld [vmem:[%s2469 + $0x170] sm:$0xff]
        %v2502 = vld [vmem:[%s1 + $0x300] sm:$0xff]
        %v2503 = vld [vmem:[%s1 + $0x308] sm:$0xff]
        %v2504 = vld [vmem:[%s1 + $0x310] sm:$0xff]
        %v2505 = vld [vmem:[%s1 + $0x318] sm:$0xff]
        %v2506 = vld [vmem:[%s1 + $0x320] sm:$0xff]
        %v2507 = vld [vmem:[%s1 + $0x328] sm:$0xff]
        %v2508 = vld [vmem:[%s1 + $0x330] sm:$0xff]
        %v2509 = vld [vmem:[%s1 + $0x338] sm:$0xff]
        %v2510 = vld [vmem:[%s1 + $0x340] sm:$0xff]
        %v2511 = vld [vmem:[%s1 + $0x348] sm:$0xff]
        %v2512 = vld [vmem:[%s1 + $0x350] sm:$0xff]
        %v2513 = vld [vmem:[%s1 + $0x358] sm:$0xff]
        %v2514 = vld [vmem:[%s1 + $0x360] sm:$0xff]
        %v2515 = vld [vmem:[%s1 + $0x368] sm:$0xff]
        %v2516 = vld [vmem:[%s1 + $0x370] sm:$0xff]
        %v2517 = vld [vmem:[%s1 + $0x378] sm:$0xff]
        %v2518 = vld [vmem:[#allocation2] sm:$0xff]
        %v2519 = vld [vmem:[#allocation2 + $0x8] sm:$0xff]
        %v2520 = vld [vmem:[#allocation2 + $0x10] sm:$0xff]
        %v2521 = vld [vmem:[#allocation2 + $0x18] sm:$0xff]
        %v2522 = vld [vmem:[#allocation2 + $0x20] sm:$0xff]
        %v2523 = vld [vmem:[#allocation2 + $0x28] sm:$0xff]
        %v2524 = vld [vmem:[#allocation2 + $0x30] sm:$0xff]
        %v2525 = vld [vmem:[#allocation2 + $0x38] sm:$0xff]
        %v2526 = vld [vmem:[#allocation2 + $0x40] sm:$0xff]
        %v2527 = vld [vmem:[#allocation2 + $0x48] sm:$0xff]
        %v2528 = vld [vmem:[#allocation2 + $0x50] sm:$0xff]
        %v2529 = vld [vmem:[#allocation2 + $0x58] sm:$0xff]
        %v2530 = vld [vmem:[#allocation2 + $0x60] sm:$0xff]
        %v2531 = vld [vmem:[#allocation2 + $0x68] sm:$0xff]
        %v2532 = vld [vmem:[#allocation2 + $0x70] sm:$0xff]
        %v2533 = vld [vmem:[#allocation2 + $0x78] sm:$0xff]
        %v2534 = vld [vmem:[#allocation2 + $0x80] sm:$0xff]
        %v2535 = vld [vmem:[#allocation2 + $0x88] sm:$0xff]
        %v2536 = vld [vmem:[#allocation2 + $0x90] sm:$0xff]
        %v2537 = vld [vmem:[#allocation2 + $0x98] sm:$0xff]
        %v2538 = vld [vmem:[#allocation2 + $0xa0] sm:$0xff]
        %v2539 = vld [vmem:[#allocation2 + $0xa8] sm:$0xff]
        %v2540 = vld [vmem:[#allocation2 + $0xb0] sm:$0xff]
        %v2541 = vld [vmem:[#allocation2 + $0xb8] sm:$0xff]
        %v2542 = vld [vmem:[#allocation2 + $0xc0] sm:$0xff]
        %v2543 = vld [vmem:[#allocation2 + $0xc8] sm:$0xff]
        %v2544 = vld [vmem:[#allocation2 + $0xd0] sm:$0xff]
        %v2545 = vld [vmem:[#allocation2 + $0xd8] sm:$0xff]
        %v2546 = vld [vmem:[#allocation2 + $0xe0] sm:$0xff]
        %v2547 = vld [vmem:[#allocation2 + $0xe8] sm:$0xff]
        %v2548 = vld [vmem:[#allocation2 + $0xf0] sm:$0xff]
        %v2549 = vld [vmem:[#allocation2 + $0xf8] sm:$0xff]
        %2550 = vmatprep.subr.mxu0 0.0
        %2551 = vmatpush1.msra.mxu0 %v2517
        %2552 = vmatprep.subr.mxu0 0.0
        %2553 = vmatpush1.msra.mxu0 %v2516
        %2554 = vmatprep.subr.mxu0 0.0
        %2555 = vmatpush1.msra.mxu0 %v2515
        %2556 = vmatprep.subr.mxu0 0.0
        %2557 = vmatpush1.msra.mxu0 %v2514
        %2558 = vmatprep.subr.mxu0 0.0
        %2559 = vmatpush1.msra.mxu0 %v2513
        %2560 = vmatprep.subr.mxu0 0.0
        %2561 = vmatpush1.msra.mxu0 %v2512
        %2562 = vmatprep.subr.mxu0 0.0
        %2563 = vmatpush1.msra.mxu0 %v2511
        %2564 = vmatprep.subr.mxu0 0.0
        %2565 = vmatpush1.msra.mxu0 %v2510
        %2566 = vmatprep.subr.mxu0 0.0
        %2567 = vmatpush1.msra.mxu0 %v2509
        %2568 = vmatprep.subr.mxu0 0.0
        %2569 = vmatpush1.msra.mxu0 %v2508
        %2570 = vmatprep.subr.mxu0 0.0
        %2571 = vmatpush1.msra.mxu0 %v2507
        %2572 = vmatprep.subr.mxu0 0.0
        %2573 = vmatpush1.msra.mxu0 %v2506
        %2574 = vmatprep.subr.mxu0 0.0
        %2575 = vmatpush1.msra.mxu0 %v2505
        %2576 = vmatprep.subr.mxu0 0.0
        %2577 = vmatpush1.msra.mxu0 %v2504
        %2578 = vmatprep.subr.mxu0 0.0
        %2579 = vmatpush1.msra.mxu0 %v2503
        %2580 = vmatprep.subr.mxu0 0.0
        %2581 = vmatpush1.msra.mxu0 %v2502
        %2582 = vmatprep.subr.mxu0 0.0
        %2583 = vmatpush2.msra.mxu0 0.0
        %2584 = vmatprep.subr.mxu0 0.0
        %2585 = vmatpush2.msra.mxu0 0.0
        %2586 = vmatprep.subr.mxu0 0.0
        %2587 = vmatpush2.msra.mxu0 0.0
        %2588 = vmatprep.subr.mxu0 0.0
        %2589 = vmatpush2.msra.mxu0 0.0
        %2590 = vmatprep.subr.mxu0 0.0
        %2591 = vmatpush2.msra.mxu0 0.0
        %2592 = vmatprep.subr.mxu0 0.0
        %2593 = vmatpush2.msra.mxu0 0.0
        %2594 = vmatprep.subr.mxu0 0.0
        %2595 = vmatpush2.msra.mxu0 0.0
        %2596 = vmatprep.subr.mxu0 0.0
        %2597 = vmatpush2.msra.mxu0 0.0
        %2598 = vmatprep.subr.mxu0 0.0
        %2599 = vmatpush2.msra.mxu0 0.0
        %2600 = vmatprep.subr.mxu0 0.0
        %2601 = vmatpush2.msra.mxu0 0.0
        %2602 = vmatprep.subr.mxu0 0.0
        %2603 = vmatpush2.msra.mxu0 0.0
        %2604 = vmatprep.subr.mxu0 0.0
        %2605 = vmatpush2.msra.mxu0 0.0
        %2606 = vmatprep.subr.mxu0 0.0
        %2607 = vmatpush2.msra.mxu0 0.0
        %2608 = vmatprep.subr.mxu0 0.0
        %2609 = vmatpush2.msra.mxu0 0.0
        %2610 = vmatprep.subr.mxu0 0.0
        %2611 = vmatpush2.msra.mxu0 0.0
        %2612 = vmatprep.subr.mxu0 0.0
        %2613 = vmatpush2.msra.mxu0 0.0
        %2614 = vmatprep.mubr.f32.mxu0 0.0
        %2615 = vmatmul.mubr.f32.gmra.mxu0 %v2470
        %v2616 = vpop.f32.mrf.mxu0
        %v2617 = vadd.f32 0.0, %v2616
        %v2618 = vpop.f32.mrf.mxu0
        %2619 = vmatprep.mubr.f32.mxu0 0.0
        %2620 = vmatmul.mubr.f32.gmra.mxu0 %v2471
        %v2621 = vpop.f32.mrf.mxu0
        %v2622 = vadd.f32 0.0, %v2621
        %v2623 = vpop.f32.mrf.mxu0
        %2624 = vmatprep.mubr.f32.mxu0 0.0
        %2625 = vmatmul.mubr.f32.gmra.mxu0 %v2472
        %v2626 = vpop.f32.mrf.mxu0
        %v2627 = vadd.f32 0.0, %v2626
        %v2628 = vpop.f32.mrf.mxu0
        %2629 = vmatprep.mubr.f32.mxu0 0.0
        %2630 = vmatmul.mubr.f32.gmra.mxu0 %v2473
        %v2631 = vpop.f32.mrf.mxu0
        %v2632 = vadd.f32 0.0, %v2631
        %v2633 = vpop.f32.mrf.mxu0
        %2634 = vmatprep.mubr.f32.mxu0 0.0
        %2635 = vmatmul.mubr.f32.gmra.mxu0 %v2474
        %v2636 = vpop.f32.mrf.mxu0
        %v2637 = vadd.f32 0.0, %v2636
        %v2638 = vpop.f32.mrf.mxu0
        %2639 = vmatprep.mubr.f32.mxu0 0.0
        %2640 = vmatmul.mubr.f32.gmra.mxu0 %v2475
        %v2641 = vpop.f32.mrf.mxu0
        %v2642 = vadd.f32 0.0, %v2641
        %v2643 = vpop.f32.mrf.mxu0
        %2644 = vmatprep.mubr.f32.mxu0 0.0
        %2645 = vmatmul.mubr.f32.gmra.mxu0 %v2476
        %v2646 = vpop.f32.mrf.mxu0
        %v2647 = vadd.f32 0.0, %v2646
        %v2648 = vpop.f32.mrf.mxu0
        %2649 = vmatprep.mubr.f32.mxu0 0.0
        %2650 = vmatmul.mubr.f32.gmra.mxu0 %v2477
        %v2651 = vpop.f32.mrf.mxu0
        %v2652 = vadd.f32 0.0, %v2651
        %v2653 = vpop.f32.mrf.mxu0
        %2654 = vmatprep.mubr.f32.mxu0 0.0
        %2655 = vmatmul.mubr.f32.gmra.mxu0 %v2478
        %v2656 = vpop.f32.mrf.mxu0
        %v2657 = vadd.f32 0.0, %v2656
        %v2658 = vpop.f32.mrf.mxu0
        %2659 = vmatprep.mubr.f32.mxu0 0.0
        %2660 = vmatmul.mubr.f32.gmra.mxu0 %v2479
        %v2661 = vpop.f32.mrf.mxu0
        %v2662 = vadd.f32 0.0, %v2661
        %v2663 = vpop.f32.mrf.mxu0
        %2664 = vmatprep.mubr.f32.mxu0 0.0
        %2665 = vmatmul.mubr.f32.gmra.mxu0 %v2480
        %v2666 = vpop.f32.mrf.mxu0
        %v2667 = vadd.f32 0.0, %v2666
        %v2668 = vpop.f32.mrf.mxu0
        %2669 = vmatprep.mubr.f32.mxu0 0.0
        %2670 = vmatmul.mubr.f32.gmra.mxu0 %v2481
        %v2671 = vpop.f32.mrf.mxu0
        %v2672 = vadd.f32 0.0, %v2671
        %v2673 = vpop.f32.mrf.mxu0
        %2674 = vmatprep.mubr.f32.mxu0 0.0
        %2675 = vmatmul.mubr.f32.gmra.mxu0 %v2482
        %v2676 = vpop.f32.mrf.mxu0
        %v2677 = vadd.f32 0.0, %v2676
        %v2678 = vpop.f32.mrf.mxu0
        %2679 = vmatprep.mubr.f32.mxu0 0.0
        %2680 = vmatmul.mubr.f32.gmra.mxu0 %v2483
        %v2681 = vpop.f32.mrf.mxu0
        %v2682 = vadd.f32 0.0, %v2681
        %v2683 = vpop.f32.mrf.mxu0
        %2684 = vmatprep.mubr.f32.mxu0 0.0
        %2685 = vmatmul.mubr.f32.gmra.mxu0 %v2484
        %v2686 = vpop.f32.mrf.mxu0
        %v2687 = vadd.f32 0.0, %v2686
        %v2688 = vpop.f32.mrf.mxu0
        %2689 = vmatprep.mubr.f32.mxu0 0.0
        %2690 = vmatmul.mubr.f32.gmra.mxu0 %v2485
        %v2691 = vpop.f32.mrf.mxu0
        %v2692 = vadd.f32 0.0, %v2691
        %v2693 = vpop.f32.mrf.mxu0
        %2694 = vmatprep.mubr.f32.mxu0 0.0
        %2695 = vmatmul.mubr.f32.gmra.mxu0 %v2486
        %v2696 = vpop.f32.mrf.mxu0
        %v2697 = vadd.f32 0.0, %v2696
        %v2698 = vpop.f32.mrf.mxu0
        %2699 = vmatprep.mubr.f32.mxu0 0.0
        %2700 = vmatmul.mubr.f32.gmra.mxu0 %v2487
        %v2701 = vpop.f32.mrf.mxu0
        %v2702 = vadd.f32 0.0, %v2701
        %v2703 = vpop.f32.mrf.mxu0
        %2704 = vmatprep.mubr.f32.mxu0 0.0
        %2705 = vmatmul.mubr.f32.gmra.mxu0 %v2488
        %v2706 = vpop.f32.mrf.mxu0
        %v2707 = vadd.f32 0.0, %v2706
        %v2708 = vpop.f32.mrf.mxu0
        %2709 = vmatprep.mubr.f32.mxu0 0.0
        %2710 = vmatmul.mubr.f32.gmra.mxu0 %v2489
        %v2711 = vpop.f32.mrf.mxu0
        %v2712 = vadd.f32 0.0, %v2711
        %v2713 = vpop.f32.mrf.mxu0
        %2714 = vmatprep.mubr.f32.mxu0 0.0
        %2715 = vmatmul.mubr.f32.gmra.mxu0 %v2490
        %v2716 = vpop.f32.mrf.mxu0
        %v2717 = vadd.f32 0.0, %v2716
        %v2718 = vpop.f32.mrf.mxu0
        %2719 = vmatprep.mubr.f32.mxu0 0.0
        %2720 = vmatmul.mubr.f32.gmra.mxu0 %v2491
        %v2721 = vpop.f32.mrf.mxu0
        %v2722 = vadd.f32 0.0, %v2721
        %v2723 = vpop.f32.mrf.mxu0
        %2724 = vmatprep.mubr.f32.mxu0 0.0
        %2725 = vmatmul.mubr.f32.gmra.mxu0 %v2492
        %v2726 = vpop.f32.mrf.mxu0
        %v2727 = vadd.f32 0.0, %v2726
        %v2728 = vpop.f32.mrf.mxu0
        %2729 = vmatprep.mubr.f32.mxu0 0.0
        %2730 = vmatmul.mubr.f32.gmra.mxu0 %v2493
        %v2731 = vpop.f32.mrf.mxu0
        %v2732 = vadd.f32 0.0, %v2731
        %v2733 = vpop.f32.mrf.mxu0
        %2734 = vmatprep.mubr.f32.mxu0 0.0
        %2735 = vmatmul.mubr.f32.gmra.mxu0 %v2494
        %v2736 = vpop.f32.mrf.mxu0
        %v2737 = vadd.f32 0.0, %v2736
        %v2738 = vpop.f32.mrf.mxu0
        %2739 = vmatprep.mubr.f32.mxu0 0.0
        %2740 = vmatmul.mubr.f32.gmra.mxu0 %v2495
        %v2741 = vpop.f32.mrf.mxu0
        %v2742 = vadd.f32 0.0, %v2741
        %v2743 = vpop.f32.mrf.mxu0
        %2744 = vmatprep.mubr.f32.mxu0 0.0
        %2745 = vmatmul.mubr.f32.gmra.mxu0 %v2496
        %v2746 = vpop.f32.mrf.mxu0
        %v2747 = vadd.f32 0.0, %v2746
        %v2748 = vpop.f32.mrf.mxu0
        %2749 = vmatprep.mubr.f32.mxu0 0.0
        %2750 = vmatmul.mubr.f32.gmra.mxu0 %v2497
        %v2751 = vpop.f32.mrf.mxu0
        %v2752 = vadd.f32 0.0, %v2751
        %v2753 = vpop.f32.mrf.mxu0
        %2754 = vmatprep.mubr.f32.mxu0 0.0
        %2755 = vmatmul.mubr.f32.gmra.mxu0 %v2498
        %v2756 = vpop.f32.mrf.mxu0
        %v2757 = vadd.f32 0.0, %v2756
        %v2758 = vpop.f32.mrf.mxu0
        %2759 = vmatprep.mubr.f32.mxu0 0.0
        %2760 = vmatmul.mubr.f32.gmra.mxu0 %v2499
        %v2761 = vpop.f32.mrf.mxu0
        %v2762 = vadd.f32 0.0, %v2761
        %v2763 = vpop.f32.mrf.mxu0
        %2764 = vmatprep.mubr.f32.mxu0 0.0
        %2765 = vmatmul.mubr.f32.gmra.mxu0 %v2500
        %v2766 = vpop.f32.mrf.mxu0
        %v2767 = vadd.f32 0.0, %v2766
        %v2768 = vpop.f32.mrf.mxu0
        %2769 = vmatprep.mubr.f32.mxu0 0.0
        %2770 = vmatmul.mubr.f32.gmra.mxu0 %v2501
        %v2771 = vpop.f32.mrf.mxu0
        %v2772 = vadd.f32 0.0, %v2771
        %v2773 = vpop.f32.mrf.mxu0
        %2774 = vdwg.mxu0
        %v2775 = vadd.f32 %v2518, %v2617
        %v2776 = vadd.f32 %v2519, %v2622
        %v2777 = vadd.f32 %v2520, %v2627
        %v2778 = vadd.f32 %v2521, %v2632
        %v2779 = vadd.f32 %v2522, %v2637
        %v2780 = vadd.f32 %v2523, %v2642
        %v2781 = vadd.f32 %v2524, %v2647
        %v2782 = vadd.f32 %v2525, %v2652
        %v2783 = vadd.f32 %v2526, %v2657
        %v2784 = vadd.f32 %v2527, %v2662
        %v2785 = vadd.f32 %v2528, %v2667
        %v2786 = vadd.f32 %v2529, %v2672
        %v2787 = vadd.f32 %v2530, %v2677
        %v2788 = vadd.f32 %v2531, %v2682
        %v2789 = vadd.f32 %v2532, %v2687
        %v2790 = vadd.f32 %v2533, %v2692
        %v2791 = vadd.f32 %v2534, %v2697
        %v2792 = vadd.f32 %v2535, %v2702
        %v2793 = vadd.f32 %v2536, %v2707
        %v2794 = vadd.f32 %v2537, %v2712
        %v2795 = vadd.f32 %v2538, %v2717
        %v2796 = vadd.f32 %v2539, %v2722
        %v2797 = vadd.f32 %v2540, %v2727
        %v2798 = vadd.f32 %v2541, %v2732
        %v2799 = vadd.f32 %v2542, %v2737
        %v2800 = vadd.f32 %v2543, %v2742
        %v2801 = vadd.f32 %v2544, %v2747
        %v2802 = vadd.f32 %v2545, %v2752
        %v2803 = vadd.f32 %v2546, %v2757
        %v2804 = vadd.f32 %v2547, %v2762
        %v2805 = vadd.f32 %v2548, %v2767
        %v2806 = vadd.f32 %v2549, %v2772
        %2807 = vst [vmem:[#allocation2] sm:$0xff] %v2775
        %2808 = vst [vmem:[#allocation2 + $0x8] sm:$0xff] %v2776
        %2809 = vst [vmem:[#allocation2 + $0x10] sm:$0xff] %v2777
        %2810 = vst [vmem:[#allocation2 + $0x18] sm:$0xff] %v2778
        %2811 = vst [vmem:[#allocation2 + $0x20] sm:$0xff] %v2779
        %2812 = vst [vmem:[#allocation2 + $0x28] sm:$0xff] %v2780
        %2813 = vst [vmem:[#allocation2 + $0x30] sm:$0xff] %v2781
        %2814 = vst [vmem:[#allocation2 + $0x38] sm:$0xff] %v2782
        %2815 = vst [vmem:[#allocation2 + $0x40] sm:$0xff] %v2783
        %2816 = vst [vmem:[#allocation2 + $0x48] sm:$0xff] %v2784
        %2817 = vst [vmem:[#allocation2 + $0x50] sm:$0xff] %v2785
        %2818 = vst [vmem:[#allocation2 + $0x58] sm:$0xff] %v2786
        %2819 = vst [vmem:[#allocation2 + $0x60] sm:$0xff] %v2787
        %2820 = vst [vmem:[#allocation2 + $0x68] sm:$0xff] %v2788
        %2821 = vst [vmem:[#allocation2 + $0x70] sm:$0xff] %v2789
        %2822 = vst [vmem:[#allocation2 + $0x78] sm:$0xff] %v2790
        %2823 = vst [vmem:[#allocation2 + $0x80] sm:$0xff] %v2791
        %2824 = vst [vmem:[#allocation2 + $0x88] sm:$0xff] %v2792
        %2825 = vst [vmem:[#allocation2 + $0x90] sm:$0xff] %v2793
        %2826 = vst [vmem:[#allocation2 + $0x98] sm:$0xff] %v2794
        %2827 = vst [vmem:[#allocation2 + $0xa0] sm:$0xff] %v2795
        %2828 = vst [vmem:[#allocation2 + $0xa8] sm:$0xff] %v2796
        %2829 = vst [vmem:[#allocation2 + $0xb0] sm:$0xff] %v2797
        %2830 = vst [vmem:[#allocation2 + $0xb8] sm:$0xff] %v2798
        %2831 = vst [vmem:[#allocation2 + $0xc0] sm:$0xff] %v2799
        %2832 = vst [vmem:[#allocation2 + $0xc8] sm:$0xff] %v2800
        %2833 = vst [vmem:[#allocation2 + $0xd0] sm:$0xff] %v2801
        %2834 = vst [vmem:[#allocation2 + $0xd8] sm:$0xff] %v2802
        %2835 = vst [vmem:[#allocation2 + $0xe0] sm:$0xff] %v2803
        %2836 = vst [vmem:[#allocation2 + $0xe8] sm:$0xff] %v2804
        %2837 = vst [vmem:[#allocation2 + $0xf0] sm:$0xff] %v2805
        %2838 = vst [vmem:[#allocation2 + $0xf8] sm:$0xff] %v2806
        %v2839 = vld [vmem:[%s2469 + $0x1] sm:$0xff]
        %v2840 = vld [vmem:[%s2469 + $0x9] sm:$0xff]
        %v2841 = vld [vmem:[%s2469 + $0x19] sm:$0xff]
        %v2842 = vld [vmem:[%s2469 + $0x21] sm:$0xff]
        %v2843 = vld [vmem:[%s2469 + $0x31] sm:$0xff]
        %v2844 = vld [vmem:[%s2469 + $0x39] sm:$0xff]
        %v2845 = vld [vmem:[%s2469 + $0x49] sm:$0xff]
        %v2846 = vld [vmem:[%s2469 + $0x51] sm:$0xff]
        %v2847 = vld [vmem:[%s2469 + $0x61] sm:$0xff]
        %v2848 = vld [vmem:[%s2469 + $0x69] sm:$0xff]
        %v2849 = vld [vmem:[%s2469 + $0x79] sm:$0xff]
        %v2850 = vld [vmem:[%s2469 + $0x81] sm:$0xff]
        %v2851 = vld [vmem:[%s2469 + $0x91] sm:$0xff]
        %v2852 = vld [vmem:[%s2469 + $0x99] sm:$0xff]
        %v2853 = vld [vmem:[%s2469 + $0xa9] sm:$0xff]
        %v2854 = vld [vmem:[%s2469 + $0xb1] sm:$0xff]
        %v2855 = vld [vmem:[%s2469 + $0xc1] sm:$0xff]
        %v2856 = vld [vmem:[%s2469 + $0xc9] sm:$0xff]
        %v2857 = vld [vmem:[%s2469 + $0xd9] sm:$0xff]
        %v2858 = vld [vmem:[%s2469 + $0xe1] sm:$0xff]
        %v2859 = vld [vmem:[%s2469 + $0xf1] sm:$0xff]
        %v2860 = vld [vmem:[%s2469 + $0xf9] sm:$0xff]
        %v2861 = vld [vmem:[%s2469 + $0x109] sm:$0xff]
        %v2862 = vld [vmem:[%s2469 + $0x111] sm:$0xff]
        %v2863 = vld [vmem:[%s2469 + $0x121] sm:$0xff]
        %v2864 = vld [vmem:[%s2469 + $0x129] sm:$0xff]
        %v2865 = vld [vmem:[%s2469 + $0x139] sm:$0xff]
        %v2866 = vld [vmem:[%s2469 + $0x141] sm:$0xff]
        %v2867 = vld [vmem:[%s2469 + $0x151] sm:$0xff]
        %v2868 = vld [vmem:[%s2469 + $0x159] sm:$0xff]
        %v2869 = vld [vmem:[%s2469 + $0x169] sm:$0xff]
        %v2870 = vld [vmem:[%s2469 + $0x171] sm:$0xff]
        %v2871 = vld [vmem:[%s1 + $0x380] sm:$0xff]
        %v2872 = vld [vmem:[%s1 + $0x388] sm:$0xff]
        %v2873 = vld [vmem:[%s1 + $0x390] sm:$0xff]
        %v2874 = vld [vmem:[%s1 + $0x398] sm:$0xff]
        %v2875 = vld [vmem:[%s1 + $0x3a0] sm:$0xff]
        %v2876 = vld [vmem:[%s1 + $0x3a8] sm:$0xff]
        %v2877 = vld [vmem:[%s1 + $0x3b0] sm:$0xff]
        %v2878 = vld [vmem:[%s1 + $0x3b8] sm:$0xff]
        %v2879 = vld [vmem:[%s1 + $0x3c0] sm:$0xff]
        %v2880 = vld [vmem:[%s1 + $0x3c8] sm:$0xff]
        %v2881 = vld [vmem:[%s1 + $0x3d0] sm:$0xff]
        %v2882 = vld [vmem:[%s1 + $0x3d8] sm:$0xff]
        %v2883 = vld [vmem:[%s1 + $0x3e0] sm:$0xff]
        %v2884 = vld [vmem:[%s1 + $0x3e8] sm:$0xff]
        %v2885 = vld [vmem:[%s1 + $0x3f0] sm:$0xff]
        %v2886 = vld [vmem:[%s1 + $0x3f8] sm:$0xff]
        %v2887 = vld [vmem:[#allocation2] sm:$0xff]
        %v2888 = vld [vmem:[#allocation2 + $0x8] sm:$0xff]
        %v2889 = vld [vmem:[#allocation2 + $0x10] sm:$0xff]
        %v2890 = vld [vmem:[#allocation2 + $0x18] sm:$0xff]
        %v2891 = vld [vmem:[#allocation2 + $0x20] sm:$0xff]
        %v2892 = vld [vmem:[#allocation2 + $0x28] sm:$0xff]
        %v2893 = vld [vmem:[#allocation2 + $0x30] sm:$0xff]
        %v2894 = vld [vmem:[#allocation2 + $0x38] sm:$0xff]
        %v2895 = vld [vmem:[#allocation2 + $0x40] sm:$0xff]
        %v2896 = vld [vmem:[#allocation2 + $0x48] sm:$0xff]
        %v2897 = vld [vmem:[#allocation2 + $0x50] sm:$0xff]
        %v2898 = vld [vmem:[#allocation2 + $0x58] sm:$0xff]
        %v2899 = vld [vmem:[#allocation2 + $0x60] sm:$0xff]
        %v2900 = vld [vmem:[#allocation2 + $0x68] sm:$0xff]
        %v2901 = vld [vmem:[#allocation2 + $0x70] sm:$0xff]
        %v2902 = vld [vmem:[#allocation2 + $0x78] sm:$0xff]
        %v2903 = vld [vmem:[#allocation2 + $0x80] sm:$0xff]
        %v2904 = vld [vmem:[#allocation2 + $0x88] sm:$0xff]
        %v2905 = vld [vmem:[#allocation2 + $0x90] sm:$0xff]
        %v2906 = vld [vmem:[#allocation2 + $0x98] sm:$0xff]
        %v2907 = vld [vmem:[#allocation2 + $0xa0] sm:$0xff]
        %v2908 = vld [vmem:[#allocation2 + $0xa8] sm:$0xff]
        %v2909 = vld [vmem:[#allocation2 + $0xb0] sm:$0xff]
        %v2910 = vld [vmem:[#allocation2 + $0xb8] sm:$0xff]
        %v2911 = vld [vmem:[#allocation2 + $0xc0] sm:$0xff]
        %v2912 = vld [vmem:[#allocation2 + $0xc8] sm:$0xff]
        %v2913 = vld [vmem:[#allocation2 + $0xd0] sm:$0xff]
        %v2914 = vld [vmem:[#allocation2 + $0xd8] sm:$0xff]
        %v2915 = vld [vmem:[#allocation2 + $0xe0] sm:$0xff]
        %v2916 = vld [vmem:[#allocation2 + $0xe8] sm:$0xff]
        %v2917 = vld [vmem:[#allocation2 + $0xf0] sm:$0xff]
        %v2918 = vld [vmem:[#allocation2 + $0xf8] sm:$0xff]
        %2919 = vmatprep.subr.mxu0 0.0
        %2920 = vmatpush1.msra.mxu0 %v2886
        %2921 = vmatprep.subr.mxu0 0.0
        %2922 = vmatpush1.msra.mxu0 %v2885
        %2923 = vmatprep.subr.mxu0 0.0
        %2924 = vmatpush1.msra.mxu0 %v2884
        %2925 = vmatprep.subr.mxu0 0.0
        %2926 = vmatpush1.msra.mxu0 %v2883
        %2927 = vmatprep.subr.mxu0 0.0
        %2928 = vmatpush1.msra.mxu0 %v2882
        %2929 = vmatprep.subr.mxu0 0.0
        %2930 = vmatpush1.msra.mxu0 %v2881
        %2931 = vmatprep.subr.mxu0 0.0
        %2932 = vmatpush1.msra.mxu0 %v2880
        %2933 = vmatprep.subr.mxu0 0.0
        %2934 = vmatpush1.msra.mxu0 %v2879
        %2935 = vmatprep.subr.mxu0 0.0
        %2936 = vmatpush1.msra.mxu0 %v2878
        %2937 = vmatprep.subr.mxu0 0.0
        %2938 = vmatpush1.msra.mxu0 %v2877
        %2939 = vmatprep.subr.mxu0 0.0
        %2940 = vmatpush1.msra.mxu0 %v2876
        %2941 = vmatprep.subr.mxu0 0.0
        %2942 = vmatpush1.msra.mxu0 %v2875
        %2943 = vmatprep.subr.mxu0 0.0
        %2944 = vmatpush1.msra.mxu0 %v2874
        %2945 = vmatprep.subr.mxu0 0.0
        %2946 = vmatpush1.msra.mxu0 %v2873
        %2947 = vmatprep.subr.mxu0 0.0
        %2948 = vmatpush1.msra.mxu0 %v2872
        %2949 = vmatprep.subr.mxu0 0.0
        %2950 = vmatpush1.msra.mxu0 %v2871
        %2951 = vmatprep.subr.mxu0 0.0
        %2952 = vmatpush2.msra.mxu0 0.0
        %2953 = vmatprep.subr.mxu0 0.0
        %2954 = vmatpush2.msra.mxu0 0.0
        %2955 = vmatprep.subr.mxu0 0.0
        %2956 = vmatpush2.msra.mxu0 0.0
        %2957 = vmatprep.subr.mxu0 0.0
        %2958 = vmatpush2.msra.mxu0 0.0
        %2959 = vmatprep.subr.mxu0 0.0
        %2960 = vmatpush2.msra.mxu0 0.0
        %2961 = vmatprep.subr.mxu0 0.0
        %2962 = vmatpush2.msra.mxu0 0.0
        %2963 = vmatprep.subr.mxu0 0.0
        %2964 = vmatpush2.msra.mxu0 0.0
        %2965 = vmatprep.subr.mxu0 0.0
        %2966 = vmatpush2.msra.mxu0 0.0
        %2967 = vmatprep.subr.mxu0 0.0
        %2968 = vmatpush2.msra.mxu0 0.0
        %2969 = vmatprep.subr.mxu0 0.0
        %2970 = vmatpush2.msra.mxu0 0.0
        %2971 = vmatprep.subr.mxu0 0.0
        %2972 = vmatpush2.msra.mxu0 0.0
        %2973 = vmatprep.subr.mxu0 0.0
        %2974 = vmatpush2.msra.mxu0 0.0
        %2975 = vmatprep.subr.mxu0 0.0
        %2976 = vmatpush2.msra.mxu0 0.0
        %2977 = vmatprep.subr.mxu0 0.0
        %2978 = vmatpush2.msra.mxu0 0.0
        %2979 = vmatprep.subr.mxu0 0.0
        %2980 = vmatpush2.msra.mxu0 0.0
        %2981 = vmatprep.subr.mxu0 0.0
        %2982 = vmatpush2.msra.mxu0 0.0
        %2983 = vmatprep.mubr.f32.mxu0 0.0
        %2984 = vmatmul.mubr.f32.gmra.mxu0 %v2839
        %v2985 = vpop.f32.mrf.mxu0
        %v2986 = vadd.f32 0.0, %v2985
        %v2987 = vpop.f32.mrf.mxu0
        %2988 = vmatprep.mubr.f32.mxu0 0.0
        %2989 = vmatmul.mubr.f32.gmra.mxu0 %v2840
        %v2990 = vpop.f32.mrf.mxu0
        %v2991 = vadd.f32 0.0, %v2990
        %v2992 = vpop.f32.mrf.mxu0
        %2993 = vmatprep.mubr.f32.mxu0 0.0
        %2994 = vmatmul.mubr.f32.gmra.mxu0 %v2841
        %v2995 = vpop.f32.mrf.mxu0
        %v2996 = vadd.f32 0.0, %v2995
        %v2997 = vpop.f32.mrf.mxu0
        %2998 = vmatprep.mubr.f32.mxu0 0.0
        %2999 = vmatmul.mubr.f32.gmra.mxu0 %v2842
        %v3000 = vpop.f32.mrf.mxu0
        %v3001 = vadd.f32 0.0, %v3000
        %v3002 = vpop.f32.mrf.mxu0
        %3003 = vmatprep.mubr.f32.mxu0 0.0
        %3004 = vmatmul.mubr.f32.gmra.mxu0 %v2843
        %v3005 = vpop.f32.mrf.mxu0
        %v3006 = vadd.f32 0.0, %v3005
        %v3007 = vpop.f32.mrf.mxu0
        %3008 = vmatprep.mubr.f32.mxu0 0.0
        %3009 = vmatmul.mubr.f32.gmra.mxu0 %v2844
        %v3010 = vpop.f32.mrf.mxu0
        %v3011 = vadd.f32 0.0, %v3010
        %v3012 = vpop.f32.mrf.mxu0
        %3013 = vmatprep.mubr.f32.mxu0 0.0
        %3014 = vmatmul.mubr.f32.gmra.mxu0 %v2845
        %v3015 = vpop.f32.mrf.mxu0
        %v3016 = vadd.f32 0.0, %v3015
        %v3017 = vpop.f32.mrf.mxu0
        %3018 = vmatprep.mubr.f32.mxu0 0.0
        %3019 = vmatmul.mubr.f32.gmra.mxu0 %v2846
        %v3020 = vpop.f32.mrf.mxu0
        %v3021 = vadd.f32 0.0, %v3020
        %v3022 = vpop.f32.mrf.mxu0
        %3023 = vmatprep.mubr.f32.mxu0 0.0
        %3024 = vmatmul.mubr.f32.gmra.mxu0 %v2847
        %v3025 = vpop.f32.mrf.mxu0
        %v3026 = vadd.f32 0.0, %v3025
        %v3027 = vpop.f32.mrf.mxu0
        %3028 = vmatprep.mubr.f32.mxu0 0.0
        %3029 = vmatmul.mubr.f32.gmra.mxu0 %v2848
        %v3030 = vpop.f32.mrf.mxu0
        %v3031 = vadd.f32 0.0, %v3030
        %v3032 = vpop.f32.mrf.mxu0
        %3033 = vmatprep.mubr.f32.mxu0 0.0
        %3034 = vmatmul.mubr.f32.gmra.mxu0 %v2849
        %v3035 = vpop.f32.mrf.mxu0
        %v3036 = vadd.f32 0.0, %v3035
        %v3037 = vpop.f32.mrf.mxu0
        %3038 = vmatprep.mubr.f32.mxu0 0.0
        %3039 = vmatmul.mubr.f32.gmra.mxu0 %v2850
        %v3040 = vpop.f32.mrf.mxu0
        %v3041 = vadd.f32 0.0, %v3040
        %v3042 = vpop.f32.mrf.mxu0
        %3043 = vmatprep.mubr.f32.mxu0 0.0
        %3044 = vmatmul.mubr.f32.gmra.mxu0 %v2851
        %v3045 = vpop.f32.mrf.mxu0
        %v3046 = vadd.f32 0.0, %v3045
        %v3047 = vpop.f32.mrf.mxu0
        %3048 = vmatprep.mubr.f32.mxu0 0.0
        %3049 = vmatmul.mubr.f32.gmra.mxu0 %v2852
        %v3050 = vpop.f32.mrf.mxu0
        %v3051 = vadd.f32 0.0, %v3050
        %v3052 = vpop.f32.mrf.mxu0
        %3053 = vmatprep.mubr.f32.mxu0 0.0
        %3054 = vmatmul.mubr.f32.gmra.mxu0 %v2853
        %v3055 = vpop.f32.mrf.mxu0
        %v3056 = vadd.f32 0.0, %v3055
        %v3057 = vpop.f32.mrf.mxu0
        %3058 = vmatprep.mubr.f32.mxu0 0.0
        %3059 = vmatmul.mubr.f32.gmra.mxu0 %v2854
        %v3060 = vpop.f32.mrf.mxu0
        %v3061 = vadd.f32 0.0, %v3060
        %v3062 = vpop.f32.mrf.mxu0
        %3063 = vmatprep.mubr.f32.mxu0 0.0
        %3064 = vmatmul.mubr.f32.gmra.mxu0 %v2855
        %v3065 = vpop.f32.mrf.mxu0
        %v3066 = vadd.f32 0.0, %v3065
        %v3067 = vpop.f32.mrf.mxu0
        %3068 = vmatprep.mubr.f32.mxu0 0.0
        %3069 = vmatmul.mubr.f32.gmra.mxu0 %v2856
        %v3070 = vpop.f32.mrf.mxu0
        %v3071 = vadd.f32 0.0, %v3070
        %v3072 = vpop.f32.mrf.mxu0
        %3073 = vmatprep.mubr.f32.mxu0 0.0
        %3074 = vmatmul.mubr.f32.gmra.mxu0 %v2857
        %v3075 = vpop.f32.mrf.mxu0
        %v3076 = vadd.f32 0.0, %v3075
        %v3077 = vpop.f32.mrf.mxu0
        %3078 = vmatprep.mubr.f32.mxu0 0.0
        %3079 = vmatmul.mubr.f32.gmra.mxu0 %v2858
        %v3080 = vpop.f32.mrf.mxu0
        %v3081 = vadd.f32 0.0, %v3080
        %v3082 = vpop.f32.mrf.mxu0
        %3083 = vmatprep.mubr.f32.mxu0 0.0
        %3084 = vmatmul.mubr.f32.gmra.mxu0 %v2859
        %v3085 = vpop.f32.mrf.mxu0
        %v3086 = vadd.f32 0.0, %v3085
        %v3087 = vpop.f32.mrf.mxu0
        %3088 = vmatprep.mubr.f32.mxu0 0.0
        %3089 = vmatmul.mubr.f32.gmra.mxu0 %v2860
        %v3090 = vpop.f32.mrf.mxu0
        %v3091 = vadd.f32 0.0, %v3090
        %v3092 = vpop.f32.mrf.mxu0
        %3093 = vmatprep.mubr.f32.mxu0 0.0
        %3094 = vmatmul.mubr.f32.gmra.mxu0 %v2861
        %v3095 = vpop.f32.mrf.mxu0
        %v3096 = vadd.f32 0.0, %v3095
        %v3097 = vpop.f32.mrf.mxu0
        %3098 = vmatprep.mubr.f32.mxu0 0.0
        %3099 = vmatmul.mubr.f32.gmra.mxu0 %v2862
        %v3100 = vpop.f32.mrf.mxu0
        %v3101 = vadd.f32 0.0, %v3100
        %v3102 = vpop.f32.mrf.mxu0
        %3103 = vmatprep.mubr.f32.mxu0 0.0
        %3104 = vmatmul.mubr.f32.gmra.mxu0 %v2863
        %v3105 = vpop.f32.mrf.mxu0
        %v3106 = vadd.f32 0.0, %v3105
        %v3107 = vpop.f32.mrf.mxu0
        %3108 = vmatprep.mubr.f32.mxu0 0.0
        %3109 = vmatmul.mubr.f32.gmra.mxu0 %v2864
        %v3110 = vpop.f32.mrf.mxu0
        %v3111 = vadd.f32 0.0, %v3110
        %v3112 = vpop.f32.mrf.mxu0
        %3113 = vmatprep.mubr.f32.mxu0 0.0
        %3114 = vmatmul.mubr.f32.gmra.mxu0 %v2865
        %v3115 = vpop.f32.mrf.mxu0
        %v3116 = vadd.f32 0.0, %v3115
        %v3117 = vpop.f32.mrf.mxu0
        %3118 = vmatprep.mubr.f32.mxu0 0.0
        %3119 = vmatmul.mubr.f32.gmra.mxu0 %v2866
        %v3120 = vpop.f32.mrf.mxu0
        %v3121 = vadd.f32 0.0, %v3120
        %v3122 = vpop.f32.mrf.mxu0
        %3123 = vmatprep.mubr.f32.mxu0 0.0
        %3124 = vmatmul.mubr.f32.gmra.mxu0 %v2867
        %v3125 = vpop.f32.mrf.mxu0
        %v3126 = vadd.f32 0.0, %v3125
        %v3127 = vpop.f32.mrf.mxu0
        %3128 = vmatprep.mubr.f32.mxu0 0.0
        %3129 = vmatmul.mubr.f32.gmra.mxu0 %v2868
        %v3130 = vpop.f32.mrf.mxu0
        %v3131 = vadd.f32 0.0, %v3130
        %v3132 = vpop.f32.mrf.mxu0
        %3133 = vmatprep.mubr.f32.mxu0 0.0
        %3134 = vmatmul.mubr.f32.gmra.mxu0 %v2869
        %v3135 = vpop.f32.mrf.mxu0
        %v3136 = vadd.f32 0.0, %v3135
        %v3137 = vpop.f32.mrf.mxu0
        %3138 = vmatprep.mubr.f32.mxu0 0.0
        %3139 = vmatmul.mubr.f32.gmra.mxu0 %v2870
        %v3140 = vpop.f32.mrf.mxu0
        %v3141 = vadd.f32 0.0, %v3140
        %v3142 = vpop.f32.mrf.mxu0
        %3143 = vdwg.mxu0
        %v3144 = vadd.f32 %v2887, %v2986
        %v3145 = vadd.f32 %v2888, %v2991
        %v3146 = vadd.f32 %v2889, %v2996
        %v3147 = vadd.f32 %v2890, %v3001
        %v3148 = vadd.f32 %v2891, %v3006
        %v3149 = vadd.f32 %v2892, %v3011
        %v3150 = vadd.f32 %v2893, %v3016
        %v3151 = vadd.f32 %v2894, %v3021
        %v3152 = vadd.f32 %v2895, %v3026
        %v3153 = vadd.f32 %v2896, %v3031
        %v3154 = vadd.f32 %v2897, %v3036
        %v3155 = vadd.f32 %v2898, %v3041
        %v3156 = vadd.f32 %v2899, %v3046
        %v3157 = vadd.f32 %v2900, %v3051
        %v3158 = vadd.f32 %v2901, %v3056
        %v3159 = vadd.f32 %v2902, %v3061
        %v3160 = vadd.f32 %v2903, %v3066
        %v3161 = vadd.f32 %v2904, %v3071
        %v3162 = vadd.f32 %v2905, %v3076
        %v3163 = vadd.f32 %v2906, %v3081
        %v3164 = vadd.f32 %v2907, %v3086
        %v3165 = vadd.f32 %v2908, %v3091
        %v3166 = vadd.f32 %v2909, %v3096
        %v3167 = vadd.f32 %v2910, %v3101
        %v3168 = vadd.f32 %v2911, %v3106
        %v3169 = vadd.f32 %v2912, %v3111
        %v3170 = vadd.f32 %v2913, %v3116
        %v3171 = vadd.f32 %v2914, %v3121
        %v3172 = vadd.f32 %v2915, %v3126
        %v3173 = vadd.f32 %v2916, %v3131
        %v3174 = vadd.f32 %v2917, %v3136
        %v3175 = vadd.f32 %v2918, %v3141
        %3176 = vst [vmem:[#allocation2] sm:$0xff] %v3144
        %3177 = vst [vmem:[#allocation2 + $0x8] sm:$0xff] %v3145
        %3178 = vst [vmem:[#allocation2 + $0x10] sm:$0xff] %v3146
        %3179 = vst [vmem:[#allocation2 + $0x18] sm:$0xff] %v3147
        %3180 = vst [vmem:[#allocation2 + $0x20] sm:$0xff] %v3148
        %3181 = vst [vmem:[#allocation2 + $0x28] sm:$0xff] %v3149
        %3182 = vst [vmem:[#allocation2 + $0x30] sm:$0xff] %v3150
        %3183 = vst [vmem:[#allocation2 + $0x38] sm:$0xff] %v3151
        %3184 = vst [vmem:[#allocation2 + $0x40] sm:$0xff] %v3152
        %3185 = vst [vmem:[#allocation2 + $0x48] sm:$0xff] %v3153
        %3186 = vst [vmem:[#allocation2 + $0x50] sm:$0xff] %v3154
        %3187 = vst [vmem:[#allocation2 + $0x58] sm:$0xff] %v3155
        %3188 = vst [vmem:[#allocation2 + $0x60] sm:$0xff] %v3156
        %3189 = vst [vmem:[#allocation2 + $0x68] sm:$0xff] %v3157
        %3190 = vst [vmem:[#allocation2 + $0x70] sm:$0xff] %v3158
        %3191 = vst [vmem:[#allocation2 + $0x78] sm:$0xff] %v3159
        %3192 = vst [vmem:[#allocation2 + $0x80] sm:$0xff] %v3160
        %3193 = vst [vmem:[#allocation2 + $0x88] sm:$0xff] %v3161
        %3194 = vst [vmem:[#allocation2 + $0x90] sm:$0xff] %v3162
        %3195 = vst [vmem:[#allocation2 + $0x98] sm:$0xff] %v3163
        %3196 = vst [vmem:[#allocation2 + $0xa0] sm:$0xff] %v3164
        %3197 = vst [vmem:[#allocation2 + $0xa8] sm:$0xff] %v3165
        %3198 = vst [vmem:[#allocation2 + $0xb0] sm:$0xff] %v3166
        %3199 = vst [vmem:[#allocation2 + $0xb8] sm:$0xff] %v3167
        %3200 = vst [vmem:[#allocation2 + $0xc0] sm:$0xff] %v3168
        %3201 = vst [vmem:[#allocation2 + $0xc8] sm:$0xff] %v3169
        %3202 = vst [vmem:[#allocation2 + $0xd0] sm:$0xff] %v3170
        %3203 = vst [vmem:[#allocation2 + $0xd8] sm:$0xff] %v3171
        %3204 = vst [vmem:[#allocation2 + $0xe0] sm:$0xff] %v3172
        %3205 = vst [vmem:[#allocation2 + $0xe8] sm:$0xff] %v3173
        %3206 = vst [vmem:[#allocation2 + $0xf0] sm:$0xff] %v3174
        %3207 = vst [vmem:[#allocation2 + $0xf8] sm:$0xff] %v3175
        %v3208 = vld [vmem:[%s2469 + $0x2] sm:$0xff]
        %v3209 = vld [vmem:[%s2469 + $0xa] sm:$0xff]
        %v3210 = vld [vmem:[%s2469 + $0x1a] sm:$0xff]
        %v3211 = vld [vmem:[%s2469 + $0x22] sm:$0xff]
        %v3212 = vld [vmem:[%s2469 + $0x32] sm:$0xff]
        %v3213 = vld [vmem:[%s2469 + $0x3a] sm:$0xff]
        %v3214 = vld [vmem:[%s2469 + $0x4a] sm:$0xff]
        %v3215 = vld [vmem:[%s2469 + $0x52] sm:$0xff]
        %v3216 = vld [vmem:[%s2469 + $0x62] sm:$0xff]
        %v3217 = vld [vmem:[%s2469 + $0x6a] sm:$0xff]
        %v3218 = vld [vmem:[%s2469 + $0x7a] sm:$0xff]
        %v3219 = vld [vmem:[%s2469 + $0x82] sm:$0xff]
        %v3220 = vld [vmem:[%s2469 + $0x92] sm:$0xff]
        %v3221 = vld [vmem:[%s2469 + $0x9a] sm:$0xff]
        %v3222 = vld [vmem:[%s2469 + $0xaa] sm:$0xff]
        %v3223 = vld [vmem:[%s2469 + $0xb2] sm:$0xff]
        %v3224 = vld [vmem:[%s2469 + $0xc2] sm:$0xff]
        %v3225 = vld [vmem:[%s2469 + $0xca] sm:$0xff]
        %v3226 = vld [vmem:[%s2469 + $0xda] sm:$0xff]
        %v3227 = vld [vmem:[%s2469 + $0xe2] sm:$0xff]
        %v3228 = vld [vmem:[%s2469 + $0xf2] sm:$0xff]
        %v3229 = vld [vmem:[%s2469 + $0xfa] sm:$0xff]
        %v3230 = vld [vmem:[%s2469 + $0x10a] sm:$0xff]
        %v3231 = vld [vmem:[%s2469 + $0x112] sm:$0xff]
        %v3232 = vld [vmem:[%s2469 + $0x122] sm:$0xff]
        %v3233 = vld [vmem:[%s2469 + $0x12a] sm:$0xff]
        %v3234 = vld [vmem:[%s2469 + $0x13a] sm:$0xff]
        %v3235 = vld [vmem:[%s2469 + $0x142] sm:$0xff]
        %v3236 = vld [vmem:[%s2469 + $0x152] sm:$0xff]
        %v3237 = vld [vmem:[%s2469 + $0x15a] sm:$0xff]
        %v3238 = vld [vmem:[%s2469 + $0x16a] sm:$0xff]
        %v3239 = vld [vmem:[%s2469 + $0x172] sm:$0xff]
        %v3240 = vld [vmem:[%s1 + $0x400] sm:$0xff]
        %v3241 = vld [vmem:[%s1 + $0x408] sm:$0xff]
        %v3242 = vld [vmem:[%s1 + $0x410] sm:$0xff]
        %v3243 = vld [vmem:[%s1 + $0x418] sm:$0xff]
        %v3244 = vld [vmem:[%s1 + $0x420] sm:$0xff]
        %v3245 = vld [vmem:[%s1 + $0x428] sm:$0xff]
        %v3246 = vld [vmem:[%s1 + $0x430] sm:$0xff]
        %v3247 = vld [vmem:[%s1 + $0x438] sm:$0xff]
        %v3248 = vld [vmem:[%s1 + $0x440] sm:$0xff]
        %v3249 = vld [vmem:[%s1 + $0x448] sm:$0xff]
        %v3250 = vld [vmem:[%s1 + $0x450] sm:$0xff]
        %v3251 = vld [vmem:[%s1 + $0x458] sm:$0xff]
        %v3252 = vld [vmem:[%s1 + $0x460] sm:$0xff]
        %v3253 = vld [vmem:[%s1 + $0x468] sm:$0xff]
        %v3254 = vld [vmem:[%s1 + $0x470] sm:$0xff]
        %v3255 = vld [vmem:[%s1 + $0x478] sm:$0xff]
        %v3256 = vld [vmem:[#allocation2] sm:$0xff]
        %v3257 = vld [vmem:[#allocation2 + $0x8] sm:$0xff]
        %v3258 = vld [vmem:[#allocation2 + $0x10] sm:$0xff]
        %v3259 = vld [vmem:[#allocation2 + $0x18] sm:$0xff]
        %v3260 = vld [vmem:[#allocation2 + $0x20] sm:$0xff]
        %v3261 = vld [vmem:[#allocation2 + $0x28] sm:$0xff]
        %v3262 = vld [vmem:[#allocation2 + $0x30] sm:$0xff]
        %v3263 = vld [vmem:[#allocation2 + $0x38] sm:$0xff]
        %v3264 = vld [vmem:[#allocation2 + $0x40] sm:$0xff]
        %v3265 = vld [vmem:[#allocation2 + $0x48] sm:$0xff]
        %v3266 = vld [vmem:[#allocation2 + $0x50] sm:$0xff]
        %v3267 = vld [vmem:[#allocation2 + $0x58] sm:$0xff]
        %v3268 = vld [vmem:[#allocation2 + $0x60] sm:$0xff]
        %v3269 = vld [vmem:[#allocation2 + $0x68] sm:$0xff]
        %v3270 = vld [vmem:[#allocation2 + $0x70] sm:$0xff]
        %v3271 = vld [vmem:[#allocation2 + $0x78] sm:$0xff]
        %v3272 = vld [vmem:[#allocation2 + $0x80] sm:$0xff]
        %v3273 = vld [vmem:[#allocation2 + $0x88] sm:$0xff]
        %v3274 = vld [vmem:[#allocation2 + $0x90] sm:$0xff]
        %v3275 = vld [vmem:[#allocation2 + $0x98] sm:$0xff]
        %v3276 = vld [vmem:[#allocation2 + $0xa0] sm:$0xff]
        %v3277 = vld [vmem:[#allocation2 + $0xa8] sm:$0xff]
        %v3278 = vld [vmem:[#allocation2 + $0xb0] sm:$0xff]
        %v3279 = vld [vmem:[#allocation2 + $0xb8] sm:$0xff]
        %v3280 = vld [vmem:[#allocation2 + $0xc0] sm:$0xff]
        %v3281 = vld [vmem:[#allocation2 + $0xc8] sm:$0xff]
        %v3282 = vld [vmem:[#allocation2 + $0xd0] sm:$0xff]
        %v3283 = vld [vmem:[#allocation2 + $0xd8] sm:$0xff]
        %v3284 = vld [vmem:[#allocation2 + $0xe0] sm:$0xff]
        %v3285 = vld [vmem:[#allocation2 + $0xe8] sm:$0xff]
        %v3286 = vld [vmem:[#allocation2 + $0xf0] sm:$0xff]
        %v3287 = vld [vmem:[#allocation2 + $0xf8] sm:$0xff]
        %3288 = vmatprep.subr.mxu0 0.0
        %3289 = vmatpush1.msra.mxu0 %v3255
        %3290 = vmatprep.subr.mxu0 0.0
        %3291 = vmatpush1.msra.mxu0 %v3254
        %3292 = vmatprep.subr.mxu0 0.0
        %3293 = vmatpush1.msra.mxu0 %v3253
        %3294 = vmatprep.subr.mxu0 0.0
        %3295 = vmatpush1.msra.mxu0 %v3252
        %3296 = vmatprep.subr.mxu0 0.0
        %3297 = vmatpush1.msra.mxu0 %v3251
        %3298 = vmatprep.subr.mxu0 0.0
        %3299 = vmatpush1.msra.mxu0 %v3250
        %3300 = vmatprep.subr.mxu0 0.0
        %3301 = vmatpush1.msra.mxu0 %v3249
        %3302 = vmatprep.subr.mxu0 0.0
        %3303 = vmatpush1.msra.mxu0 %v3248
        %3304 = vmatprep.subr.mxu0 0.0
        %3305 = vmatpush1.msra.mxu0 %v3247
        %3306 = vmatprep.subr.mxu0 0.0
        %3307 = vmatpush1.msra.mxu0 %v3246
        %3308 = vmatprep.subr.mxu0 0.0
        %3309 = vmatpush1.msra.mxu0 %v3245
        %3310 = vmatprep.subr.mxu0 0.0
        %3311 = vmatpush1.msra.mxu0 %v3244
        %3312 = vmatprep.subr.mxu0 0.0
        %3313 = vmatpush1.msra.mxu0 %v3243
        %3314 = vmatprep.subr.mxu0 0.0
        %3315 = vmatpush1.msra.mxu0 %v3242
        %3316 = vmatprep.subr.mxu0 0.0
        %3317 = vmatpush1.msra.mxu0 %v3241
        %3318 = vmatprep.subr.mxu0 0.0
        %3319 = vmatpush1.msra.mxu0 %v3240
        %3320 = vmatprep.subr.mxu0 0.0
        %3321 = vmatpush2.msra.mxu0 0.0
        %3322 = vmatprep.subr.mxu0 0.0
        %3323 = vmatpush2.msra.mxu0 0.0
        %3324 = vmatprep.subr.mxu0 0.0
        %3325 = vmatpush2.msra.mxu0 0.0
        %3326 = vmatprep.subr.mxu0 0.0
        %3327 = vmatpush2.msra.mxu0 0.0
        %3328 = vmatprep.subr.mxu0 0.0
        %3329 = vmatpush2.msra.mxu0 0.0
        %3330 = vmatprep.subr.mxu0 0.0
        %3331 = vmatpush2.msra.mxu0 0.0
        %3332 = vmatprep.subr.mxu0 0.0
        %3333 = vmatpush2.msra.mxu0 0.0
        %3334 = vmatprep.subr.mxu0 0.0
        %3335 = vmatpush2.msra.mxu0 0.0
        %3336 = vmatprep.subr.mxu0 0.0
        %3337 = vmatpush2.msra.mxu0 0.0
        %3338 = vmatprep.subr.mxu0 0.0
        %3339 = vmatpush2.msra.mxu0 0.0
        %3340 = vmatprep.subr.mxu0 0.0
        %3341 = vmatpush2.msra.mxu0 0.0
        %3342 = vmatprep.subr.mxu0 0.0
        %3343 = vmatpush2.msra.mxu0 0.0
        %3344 = vmatprep.subr.mxu0 0.0
        %3345 = vmatpush2.msra.mxu0 0.0
        %3346 = vmatprep.subr.mxu0 0.0
        %3347 = vmatpush2.msra.mxu0 0.0
        %3348 = vmatprep.subr.mxu0 0.0
        %3349 = vmatpush2.msra.mxu0 0.0
        %3350 = vmatprep.subr.mxu0 0.0
        %3351 = vmatpush2.msra.mxu0 0.0
        %3352 = vmatprep.mubr.f32.mxu0 0.0
        %3353 = vmatmul.mubr.f32.gmra.mxu0 %v3208
        %v3354 = vpop.f32.mrf.mxu0
        %v3355 = vadd.f32 0.0, %v3354
        %v3356 = vpop.f32.mrf.mxu0
        %3357 = vmatprep.mubr.f32.mxu0 0.0
        %3358 = vmatmul.mubr.f32.gmra.mxu0 %v3209
        %v3359 = vpop.f32.mrf.mxu0
        %v3360 = vadd.f32 0.0, %v3359
        %v3361 = vpop.f32.mrf.mxu0
        %3362 = vmatprep.mubr.f32.mxu0 0.0
        %3363 = vmatmul.mubr.f32.gmra.mxu0 %v3210
        %v3364 = vpop.f32.mrf.mxu0
        %v3365 = vadd.f32 0.0, %v3364
        %v3366 = vpop.f32.mrf.mxu0
        %3367 = vmatprep.mubr.f32.mxu0 0.0
        %3368 = vmatmul.mubr.f32.gmra.mxu0 %v3211
        %v3369 = vpop.f32.mrf.mxu0
        %v3370 = vadd.f32 0.0, %v3369
        %v3371 = vpop.f32.mrf.mxu0
        %3372 = vmatprep.mubr.f32.mxu0 0.0
        %3373 = vmatmul.mubr.f32.gmra.mxu0 %v3212
        %v3374 = vpop.f32.mrf.mxu0
        %v3375 = vadd.f32 0.0, %v3374
        %v3376 = vpop.f32.mrf.mxu0
        %3377 = vmatprep.mubr.f32.mxu0 0.0
        %3378 = vmatmul.mubr.f32.gmra.mxu0 %v3213
        %v3379 = vpop.f32.mrf.mxu0
        %v3380 = vadd.f32 0.0, %v3379
        %v3381 = vpop.f32.mrf.mxu0
        %3382 = vmatprep.mubr.f32.mxu0 0.0
        %3383 = vmatmul.mubr.f32.gmra.mxu0 %v3214
        %v3384 = vpop.f32.mrf.mxu0
        %v3385 = vadd.f32 0.0, %v3384
        %v3386 = vpop.f32.mrf.mxu0
        %3387 = vmatprep.mubr.f32.mxu0 0.0
        %3388 = vmatmul.mubr.f32.gmra.mxu0 %v3215
        %v3389 = vpop.f32.mrf.mxu0
        %v3390 = vadd.f32 0.0, %v3389
        %v3391 = vpop.f32.mrf.mxu0
        %3392 = vmatprep.mubr.f32.mxu0 0.0
        %3393 = vmatmul.mubr.f32.gmra.mxu0 %v3216
        %v3394 = vpop.f32.mrf.mxu0
        %v3395 = vadd.f32 0.0, %v3394
        %v3396 = vpop.f32.mrf.mxu0
        %3397 = vmatprep.mubr.f32.mxu0 0.0
        %3398 = vmatmul.mubr.f32.gmra.mxu0 %v3217
        %v3399 = vpop.f32.mrf.mxu0
        %v3400 = vadd.f32 0.0, %v3399
        %v3401 = vpop.f32.mrf.mxu0
        %3402 = vmatprep.mubr.f32.mxu0 0.0
        %3403 = vmatmul.mubr.f32.gmra.mxu0 %v3218
        %v3404 = vpop.f32.mrf.mxu0
        %v3405 = vadd.f32 0.0, %v3404
        %v3406 = vpop.f32.mrf.mxu0
        %3407 = vmatprep.mubr.f32.mxu0 0.0
        %3408 = vmatmul.mubr.f32.gmra.mxu0 %v3219
        %v3409 = vpop.f32.mrf.mxu0
        %v3410 = vadd.f32 0.0, %v3409
        %v3411 = vpop.f32.mrf.mxu0
        %3412 = vmatprep.mubr.f32.mxu0 0.0
        %3413 = vmatmul.mubr.f32.gmra.mxu0 %v3220
        %v3414 = vpop.f32.mrf.mxu0
        %v3415 = vadd.f32 0.0, %v3414
        %v3416 = vpop.f32.mrf.mxu0
        %3417 = vmatprep.mubr.f32.mxu0 0.0
        %3418 = vmatmul.mubr.f32.gmra.mxu0 %v3221
        %v3419 = vpop.f32.mrf.mxu0
        %v3420 = vadd.f32 0.0, %v3419
        %v3421 = vpop.f32.mrf.mxu0
        %3422 = vmatprep.mubr.f32.mxu0 0.0
        %3423 = vmatmul.mubr.f32.gmra.mxu0 %v3222
        %v3424 = vpop.f32.mrf.mxu0
        %v3425 = vadd.f32 0.0, %v3424
        %v3426 = vpop.f32.mrf.mxu0
        %3427 = vmatprep.mubr.f32.mxu0 0.0
        %3428 = vmatmul.mubr.f32.gmra.mxu0 %v3223
        %v3429 = vpop.f32.mrf.mxu0
        %v3430 = vadd.f32 0.0, %v3429
        %v3431 = vpop.f32.mrf.mxu0
        %3432 = vmatprep.mubr.f32.mxu0 0.0
        %3433 = vmatmul.mubr.f32.gmra.mxu0 %v3224
        %v3434 = vpop.f32.mrf.mxu0
        %v3435 = vadd.f32 0.0, %v3434
        %v3436 = vpop.f32.mrf.mxu0
        %3437 = vmatprep.mubr.f32.mxu0 0.0
        %3438 = vmatmul.mubr.f32.gmra.mxu0 %v3225
        %v3439 = vpop.f32.mrf.mxu0
        %v3440 = vadd.f32 0.0, %v3439
        %v3441 = vpop.f32.mrf.mxu0
        %3442 = vmatprep.mubr.f32.mxu0 0.0
        %3443 = vmatmul.mubr.f32.gmra.mxu0 %v3226
        %v3444 = vpop.f32.mrf.mxu0
        %v3445 = vadd.f32 0.0, %v3444
        %v3446 = vpop.f32.mrf.mxu0
        %3447 = vmatprep.mubr.f32.mxu0 0.0
        %3448 = vmatmul.mubr.f32.gmra.mxu0 %v3227
        %v3449 = vpop.f32.mrf.mxu0
        %v3450 = vadd.f32 0.0, %v3449
        %v3451 = vpop.f32.mrf.mxu0
        %3452 = vmatprep.mubr.f32.mxu0 0.0
        %3453 = vmatmul.mubr.f32.gmra.mxu0 %v3228
        %v3454 = vpop.f32.mrf.mxu0
        %v3455 = vadd.f32 0.0, %v3454
        %v3456 = vpop.f32.mrf.mxu0
        %3457 = vmatprep.mubr.f32.mxu0 0.0
        %3458 = vmatmul.mubr.f32.gmra.mxu0 %v3229
        %v3459 = vpop.f32.mrf.mxu0
        %v3460 = vadd.f32 0.0, %v3459
        %v3461 = vpop.f32.mrf.mxu0
        %3462 = vmatprep.mubr.f32.mxu0 0.0
        %3463 = vmatmul.mubr.f32.gmra.mxu0 %v3230
        %v3464 = vpop.f32.mrf.mxu0
        %v3465 = vadd.f32 0.0, %v3464
        %v3466 = vpop.f32.mrf.mxu0
        %3467 = vmatprep.mubr.f32.mxu0 0.0
        %3468 = vmatmul.mubr.f32.gmra.mxu0 %v3231
        %v3469 = vpop.f32.mrf.mxu0
        %v3470 = vadd.f32 0.0, %v3469
        %v3471 = vpop.f32.mrf.mxu0
        %3472 = vmatprep.mubr.f32.mxu0 0.0
        %3473 = vmatmul.mubr.f32.gmra.mxu0 %v3232
        %v3474 = vpop.f32.mrf.mxu0
        %v3475 = vadd.f32 0.0, %v3474
        %v3476 = vpop.f32.mrf.mxu0
        %3477 = vmatprep.mubr.f32.mxu0 0.0
        %3478 = vmatmul.mubr.f32.gmra.mxu0 %v3233
        %v3479 = vpop.f32.mrf.mxu0
        %v3480 = vadd.f32 0.0, %v3479
        %v3481 = vpop.f32.mrf.mxu0
        %3482 = vmatprep.mubr.f32.mxu0 0.0
        %3483 = vmatmul.mubr.f32.gmra.mxu0 %v3234
        %v3484 = vpop.f32.mrf.mxu0
        %v3485 = vadd.f32 0.0, %v3484
        %v3486 = vpop.f32.mrf.mxu0
        %3487 = vmatprep.mubr.f32.mxu0 0.0
        %3488 = vmatmul.mubr.f32.gmra.mxu0 %v3235
        %v3489 = vpop.f32.mrf.mxu0
        %v3490 = vadd.f32 0.0, %v3489
        %v3491 = vpop.f32.mrf.mxu0
        %3492 = vmatprep.mubr.f32.mxu0 0.0
        %3493 = vmatmul.mubr.f32.gmra.mxu0 %v3236
        %v3494 = vpop.f32.mrf.mxu0
        %v3495 = vadd.f32 0.0, %v3494
        %v3496 = vpop.f32.mrf.mxu0
        %3497 = vmatprep.mubr.f32.mxu0 0.0
        %3498 = vmatmul.mubr.f32.gmra.mxu0 %v3237
        %v3499 = vpop.f32.mrf.mxu0
        %v3500 = vadd.f32 0.0, %v3499
        %v3501 = vpop.f32.mrf.mxu0
        %3502 = vmatprep.mubr.f32.mxu0 0.0
        %3503 = vmatmul.mubr.f32.gmra.mxu0 %v3238
        %v3504 = vpop.f32.mrf.mxu0
        %v3505 = vadd.f32 0.0, %v3504
        %v3506 = vpop.f32.mrf.mxu0
        %3507 = vmatprep.mubr.f32.mxu0 0.0
        %3508 = vmatmul.mubr.f32.gmra.mxu0 %v3239
        %v3509 = vpop.f32.mrf.mxu0
        %v3510 = vadd.f32 0.0, %v3509
        %v3511 = vpop.f32.mrf.mxu0
        %3512 = vdwg.mxu0
        %v3513 = vadd.f32 %v3256, %v3355
        %v3514 = vadd.f32 %v3257, %v3360
        %v3515 = vadd.f32 %v3258, %v3365
        %v3516 = vadd.f32 %v3259, %v3370
        %v3517 = vadd.f32 %v3260, %v3375
        %v3518 = vadd.f32 %v3261, %v3380
        %v3519 = vadd.f32 %v3262, %v3385
        %v3520 = vadd.f32 %v3263, %v3390
        %v3521 = vadd.f32 %v3264, %v3395
        %v3522 = vadd.f32 %v3265, %v3400
        %v3523 = vadd.f32 %v3266, %v3405
        %v3524 = vadd.f32 %v3267, %v3410
        %v3525 = vadd.f32 %v3268, %v3415
        %v3526 = vadd.f32 %v3269, %v3420
        %v3527 = vadd.f32 %v3270, %v3425
        %v3528 = vadd.f32 %v3271, %v3430
        %v3529 = vadd.f32 %v3272, %v3435
        %v3530 = vadd.f32 %v3273, %v3440
        %v3531 = vadd.f32 %v3274, %v3445
        %v3532 = vadd.f32 %v3275, %v3450
        %v3533 = vadd.f32 %v3276, %v3455
        %v3534 = vadd.f32 %v3277, %v3460
        %v3535 = vadd.f32 %v3278, %v3465
        %v3536 = vadd.f32 %v3279, %v3470
        %v3537 = vadd.f32 %v3280, %v3475
        %v3538 = vadd.f32 %v3281, %v3480
        %v3539 = vadd.f32 %v3282, %v3485
        %v3540 = vadd.f32 %v3283, %v3490
        %v3541 = vadd.f32 %v3284, %v3495
        %v3542 = vadd.f32 %v3285, %v3500
        %v3543 = vadd.f32 %v3286, %v3505
        %v3544 = vadd.f32 %v3287, %v3510
        %3545 = vst [vmem:[#allocation2] sm:$0xff] %v3513
        %3546 = vst [vmem:[#allocation2 + $0x8] sm:$0xff] %v3514
        %3547 = vst [vmem:[#allocation2 + $0x10] sm:$0xff] %v3515
        %3548 = vst [vmem:[#allocation2 + $0x18] sm:$0xff] %v3516
        %3549 = vst [vmem:[#allocation2 + $0x20] sm:$0xff] %v3517
        %3550 = vst [vmem:[#allocation2 + $0x28] sm:$0xff] %v3518
        %3551 = vst [vmem:[#allocation2 + $0x30] sm:$0xff] %v3519
        %3552 = vst [vmem:[#allocation2 + $0x38] sm:$0xff] %v3520
        %3553 = vst [vmem:[#allocation2 + $0x40] sm:$0xff] %v3521
        %3554 = vst [vmem:[#allocation2 + $0x48] sm:$0xff] %v3522
        %3555 = vst [vmem:[#allocation2 + $0x50] sm:$0xff] %v3523
        %3556 = vst [vmem:[#allocation2 + $0x58] sm:$0xff] %v3524
        %3557 = vst [vmem:[#allocation2 + $0x60] sm:$0xff] %v3525
        %3558 = vst [vmem:[#allocation2 + $0x68] sm:$0xff] %v3526
        %3559 = vst [vmem:[#allocation2 + $0x70] sm:$0xff] %v3527
        %3560 = vst [vmem:[#allocation2 + $0x78] sm:$0xff] %v3528
        %3561 = vst [vmem:[#allocation2 + $0x80] sm:$0xff] %v3529
        %3562 = vst [vmem:[#allocation2 + $0x88] sm:$0xff] %v3530
        %3563 = vst [vmem:[#allocation2 + $0x90] sm:$0xff] %v3531
        %3564 = vst [vmem:[#allocation2 + $0x98] sm:$0xff] %v3532
        %3565 = vst [vmem:[#allocation2 + $0xa0] sm:$0xff] %v3533
        %3566 = vst [vmem:[#allocation2 + $0xa8] sm:$0xff] %v3534
        %3567 = vst [vmem:[#allocation2 + $0xb0] sm:$0xff] %v3535
        %3568 = vst [vmem:[#allocation2 + $0xb8] sm:$0xff] %v3536
        %3569 = vst [vmem:[#allocation2 + $0xc0] sm:$0xff] %v3537
        %3570 = vst [vmem:[#allocation2 + $0xc8] sm:$0xff] %v3538
        %3571 = vst [vmem:[#allocation2 + $0xd0] sm:$0xff] %v3539
        %3572 = vst [vmem:[#allocation2 + $0xd8] sm:$0xff] %v3540
        %3573 = vst [vmem:[#allocation2 + $0xe0] sm:$0xff] %v3541
        %3574 = vst [vmem:[#allocation2 + $0xe8] sm:$0xff] %v3542
        %3575 = vst [vmem:[#allocation2 + $0xf0] sm:$0xff] %v3543
        %3576 = vst [vmem:[#allocation2 + $0xf8] sm:$0xff] %v3544
        %v3577 = vld [vmem:[#allocation2] sm:$0xff]
        %v3578 = vld [vmem:[#allocation2 + $0x8] sm:$0xff]
        %v3579 = vld [vmem:[#allocation2 + $0x10] sm:$0xff]
        %v3580 = vld [vmem:[#allocation2 + $0x18] sm:$0xff]
        %v3581 = vld [vmem:[#allocation2 + $0x20] sm:$0xff]
        %v3582 = vld [vmem:[#allocation2 + $0x28] sm:$0xff]
        %v3583 = vld [vmem:[#allocation2 + $0x30] sm:$0xff]
        %v3584 = vld [vmem:[#allocation2 + $0x38] sm:$0xff]
        %v3585 = vld [vmem:[#allocation2 + $0x40] sm:$0xff]
        %v3586 = vld [vmem:[#allocation2 + $0x48] sm:$0xff]
        %v3587 = vld [vmem:[#allocation2 + $0x50] sm:$0xff]
        %v3588 = vld [vmem:[#allocation2 + $0x58] sm:$0xff]
        %v3589 = vld [vmem:[#allocation2 + $0x60] sm:$0xff]
        %v3590 = vld [vmem:[#allocation2 + $0x68] sm:$0xff]
        %v3591 = vld [vmem:[#allocation2 + $0x70] sm:$0xff]
        %v3592 = vld [vmem:[#allocation2 + $0x78] sm:$0xff]
        %v3593 = vld [vmem:[#allocation2 + $0x80] sm:$0xff]
        %v3594 = vld [vmem:[#allocation2 + $0x88] sm:$0xff]
        %v3595 = vld [vmem:[#allocation2 + $0x90] sm:$0xff]
        %v3596 = vld [vmem:[#allocation2 + $0x98] sm:$0xff]
        %v3597 = vld [vmem:[#allocation2 + $0xa0] sm:$0xff]
        %v3598 = vld [vmem:[#allocation2 + $0xa8] sm:$0xff]
        %v3599 = vld [vmem:[#allocation2 + $0xb0] sm:$0xff]
        %v3600 = vld [vmem:[#allocation2 + $0xb8] sm:$0xff]
        %v3601 = vld [vmem:[#allocation2 + $0xc0] sm:$0xff]
        %v3602 = vld [vmem:[#allocation2 + $0xc8] sm:$0xff]
        %v3603 = vld [vmem:[#allocation2 + $0xd0] sm:$0xff]
        %v3604 = vld [vmem:[#allocation2 + $0xd8] sm:$0xff]
        %v3605 = vld [vmem:[#allocation2 + $0xe0] sm:$0xff]
        %v3606 = vld [vmem:[#allocation2 + $0xe8] sm:$0xff]
        %v3607 = vld [vmem:[#allocation2 + $0xf0] sm:$0xff]
        %v3608 = vld [vmem:[#allocation2 + $0xf8] sm:$0xff]
        %v3609 = vld [vmem:[%s2] sm:$0x1]
        %v3611 = vlaneseq
        %v3612 = vshrl.u32 %v3611, 7
        %v3613 = vsub.s32 0, %v3612
        %v3614 = vrot.slane %v3609, %v3613
        %v3616 = vadd.f32 %v3577, %v3614
        %v3617 = vadd.f32 %v3578, %v3614
        %v3618 = vadd.f32 %v3579, %v3614
        %v3619 = vadd.f32 %v3580, %v3614
        %v3620 = vadd.f32 %v3581, %v3614
        %v3621 = vadd.f32 %v3582, %v3614
        %v3622 = vadd.f32 %v3583, %v3614
        %v3623 = vadd.f32 %v3584, %v3614
        %v3624 = vadd.f32 %v3585, %v3614
        %v3625 = vadd.f32 %v3586, %v3614
        %v3626 = vadd.f32 %v3587, %v3614
        %v3627 = vadd.f32 %v3588, %v3614
        %v3628 = vadd.f32 %v3589, %v3614
        %v3629 = vadd.f32 %v3590, %v3614
        %v3630 = vadd.f32 %v3591, %v3614
        %v3631 = vadd.f32 %v3592, %v3614
        %v3632 = vadd.f32 %v3593, %v3614
        %v3633 = vadd.f32 %v3594, %v3614
        %v3634 = vadd.f32 %v3595, %v3614
        %v3635 = vadd.f32 %v3596, %v3614
        %v3636 = vadd.f32 %v3597, %v3614
        %v3637 = vadd.f32 %v3598, %v3614
        %v3638 = vadd.f32 %v3599, %v3614
        %v3639 = vadd.f32 %v3600, %v3614
        %v3640 = vadd.f32 %v3601, %v3614
        %v3641 = vadd.f32 %v3602, %v3614
        %v3642 = vadd.f32 %v3603, %v3614
        %v3643 = vadd.f32 %v3604, %v3614
        %v3644 = vadd.f32 %v3605, %v3614
        %v3645 = vadd.f32 %v3606, %v3614
        %v3646 = vadd.f32 %v3607, %v3614
        %v3647 = vadd.f32 %v3608, %v3614
        %v3648 = vmax.f32 %v3616, 0.0
        %v3649 = vmax.f32 %v3617, 0.0
        %v3650 = vmax.f32 %v3618, 0.0
        %v3651 = vmax.f32 %v3619, 0.0
        %v3652 = vmax.f32 %v3620, 0.0
        %v3653 = vmax.f32 %v3621, 0.0
        %v3654 = vmax.f32 %v3622, 0.0
        %v3655 = vmax.f32 %v3623, 0.0
        %v3656 = vmax.f32 %v3624, 0.0
        %v3657 = vmax.f32 %v3625, 0.0
        %v3658 = vmax.f32 %v3626, 0.0
        %v3659 = vmax.f32 %v3627, 0.0
        %v3660 = vmax.f32 %v3628, 0.0
        %v3661 = vmax.f32 %v3629, 0.0
        %v3662 = vmax.f32 %v3630, 0.0
        %v3663 = vmax.f32 %v3631, 0.0
        %v3664 = vmax.f32 %v3632, 0.0
        %v3665 = vmax.f32 %v3633, 0.0
        %v3666 = vmax.f32 %v3634, 0.0
        %v3667 = vmax.f32 %v3635, 0.0
        %v3668 = vmax.f32 %v3636, 0.0
        %v3669 = vmax.f32 %v3637, 0.0
        %v3670 = vmax.f32 %v3638, 0.0
        %v3671 = vmax.f32 %v3639, 0.0
        %v3672 = vmax.f32 %v3640, 0.0
        %v3673 = vmax.f32 %v3641, 0.0
        %v3674 = vmax.f32 %v3642, 0.0
        %v3675 = vmax.f32 %v3643, 0.0
        %v3676 = vmax.f32 %v3644, 0.0
        %v3677 = vmax.f32 %v3645, 0.0
        %v3678 = vmax.f32 %v3646, 0.0
        %v3679 = vmax.f32 %v3647, 0.0
        %v3680 = vadd.f32 %v3648, %v3649
        %v3681 = vadd.f32 %v3680, %v3650
        %v3682 = vadd.f32 %v3681, %v3651
        %v3683 = vadd.f32 %v3682, %v3652
        %v3684 = vadd.f32 %v3683, %v3653
        %v3685 = vadd.f32 %v3684, %v3654
        %v3686 = vadd.f32 %v3685, %v3655
        %v3687 = vadd.f32 %v3686, %v3656
        %v3688 = vadd.f32 %v3687, %v3657
        %v3689 = vadd.f32 %v3688, %v3658
        %v3690 = vadd.f32 %v3689, %v3659
        %v3691 = vadd.f32 %v3690, %v3660
        %v3692 = vadd.f32 %v3691, %v3661
        %v3693 = vadd.f32 %v3692, %v3662
        %v3694 = vadd.f32 %v3693, %v3663
        %v3695 = vadd.f32 %v3694, %v3664
        %v3696 = vadd.f32 %v3695, %v3665
        %v3697 = vadd.f32 %v3696, %v3666
        %v3698 = vadd.f32 %v3697, %v3667
        %v3699 = vadd.f32 %v3698, %v3668
        %v3700 = vadd.f32 %v3699, %v3669
        %v3701 = vadd.f32 %v3700, %v3670
        %v3702 = vadd.f32 %v3701, %v3671
        %v3703 = vadd.f32 %v3702, %v3672
        %v3704 = vadd.f32 %v3703, %v3673
        %v3705 = vadd.f32 %v3704, %v3674
        %v3706 = vadd.f32 %v3705, %v3675
        %v3707 = vadd.f32 %v3706, %v3676
        %v3708 = vadd.f32 %v3707, %v3677
        %v3709 = vadd.f32 %v3708, %v3678
        %v3710 = vadd.f32 %v3709, %v3679
        %v3711 = vrot.slane %v3710, 4
        %v3712 = vadd.f32 %v3710, %v3711
        %v3713 = vrot.slane %v3712, 2
        %v3714 = vadd.f32 %v3712, %v3713
        %v3715 = vrot.slane %v3714, 1
        %v3716 = vadd.f32 %v3714, %v3715
        %v3717 = vmul.f32 %v3716, 0.00390625
        %v3718 = vld [vmem:[%s3] sm:$0xff]
        %v3719 = vld [vmem:[%s3 + $0x8] sm:$0xff]
        %v3720 = vld [vmem:[%s3 + $0x10] sm:$0xff]
        %v3721 = vld [vmem:[%s3 + $0x18] sm:$0xff]
        %v3722 = vld [vmem:[%s3 + $0x20] sm:$0xff]
        %v3723 = vld [vmem:[%s3 + $0x28] sm:$0xff]
        %v3724 = vld [vmem:[%s3 + $0x30] sm:$0xff]
        %v3725 = vld [vmem:[%s3 + $0x38] sm:$0xff]
        %v3726 = vld [vmem:[%s3 + $0x40] sm:$0xff]
        %v3727 = vld [vmem:[%s3 + $0x48] sm:$0xff]
        %v3728 = vld [vmem:[%s3 + $0x50] sm:$0xff]
        %v3729 = vld [vmem:[%s3 + $0x58] sm:$0xff]
        %v3730 = vld [vmem:[%s3 + $0x60] sm:$0xff]
        %v3731 = vld [vmem:[%s3 + $0x68] sm:$0xff]
        %v3732 = vld [vmem:[%s3 + $0x70] sm:$0xff]
        %v3733 = vld [vmem:[%s3 + $0x78] sm:$0xff]
        %v3734 = vld [vmem:[%s4] sm:$0x1]
        %3735 = vmatprep.subr.mxu0 0.0
        %3736 = vmatpush1.msra.mxu0 %v3733
        %3737 = vmatprep.subr.mxu0 0.0
        %3738 = vmatpush1.msra.mxu0 %v3732
        %3739 = vmatprep.subr.mxu0 0.0
        %3740 = vmatpush1.msra.mxu0 %v3731
        %3741 = vmatprep.subr.mxu0 0.0
        %3742 = vmatpush1.msra.mxu0 %v3730
        %3743 = vmatprep.subr.mxu0 0.0
        %3744 = vmatpush1.msra.mxu0 %v3729
        %3745 = vmatprep.subr.mxu0 0.0
        %3746 = vmatpush1.msra.mxu0 %v3728
        %3747 = vmatprep.subr.mxu0 0.0
        %3748 = vmatpush1.msra.mxu0 %v3727
        %3749 = vmatprep.subr.mxu0 0.0
        %3750 = vmatpush1.msra.mxu0 %v3726
        %3751 = vmatprep.subr.mxu0 0.0
        %3752 = vmatpush1.msra.mxu0 %v3725
        %3753 = vmatprep.subr.mxu0 0.0
        %3754 = vmatpush1.msra.mxu0 %v3724
        %3755 = vmatprep.subr.mxu0 0.0
        %3756 = vmatpush1.msra.mxu0 %v3723
        %3757 = vmatprep.subr.mxu0 0.0
        %3758 = vmatpush1.msra.mxu0 %v3722
        %3759 = vmatprep.subr.mxu0 0.0
        %3760 = vmatpush1.msra.mxu0 %v3721
        %3761 = vmatprep.subr.mxu0 0.0
        %3762 = vmatpush1.msra.mxu0 %v3720
        %3763 = vmatprep.subr.mxu0 0.0
        %3764 = vmatpush1.msra.mxu0 %v3719
        %3765 = vmatprep.subr.mxu0 0.0
        %3766 = vmatpush1.msra.mxu0 %v3718
        %3767 = vmatprep.subr.mxu0 0.0
        %3768 = vmatpush2.msra.mxu0 0.0
        %3769 = vmatprep.subr.mxu0 0.0
        %3770 = vmatpush2.msra.mxu0 0.0
        %3771 = vmatprep.subr.mxu0 0.0
        %3772 = vmatpush2.msra.mxu0 0.0
        %3773 = vmatprep.subr.mxu0 0.0
        %3774 = vmatpush2.msra.mxu0 0.0
        %3775 = vmatprep.subr.mxu0 0.0
        %3776 = vmatpush2.msra.mxu0 0.0
        %3777 = vmatprep.subr.mxu0 0.0
        %3778 = vmatpush2.msra.mxu0 0.0
        %3779 = vmatprep.subr.mxu0 0.0
        %3780 = vmatpush2.msra.mxu0 0.0
        %3781 = vmatprep.subr.mxu0 0.0
        %3782 = vmatpush2.msra.mxu0 0.0
        %3783 = vmatprep.subr.mxu0 0.0
        %3784 = vmatpush2.msra.mxu0 0.0
        %3785 = vmatprep.subr.mxu0 0.0
        %3786 = vmatpush2.msra.mxu0 0.0
        %3787 = vmatprep.subr.mxu0 0.0
        %3788 = vmatpush2.msra.mxu0 0.0
        %3789 = vmatprep.subr.mxu0 0.0
        %3790 = vmatpush2.msra.mxu0 0.0
        %3791 = vmatprep.subr.mxu0 0.0
        %3792 = vmatpush2.msra.mxu0 0.0
        %3793 = vmatprep.subr.mxu0 0.0
        %3794 = vmatpush2.msra.mxu0 0.0
        %3795 = vmatprep.subr.mxu0 0.0
        %3796 = vmatpush2.msra.mxu0 0.0
        %3797 = vmatprep.subr.mxu0 0.0
        %3798 = vmatpush2.msra.mxu0 0.0
        %3799 = vmatprep.mubr.f32.mxu0 0.0
        %3800 = vmatmul.mubr.f32.gmra.mxu0 %v3717
        %v3801 = vpop.f32.mrf.mxu0
        %v3802 = vadd.f32 %v3734, %v3801
        %v3803 = vpop.f32.mrf.mxu0
        %3804 = vdwg.mxu0
        %v3805 = vsub.f32 0.0, %v3802
        %v3806 = vmul.f32 %v3805, 1.442695
        %v3807 = vpow.pop %v3806
        %v3808 = vadd.f32 %v3807, 1.0
        %v3809 = vrcp.pop %v3808
        %v3810 = vmul.f32 1.0, %v3809
        %vm3811 = vcmask 147456
        %3812 = vst.msk [vmem:[%s216] sm:$0x1] %vm3811, %v3810
        %s3813 = sand.u32 %s137, 1
        %s3814 = scalar_lea.sflag [#allocation4], %s3813
        %s3815 = sand.u32 %s137, 1
        %s3816 = scalar_lea.vmem [#allocation3], %s3815
        // Predicated region
        $region41: #{aera_head_forward.1} parent=39 // pred_check
          %p3817 = pneg %p147
        $region42: #{aera_head_forward.1} parent=39 // pred_check_branch
          %3819 = sbr.rel (%p3817) target = $region44
        $region43: #{aera_head_forward.1} parent=39 // pred_region
          %s3821 = ssub.s32 16, 16
          %3822 = vsyncadd %s3814, %s3821
          %s3823 = smul.addr %s19, 16
          %s3824 = scalar_lea.hbm %s5, %s3823
          %s3826 = sshll.u32 %s3816, 4
          %s3827 = int_to_ptr.vmem [resolvable:$true] %s3826
          %3829 = dma.vmem_to_hbm [thread:$0]  %s3827, 16, %s3824, %s3814
        $region44: #{aera_head_forward.1} parent=39 // pred_fallthru
          _
      $region40: #{aera_head_forward.1} parent=5 // pred_fallthru
        _
      %p3830 = scmp.le.s32.totalorder 2, %s14
      // Predicated region
      $region45: #{aera_head_forward.1} parent=5 // pred_check
        %p3831 = pneg %p3830
      $region46: #{aera_head_forward.1} parent=5 // pred_check_branch
        %3833 = sbr.rel (%p3831) target = $region48
      $region47: #{aera_head_forward.1} parent=5 // pred_region
        %s3834 = ssub.s32 %s14, 2
        // Predicated region
        $region49: #{aera_head_forward.1} parent=47 // pred_check
          %p3835 = pneg %p153
        $region50: #{aera_head_forward.1} parent=47 // pred_check_branch
          %3837 = sbr.rel (%p3835) target = $region52
        $region51: #{aera_head_forward.1} parent=47 // pred_region
          %s3838 = sand.u32 %s138, 1
          %s3839 = scalar_lea.sflag [#allocation4], %s3838
          %s3840 = sand.u32 %s138, 1
          %s3841 = scalar_lea.vmem [#allocation3], %s3840
          %3842 = dma.done %s3839, 16
        $region52: #{aera_head_forward.1} parent=47 // pred_fallthru
          _
      $region48: #{aera_head_forward.1} parent=5 // pred_fallthru
        _
    $region6: #{aera_head_forward.1} parent=1 // loop_footer
      %s18 = sadd.s32 1, %s14
    $region7: #{aera_head_forward.1} parent=1 // loop_footer_branch
      %13 = sbr.rel target = $region3
    $region8: #{aera_head_forward.1} parent=1 // loop_exit
      _
    %3843 = vsyncpa [#allocation4], 1
    %s3844 = scalar_lea.sflag [#allocation4], 1
    %3845 = vsyncpa %s3844, 1

</llo_original>
